<compile_context>
chip_gen: v6e
topology: v6e:2x2x1
jax: 0.10.0
libtpu: 0.0.40
codegen_flags: <defaults>
</compile_context>

<pallas_src>
import functools

import jax
import jax.numpy as jnp
from jax.experimental import pallas as pl
from jax.experimental.pallas import tpu as pltpu

# ------------------------- model hyper-parameters ---------------------------
EMB_DIM = 32          # emb_dim
MLP_DIM = 64          # mlp_dim
NUM_BLOCKS = 2        # num_sim_block
NUM_HEADS = 12        # num_heads
DIM_HEAD = 64         # Attention default dim_head
INNER_DIM = NUM_HEADS * DIM_HEAD          # 768
OUT_FEATURES = 2      # sim_task == 'cls'
OUT_PAD = 128         # lane-dense padded classifier output width
SCALE = DIM_HEAD ** (-0.5)
EPS = 1e-5            # nn.LayerNorm default eps

_VMEM = pl.BlockSpec(memory_space=pltpu.MemorySpace.VMEM)

# Flat parameter ordering for the fused kernel.
_BLOCK_KEYS = ("norm1_g", "norm1_b", "qkv_w", "to_out_w", "to_out_b",
               "norm2_g", "norm2_b", "fc1_w", "fc1_b", "fc2_w", "fc2_b")
_TAIL_KEYS = ("norm_g", "norm_b", "cls_fc1_w", "cls_fc1_b",
              "cls_ln_g", "cls_ln_b", "cls_fc2_w_pad", "cls_fc2_b_pad")
_N_IN = 1 + NUM_BLOCKS * len(_BLOCK_KEYS) + len(_TAIL_KEYS)


# ------------------------------ kernel helpers -------------------------------
def _gelu(x):
    # exact (erf-based) GELU, matches torch.nn.GELU() default
    return 0.5 * x * (1.0 + jax.lax.erf(x * 0.7071067811865476))


def _layernorm(x, g, b):
    mean = jnp.mean(x, axis=-1, keepdims=True)
    var = jnp.mean(jnp.square(x - mean), axis=-1, keepdims=True)
    return (x - mean) * jax.lax.rsqrt(var + EPS) * g + b


def _softmax_rows(s):
    s = s - jnp.max(s, axis=-1, keepdims=True)
    p = jnp.exp(s)
    # denominator >= 1 after max-subtraction -> approx reciprocal is safe (EUP slot)
    return p * pl.reciprocal(jnp.sum(p, axis=-1, keepdims=True), approx=True)


# ------------------------------ fused kernel ---------------------------------
def _fused_kernel(*refs, feat_cls):
    in_refs = refs[:_N_IN]
    out_refs = refs[_N_IN:]

    x_ref = in_refs[0]
    blk_refs = in_refs[1:1 + NUM_BLOCKS * len(_BLOCK_KEYS)]
    tail_refs = in_refs[1 + NUM_BLOCKS * len(_BLOCK_KEYS):]

    logits_ref = out_refs[0]
    feat_refs = out_refs[1:]

    out = x_ref[...]                       # (B, EMB_DIM), f32
    batch = out.shape[0]

    for blk in range(NUM_BLOCKS):
        base = blk * len(_BLOCK_KEYS)
        p = dict(zip(_BLOCK_KEYS, blk_refs[base:base + len(_BLOCK_KEYS)]))

        # ---------------- attention sub-block ----------------
        residual = out
        h = _layernorm(out, p["norm1_g"][...], p["norm1_b"][...])
        # fused QKV projection: one MXU push, no bias (to_q/to_kv have bias=False)
        qkv = jnp.dot(h, p["qkv_w"][...], preferred_element_type=jnp.float32)
        q = qkv[:, 0:INNER_DIM]
        k = qkv[:, INNER_DIM:2 * INNER_DIM]
        v = qkv[:, 2 * INNER_DIM:3 * INNER_DIM]

        # 'b (h d) -> (h b) d' via static lane slices + sublane concat.
        # (head-major instead of torch's batch-major row order; softmax over all
        #  (b*h) rows/cols is permutation-equivariant, and we invert the same
        #  permutation below, so the result is identical to the reference.)
        def to_heads(t):
            return jnp.concatenate(
                [t[:, i * DIM_HEAD:(i + 1) * DIM_HEAD] for i in range(NUM_HEADS)],
                axis=0)

        qh, kh, vh = to_heads(q), to_heads(k), to_heads(v)     # (B*h, d)

        sim = jax.lax.dot_general(
            qh, kh, (((1,), (1,)), ((), ())),
            preferred_element_type=jnp.float32) * SCALE         # (B*h, B*h)
        attn = _softmax_rows(sim)
        ao = jnp.dot(attn, vh, preferred_element_type=jnp.float32)   # (B*h, d)

        # '(h b) d -> b (h d)' : sublane slices + lane concat
        ao_cat = jnp.concatenate(
            [ao[i * batch:(i + 1) * batch, :] for i in range(NUM_HEADS)],
            axis=-1)                                            # (B, INNER_DIM)

        proj = jnp.dot(ao_cat, p["to_out_w"][...],
                       preferred_element_type=jnp.float32) + p["to_out_b"][...]
        out = proj + residual                                   # dropout -> identity

        # ---------------- MLP sub-block ----------------
        residual = out
        h2 = _layernorm(out, p["norm2_g"][...], p["norm2_b"][...])
        h2 = _gelu(jnp.dot(h2, p["fc1_w"][...],
                           preferred_element_type=jnp.float32) + p["fc1_b"][...])
        h2 = jnp.dot(h2, p["fc2_w"][...],
                     preferred_element_type=jnp.float32) + p["fc2_b"][...]
        out = h2 + residual

        if feat_cls:
            feat_refs[blk][...] = out.astype(feat_refs[blk].dtype)

    # ---------------- final norm + classifier ----------------
    t = dict(zip(_TAIL_KEYS, tail_refs))
    h = _layernorm(out, t["norm_g"][...], t["norm_b"][...])
    h = jnp.dot(h, t["cls_fc1_w"][...],
                preferred_element_type=jnp.float32) + t["cls_fc1_b"][...]
    h = _gelu(_layernorm(h, t["cls_ln_g"][...], t["cls_ln_b"][...]))
    logits = jnp.dot(h, t["cls_fc2_w_pad"][...],
                     preferred_element_type=jnp.float32) + t["cls_fc2_b_pad"][...]
    logits_ref[...] = logits.astype(logits_ref.dtype)           # (B, 128) lane-dense


# ---------------------------- parameter creation ----------------------------
def init_params(key):
    """Torch-layout-like random parameters (weights stored as (in, out) = W.T)."""
    def w(k, shape):
        return jax.random.normal(k, shape, jnp.float32) * 0.02

    params = {"blocks": []}
    keys = jax.random.split(key, NUM_BLOCKS + 1)
    for i in range(NUM_BLOCKS):
        ks = jax.random.split(keys[i], 5)
        params["blocks"].append({
            "norm1_g": jnp.ones((EMB_DIM,), jnp.float32),
            "norm1_b": jnp.zeros((EMB_DIM,), jnp.float32),
            "to_q_w": w(ks[0], (EMB_DIM, INNER_DIM)),          # bias=False
            "to_kv_w": w(ks[1], (EMB_DIM, 2 * INNER_DIM)),     # bias=False
            "to_out_w": w(ks[2], (INNER_DIM, EMB_DIM)),
            "to_out_b": jnp.zeros((EMB_DIM,), jnp.float32),
            "norm2_g": jnp.ones((EMB_DIM,), jnp.float32),
            "norm2_b": jnp.zeros((EMB_DIM,), jnp.float32),
            "fc1_w": w(ks[3], (EMB_DIM, MLP_DIM)),
            "fc1_b": jnp.zeros((MLP_DIM,), jnp.float32),
            "fc2_w": w(ks[4], (MLP_DIM, EMB_DIM)),
            "fc2_b": jnp.zeros((EMB_DIM,), jnp.float32),
        })
    kc = jax.random.split(keys[-1], 2)
    params["norm_g"] = jnp.ones((EMB_DIM,), jnp.float32)
    params["norm_b"] = jnp.zeros((EMB_DIM,), jnp.float32)
    params["cls_fc1_w"] = w(kc[0], (EMB_DIM, EMB_DIM))
    params["cls_fc1_b"] = jnp.zeros((EMB_DIM,), jnp.float32)
    params["cls_ln_g"] = jnp.ones((EMB_DIM,), jnp.float32)
    params["cls_ln_b"] = jnp.zeros((EMB_DIM,), jnp.float32)
    params["cls_fc2_w"] = w(kc[1], (EMB_DIM, OUT_FEATURES))
    params["cls_fc2_b"] = jnp.zeros((OUT_FEATURES,), jnp.float32)
    return params


def pack_params(params):
    """Host-side prep: fuse q/kv weights, 2-D-ify vectors, pad classifier head."""
    flat = []
    for blk in params["blocks"]:
        qkv_w = jnp.concatenate([blk["to_q_w"], blk["to_kv_w"]], axis=1)  # (32, 2304)
        flat += [
            blk["norm1_g"].reshape(1, -1), blk["norm1_b"].reshape(1, -1),
            qkv_w,
            blk["to_out_w"], blk["to_out_b"].reshape(1, -1),
            blk["norm2_g"].reshape(1, -1), blk["norm2_b"].reshape(1, -1),
            blk["fc1_w"], blk["fc1_b"].reshape(1, -1),
            blk["fc2_w"], blk["fc2_b"].reshape(1, -1),
        ]
    cls_fc2_w_pad = jnp.zeros((EMB_DIM, OUT_PAD), jnp.float32)
    cls_fc2_w_pad = cls_fc2_w_pad.at[:, :OUT_FEATURES].set(params["cls_fc2_w"])
    cls_fc2_b_pad = jnp.zeros((1, OUT_PAD), jnp.float32)
    cls_fc2_b_pad = cls_fc2_b_pad.at[0, :OUT_FEATURES].set(params["cls_fc2_b"])
    flat += [
        params["norm_g"].reshape(1, -1), params["norm_b"].reshape(1, -1),
        params["cls_fc1_w"], params["cls_fc1_b"].reshape(1, -1),
        params["cls_ln_g"].reshape(1, -1), params["cls_ln_b"].reshape(1, -1),
        cls_fc2_w_pad, cls_fc2_b_pad,
    ]
    assert len(flat) == _N_IN - 1
    return flat


# ------------------------------- forward pass -------------------------------
@functools.partial(jax.jit, static_argnames=("feat_cls",))
def similarity_layer_fwd(flat_params, x, feat_cls=False):
    batch = x.shape[0]
    out_shapes = [jax.ShapeDtypeStruct((batch, OUT_PAD), jnp.float32)]
    if feat_cls:
        out_shapes += [jax.ShapeDtypeStruct((batch, EMB_DIM), jnp.float32)
                       for _ in range(NUM_BLOCKS)]
    outs = pl.pallas_call(
        functools.partial(_fused_kernel, feat_cls=feat_cls),
        out_shape=tuple(out_shapes),
        in_specs=[_VMEM] * _N_IN,
        out_specs=tuple([_VMEM] * len(out_shapes)),
    )(x, *flat_params)
    logits = outs[0][:, :OUT_FEATURES]   # drop lane padding on the host
    if feat_cls:
        return list(outs[1:]), logits
    return logits


# ------------------------------------ main -----------------------------------
if __name__ == "__main__":
    key = jax.random.PRNGKey(0)
    pkey, xkey = jax.random.split(key)
    params = init_params(pkey)
    flat_params = pack_params(params)

    B = 8
    x = jax.random.normal(xkey, (B, EMB_DIM), jnp.float32)

    logits = similarity_layer_fwd(flat_params, x, feat_cls=False)
    jax.block_until_ready(logits)
    assert logits.shape == (B, OUT_FEATURES), logits.shape
    assert bool(jnp.all(jnp.isfinite(logits)))
    print("KERNEL_OK")
</pallas_src>

<mosaic_0001>
module attributes {stable_mosaic.version = 11 : i64} {
  func.func @_fused_kernel(%arg0: memref<8x32xf32, #tpu.memory_space<vmem>>, %arg1: memref<1x32xf32, #tpu.memory_space<vmem>>, %arg2: memref<1x32xf32, #tpu.memory_space<vmem>>, %arg3: memref<32x2304xf32, #tpu.memory_space<vmem>>, %arg4: memref<768x32xf32, #tpu.memory_space<vmem>>, %arg5: memref<1x32xf32, #tpu.memory_space<vmem>>, %arg6: memref<1x32xf32, #tpu.memory_space<vmem>>, %arg7: memref<1x32xf32, #tpu.memory_space<vmem>>, %arg8: memref<32x64xf32, #tpu.memory_space<vmem>>, %arg9: memref<1x64xf32, #tpu.memory_space<vmem>>, %arg10: memref<64x32xf32, #tpu.memory_space<vmem>>, %arg11: memref<1x32xf32, #tpu.memory_space<vmem>>, %arg12: memref<1x32xf32, #tpu.memory_space<vmem>>, %arg13: memref<1x32xf32, #tpu.memory_space<vmem>>, %arg14: memref<32x2304xf32, #tpu.memory_space<vmem>>, %arg15: memref<768x32xf32, #tpu.memory_space<vmem>>, %arg16: memref<1x32xf32, #tpu.memory_space<vmem>>, %arg17: memref<1x32xf32, #tpu.memory_space<vmem>>, %arg18: memref<1x32xf32, #tpu.memory_space<vmem>>, %arg19: memref<32x64xf32, #tpu.memory_space<vmem>>, %arg20: memref<1x64xf32, #tpu.memory_space<vmem>>, %arg21: memref<64x32xf32, #tpu.memory_space<vmem>>, %arg22: memref<1x32xf32, #tpu.memory_space<vmem>>, %arg23: memref<1x32xf32, #tpu.memory_space<vmem>>, %arg24: memref<1x32xf32, #tpu.memory_space<vmem>>, %arg25: memref<32x32xf32, #tpu.memory_space<vmem>>, %arg26: memref<1x32xf32, #tpu.memory_space<vmem>>, %arg27: memref<1x32xf32, #tpu.memory_space<vmem>>, %arg28: memref<1x32xf32, #tpu.memory_space<vmem>>, %arg29: memref<32x128xf32, #tpu.memory_space<vmem>>, %arg30: memref<1x128xf32, #tpu.memory_space<vmem>>, %arg31: memref<8x128xf32, #tpu.memory_space<vmem>>) attributes {dimension_semantics = [], scalar_prefetch = 0 : i64, scratch_operands = 0 : i64, tpu.core_type = #tpu.core_type<tc>} {
    %c0 = arith.constant 0 : index
    %c0_0 = arith.constant 0 : index
    %0 = vector.load %arg0[%c0, %c0_0] : memref<8x32xf32, #tpu.memory_space<vmem>>, vector<8x32xf32>
    %c0_1 = arith.constant 0 : index
    %c0_2 = arith.constant 0 : index
    %1 = vector.load %arg1[%c0_1, %c0_2] : memref<1x32xf32, #tpu.memory_space<vmem>>, vector<1x32xf32>
    %c0_3 = arith.constant 0 : index
    %c0_4 = arith.constant 0 : index
    %2 = vector.load %arg2[%c0_3, %c0_4] : memref<1x32xf32, #tpu.memory_space<vmem>>, vector<1x32xf32>
    %cst = arith.constant dense<0.000000e+00> : vector<8xf32>
    %3 = vector.multi_reduction <add>, %0, %cst [1] : vector<8x32xf32> to vector<8xf32>
    %4 = vector.shape_cast %3 : vector<8xf32> to vector<8x1xf32>
    %cst_5 = arith.constant 3.200000e+01 : f32
    %5 = vector.broadcast %cst_5 : f32 to vector<8x1xf32>
    %6 = arith.divf %4, %5 : vector<8x1xf32>
    %7 = vector.broadcast %6 : vector<8x1xf32> to vector<8x32xf32>
    %8 = arith.subf %0, %7 : vector<8x32xf32>
    %9 = arith.mulf %8, %8 : vector<8x32xf32>
    %cst_6 = arith.constant dense<0.000000e+00> : vector<8xf32>
    %10 = vector.multi_reduction <add>, %9, %cst_6 [1] : vector<8x32xf32> to vector<8xf32>
    %11 = vector.shape_cast %10 : vector<8xf32> to vector<8x1xf32>
    %cst_7 = arith.constant 3.200000e+01 : f32
    %12 = vector.broadcast %cst_7 : f32 to vector<8x1xf32>
    %13 = arith.divf %11, %12 : vector<8x1xf32>
    %14 = vector.broadcast %6 : vector<8x1xf32> to vector<8x32xf32>
    %15 = arith.subf %0, %14 : vector<8x32xf32>
    %cst_8 = arith.constant 9.99999974E-6 : f32
    %16 = vector.broadcast %cst_8 : f32 to vector<8x1xf32>
    %17 = arith.addf %13, %16 : vector<8x1xf32>
    %18 = math.rsqrt %17 : vector<8x1xf32>
    %19 = vector.broadcast %18 : vector<8x1xf32> to vector<8x32xf32>
    %20 = arith.mulf %15, %19 : vector<8x32xf32>
    %21 = vector.broadcast %1 : vector<1x32xf32> to vector<8x32xf32>
    %22 = arith.mulf %20, %21 : vector<8x32xf32>
    %23 = vector.broadcast %2 : vector<1x32xf32> to vector<8x32xf32>
    %24 = arith.addf %22, %23 : vector<8x32xf32>
    %c0_9 = arith.constant 0 : index
    %c0_10 = arith.constant 0 : index
    %25 = vector.load %arg3[%c0_9, %c0_10] : memref<32x2304xf32, #tpu.memory_space<vmem>>, vector<32x2304xf32>
    %cst_11 = arith.constant dense<0.000000e+00> : vector<8x2304xf32>
    %26 = tpu.matmul %24, %25, %cst_11 {dimension_numbers = #tpu.dot_dimension_numbers<[1], [0], [0], [1], [0, 0, 1, 1], [], []>} : vector<8x32xf32>, vector<32x2304xf32>, vector<8x2304xf32> -> vector<8x2304xf32>
    %27 = vector.extract_strided_slice %26 {offsets = [0, 0], sizes = [8, 768], strides = [1, 1]} : vector<8x2304xf32> to vector<8x768xf32>
    %28 = vector.extract_strided_slice %26 {offsets = [0, 768], sizes = [8, 768], strides = [1, 1]} : vector<8x2304xf32> to vector<8x768xf32>
    %29 = vector.extract_strided_slice %26 {offsets = [0, 1536], sizes = [8, 768], strides = [1, 1]} : vector<8x2304xf32> to vector<8x768xf32>
    %30 = vector.extract_strided_slice %27 {offsets = [0, 0], sizes = [8, 64], strides = [1, 1]} : vector<8x768xf32> to vector<8x64xf32>
    %31 = vector.extract_strided_slice %27 {offsets = [0, 64], sizes = [8, 64], strides = [1, 1]} : vector<8x768xf32> to vector<8x64xf32>
    %32 = vector.extract_strided_slice %27 {offsets = [0, 128], sizes = [8, 64], strides = [1, 1]} : vector<8x768xf32> to vector<8x64xf32>
    %33 = vector.extract_strided_slice %27 {offsets = [0, 192], sizes = [8, 64], strides = [1, 1]} : vector<8x768xf32> to vector<8x64xf32>
    %34 = vector.extract_strided_slice %27 {offsets = [0, 256], sizes = [8, 64], strides = [1, 1]} : vector<8x768xf32> to vector<8x64xf32>
    %35 = vector.extract_strided_slice %27 {offsets = [0, 320], sizes = [8, 64], strides = [1, 1]} : vector<8x768xf32> to vector<8x64xf32>
    %36 = vector.extract_strided_slice %27 {offsets = [0, 384], sizes = [8, 64], strides = [1, 1]} : vector<8x768xf32> to vector<8x64xf32>
    %37 = vector.extract_strided_slice %27 {offsets = [0, 448], sizes = [8, 64], strides = [1, 1]} : vector<8x768xf32> to vector<8x64xf32>
    %38 = vector.extract_strided_slice %27 {offsets = [0, 512], sizes = [8, 64], strides = [1, 1]} : vector<8x768xf32> to vector<8x64xf32>
    %39 = vector.extract_strided_slice %27 {offsets = [0, 576], sizes = [8, 64], strides = [1, 1]} : vector<8x768xf32> to vector<8x64xf32>
    %40 = vector.extract_strided_slice %27 {offsets = [0, 640], sizes = [8, 64], strides = [1, 1]} : vector<8x768xf32> to vector<8x64xf32>
    %41 = vector.extract_strided_slice %27 {offsets = [0, 704], sizes = [8, 64], strides = [1, 1]} : vector<8x768xf32> to vector<8x64xf32>
    %42 = tpu.concatenate %30, %31, %32, %33, %34, %35, %36, %37, %38, %39, %40, %41 in 0 : vector<8x64xf32>, vector<8x64xf32>, vector<8x64xf32>, vector<8x64xf32>, vector<8x64xf32>, vector<8x64xf32>, vector<8x64xf32>, vector<8x64xf32>, vector<8x64xf32>, vector<8x64xf32>, vector<8x64xf32>, vector<8x64xf32> -> vector<96x64xf32>
    %43 = vector.extract_strided_slice %28 {offsets = [0, 0], sizes = [8, 64], strides = [1, 1]} : vector<8x768xf32> to vector<8x64xf32>
    %44 = vector.extract_strided_slice %28 {offsets = [0, 64], sizes = [8, 64], strides = [1, 1]} : vector<8x768xf32> to vector<8x64xf32>
    %45 = vector.extract_strided_slice %28 {offsets = [0, 128], sizes = [8, 64], strides = [1, 1]} : vector<8x768xf32> to vector<8x64xf32>
    %46 = vector.extract_strided_slice %28 {offsets = [0, 192], sizes = [8, 64], strides = [1, 1]} : vector<8x768xf32> to vector<8x64xf32>
    %47 = vector.extract_strided_slice %28 {offsets = [0, 256], sizes = [8, 64], strides = [1, 1]} : vector<8x768xf32> to vector<8x64xf32>
    %48 = vector.extract_strided_slice %28 {offsets = [0, 320], sizes = [8, 64], strides = [1, 1]} : vector<8x768xf32> to vector<8x64xf32>
    %49 = vector.extract_strided_slice %28 {offsets = [0, 384], sizes = [8, 64], strides = [1, 1]} : vector<8x768xf32> to vector<8x64xf32>
    %50 = vector.extract_strided_slice %28 {offsets = [0, 448], sizes = [8, 64], strides = [1, 1]} : vector<8x768xf32> to vector<8x64xf32>
    %51 = vector.extract_strided_slice %28 {offsets = [0, 512], sizes = [8, 64], strides = [1, 1]} : vector<8x768xf32> to vector<8x64xf32>
    %52 = vector.extract_strided_slice %28 {offsets = [0, 576], sizes = [8, 64], strides = [1, 1]} : vector<8x768xf32> to vector<8x64xf32>
    %53 = vector.extract_strided_slice %28 {offsets = [0, 640], sizes = [8, 64], strides = [1, 1]} : vector<8x768xf32> to vector<8x64xf32>
    %54 = vector.extract_strided_slice %28 {offsets = [0, 704], sizes = [8, 64], strides = [1, 1]} : vector<8x768xf32> to vector<8x64xf32>
    %55 = tpu.concatenate %43, %44, %45, %46, %47, %48, %49, %50, %51, %52, %53, %54 in 0 : vector<8x64xf32>, vector<8x64xf32>, vector<8x64xf32>, vector<8x64xf32>, vector<8x64xf32>, vector<8x64xf32>, vector<8x64xf32>, vector<8x64xf32>, vector<8x64xf32>, vector<8x64xf32>, vector<8x64xf32>, vector<8x64xf32> -> vector<96x64xf32>
    %56 = vector.extract_strided_slice %29 {offsets = [0, 0], sizes = [8, 64], strides = [1, 1]} : vector<8x768xf32> to vector<8x64xf32>
    %57 = vector.extract_strided_slice %29 {offsets = [0, 64], sizes = [8, 64], strides = [1, 1]} : vector<8x768xf32> to vector<8x64xf32>
    %58 = vector.extract_strided_slice %29 {offsets = [0, 128], sizes = [8, 64], strides = [1, 1]} : vector<8x768xf32> to vector<8x64xf32>
    %59 = vector.extract_strided_slice %29 {offsets = [0, 192], sizes = [8, 64], strides = [1, 1]} : vector<8x768xf32> to vector<8x64xf32>
    %60 = vector.extract_strided_slice %29 {offsets = [0, 256], sizes = [8, 64], strides = [1, 1]} : vector<8x768xf32> to vector<8x64xf32>
    %61 = vector.extract_strided_slice %29 {offsets = [0, 320], sizes = [8, 64], strides = [1, 1]} : vector<8x768xf32> to vector<8x64xf32>
    %62 = vector.extract_strided_slice %29 {offsets = [0, 384], sizes = [8, 64], strides = [1, 1]} : vector<8x768xf32> to vector<8x64xf32>
    %63 = vector.extract_strided_slice %29 {offsets = [0, 448], sizes = [8, 64], strides = [1, 1]} : vector<8x768xf32> to vector<8x64xf32>
    %64 = vector.extract_strided_slice %29 {offsets = [0, 512], sizes = [8, 64], strides = [1, 1]} : vector<8x768xf32> to vector<8x64xf32>
    %65 = vector.extract_strided_slice %29 {offsets = [0, 576], sizes = [8, 64], strides = [1, 1]} : vector<8x768xf32> to vector<8x64xf32>
    %66 = vector.extract_strided_slice %29 {offsets = [0, 640], sizes = [8, 64], strides = [1, 1]} : vector<8x768xf32> to vector<8x64xf32>
    %67 = vector.extract_strided_slice %29 {offsets = [0, 704], sizes = [8, 64], strides = [1, 1]} : vector<8x768xf32> to vector<8x64xf32>
    %68 = tpu.concatenate %56, %57, %58, %59, %60, %61, %62, %63, %64, %65, %66, %67 in 0 : vector<8x64xf32>, vector<8x64xf32>, vector<8x64xf32>, vector<8x64xf32>, vector<8x64xf32>, vector<8x64xf32>, vector<8x64xf32>, vector<8x64xf32>, vector<8x64xf32>, vector<8x64xf32>, vector<8x64xf32>, vector<8x64xf32> -> vector<96x64xf32>
    %cst_12 = arith.constant dense<0.000000e+00> : vector<96x96xf32>
    %69 = tpu.matmul %42, %55, %cst_12 {dimension_numbers = #tpu.dot_dimension_numbers<[1], [1], [0], [0], [0, 0, 1, 0], [], []>} : vector<96x64xf32>, vector<96x64xf32>, vector<96x96xf32> -> vector<96x96xf32>
    %cst_13 = arith.constant 1.250000e-01 : f32
    %70 = vector.broadcast %cst_13 : f32 to vector<96x96xf32>
    %71 = arith.mulf %69, %70 : vector<96x96xf32>
    %cst_14 = arith.constant dense<0xFF800000> : vector<96xf32>
    %72 = vector.multi_reduction <maximumf>, %71, %cst_14 [1] : vector<96x96xf32> to vector<96xf32>
    %73 = vector.shape_cast %72 : vector<96xf32> to vector<96x1xf32>
    %74 = vector.broadcast %73 : vector<96x1xf32> to vector<96x96xf32>
    %75 = arith.subf %71, %74 : vector<96x96xf32>
    %76 = math.exp %75 : vector<96x96xf32>
    %cst_15 = arith.constant dense<0.000000e+00> : vector<96xf32>
    %77 = vector.multi_reduction <add>, %76, %cst_15 [1] : vector<96x96xf32> to vector<96xf32>
    %78 = vector.shape_cast %77 : vector<96xf32> to vector<96x1xf32>
    %79 = tpu.reciprocal %78 {approx = true} : vector<96x1xf32> -> vector<96x1xf32>
    %80 = vector.broadcast %79 : vector<96x1xf32> to vector<96x96xf32>
    %81 = arith.mulf %76, %80 : vector<96x96xf32>
    %cst_16 = arith.constant dense<0.000000e+00> : vector<96x64xf32>
    %82 = tpu.matmul %81, %68, %cst_16 {dimension_numbers = #tpu.dot_dimension_numbers<[1], [0], [0], [1], [0, 0, 1, 1], [], []>} : vector<96x96xf32>, vector<96x64xf32>, vector<96x64xf32> -> vector<96x64xf32>
    %83 = vector.extract_strided_slice %82 {offsets = [0, 0], sizes = [8, 64], strides = [1, 1]} : vector<96x64xf32> to vector<8x64xf32>
    %84 = vector.extract_strided_slice %82 {offsets = [8, 0], sizes = [8, 64], strides = [1, 1]} : vector<96x64xf32> to vector<8x64xf32>
    %85 = vector.extract_strided_slice %82 {offsets = [16, 0], sizes = [8, 64], strides = [1, 1]} : vector<96x64xf32> to vector<8x64xf32>
    %86 = vector.extract_strided_slice %82 {offsets = [24, 0], sizes = [8, 64], strides = [1, 1]} : vector<96x64xf32> to vector<8x64xf32>
    %87 = vector.extract_strided_slice %82 {offsets = [32, 0], sizes = [8, 64], strides = [1, 1]} : vector<96x64xf32> to vector<8x64xf32>
    %88 = vector.extract_strided_slice %82 {offsets = [40, 0], sizes = [8, 64], strides = [1, 1]} : vector<96x64xf32> to vector<8x64xf32>
    %89 = vector.extract_strided_slice %82 {offsets = [48, 0], sizes = [8, 64], strides = [1, 1]} : vector<96x64xf32> to vector<8x64xf32>
    %90 = vector.extract_strided_slice %82 {offsets = [56, 0], sizes = [8, 64], strides = [1, 1]} : vector<96x64xf32> to vector<8x64xf32>
    %91 = vector.extract_strided_slice %82 {offsets = [64, 0], sizes = [8, 64], strides = [1, 1]} : vector<96x64xf32> to vector<8x64xf32>
    %92 = vector.extract_strided_slice %82 {offsets = [72, 0], sizes = [8, 64], strides = [1, 1]} : vector<96x64xf32> to vector<8x64xf32>
    %93 = vector.extract_strided_slice %82 {offsets = [80, 0], sizes = [8, 64], strides = [1, 1]} : vector<96x64xf32> to vector<8x64xf32>
    %94 = vector.extract_strided_slice %82 {offsets = [88, 0], sizes = [8, 64], strides = [1, 1]} : vector<96x64xf32> to vector<8x64xf32>
    %95 = tpu.concatenate %83, %84, %85, %86, %87, %88, %89, %90, %91, %92, %93, %94 in 1 : vector<8x64xf32>, vector<8x64xf32>, vector<8x64xf32>, vector<8x64xf32>, vector<8x64xf32>, vector<8x64xf32>, vector<8x64xf32>, vector<8x64xf32>, vector<8x64xf32>, vector<8x64xf32>, vector<8x64xf32>, vector<8x64xf32> -> vector<8x768xf32>
    %c0_17 = arith.constant 0 : index
    %c0_18 = arith.constant 0 : index
    %96 = vector.load %arg4[%c0_17, %c0_18] : memref<768x32xf32, #tpu.memory_space<vmem>>, vector<768x32xf32>
    %cst_19 = arith.constant dense<0.000000e+00> : vector<8x32xf32>
    %97 = tpu.matmul %95, %96, %cst_19 {dimension_numbers = #tpu.dot_dimension_numbers<[1], [0], [0], [1], [0, 0, 1, 1], [], []>} : vector<8x768xf32>, vector<768x32xf32>, vector<8x32xf32> -> vector<8x32xf32>
    %c0_20 = arith.constant 0 : index
    %c0_21 = arith.constant 0 : index
    %98 = vector.load %arg5[%c0_20, %c0_21] : memref<1x32xf32, #tpu.memory_space<vmem>>, vector<1x32xf32>
    %99 = vector.broadcast %98 : vector<1x32xf32> to vector<8x32xf32>
    %100 = arith.addf %97, %99 : vector<8x32xf32>
    %101 = arith.addf %100, %0 : vector<8x32xf32>
    %c0_22 = arith.constant 0 : index
    %c0_23 = arith.constant 0 : index
    %102 = vector.load %arg6[%c0_22, %c0_23] : memref<1x32xf32, #tpu.memory_space<vmem>>, vector<1x32xf32>
    %c0_24 = arith.constant 0 : index
    %c0_25 = arith.constant 0 : index
    %103 = vector.load %arg7[%c0_24, %c0_25] : memref<1x32xf32, #tpu.memory_space<vmem>>, vector<1x32xf32>
    %cst_26 = arith.constant dense<0.000000e+00> : vector<8xf32>
    %104 = vector.multi_reduction <add>, %101, %cst_26 [1] : vector<8x32xf32> to vector<8xf32>
    %105 = vector.shape_cast %104 : vector<8xf32> to vector<8x1xf32>
    %cst_27 = arith.constant 3.200000e+01 : f32
    %106 = vector.broadcast %cst_27 : f32 to vector<8x1xf32>
    %107 = arith.divf %105, %106 : vector<8x1xf32>
    %108 = vector.broadcast %107 : vector<8x1xf32> to vector<8x32xf32>
    %109 = arith.subf %101, %108 : vector<8x32xf32>
    %110 = arith.mulf %109, %109 : vector<8x32xf32>
    %cst_28 = arith.constant dense<0.000000e+00> : vector<8xf32>
    %111 = vector.multi_reduction <add>, %110, %cst_28 [1] : vector<8x32xf32> to vector<8xf32>
    %112 = vector.shape_cast %111 : vector<8xf32> to vector<8x1xf32>
    %cst_29 = arith.constant 3.200000e+01 : f32
    %113 = vector.broadcast %cst_29 : f32 to vector<8x1xf32>
    %114 = arith.divf %112, %113 : vector<8x1xf32>
    %115 = vector.broadcast %107 : vector<8x1xf32> to vector<8x32xf32>
    %116 = arith.subf %101, %115 : vector<8x32xf32>
    %cst_30 = arith.constant 9.99999974E-6 : f32
    %117 = vector.broadcast %cst_30 : f32 to vector<8x1xf32>
    %118 = arith.addf %114, %117 : vector<8x1xf32>
    %119 = math.rsqrt %118 : vector<8x1xf32>
    %120 = vector.broadcast %119 : vector<8x1xf32> to vector<8x32xf32>
    %121 = arith.mulf %116, %120 : vector<8x32xf32>
    %122 = vector.broadcast %102 : vector<1x32xf32> to vector<8x32xf32>
    %123 = arith.mulf %121, %122 : vector<8x32xf32>
    %124 = vector.broadcast %103 : vector<1x32xf32> to vector<8x32xf32>
    %125 = arith.addf %123, %124 : vector<8x32xf32>
    %c0_31 = arith.constant 0 : index
    %c0_32 = arith.constant 0 : index
    %126 = vector.load %arg8[%c0_31, %c0_32] : memref<32x64xf32, #tpu.memory_space<vmem>>, vector<32x64xf32>
    %cst_33 = arith.constant dense<0.000000e+00> : vector<8x64xf32>
    %127 = tpu.matmul %125, %126, %cst_33 {dimension_numbers = #tpu.dot_dimension_numbers<[1], [0], [0], [1], [0, 0, 1, 1], [], []>} : vector<8x32xf32>, vector<32x64xf32>, vector<8x64xf32> -> vector<8x64xf32>
    %c0_34 = arith.constant 0 : index
    %c0_35 = arith.constant 0 : index
    %128 = vector.load %arg9[%c0_34, %c0_35] : memref<1x64xf32, #tpu.memory_space<vmem>>, vector<1x64xf32>
    %129 = vector.broadcast %128 : vector<1x64xf32> to vector<8x64xf32>
    %130 = arith.addf %127, %129 : vector<8x64xf32>
    %cst_36 = arith.constant 5.000000e-01 : f32
    %131 = vector.broadcast %cst_36 : f32 to vector<8x64xf32>
    %132 = arith.mulf %131, %130 : vector<8x64xf32>
    %cst_37 = arith.constant 0.707106769 : f32
    %133 = vector.broadcast %cst_37 : f32 to vector<8x64xf32>
    %134 = arith.mulf %130, %133 : vector<8x64xf32>
    %135 = math.erf %134 : vector<8x64xf32>
    %cst_38 = arith.constant 1.000000e+00 : f32
    %136 = vector.broadcast %cst_38 : f32 to vector<8x64xf32>
    %137 = arith.addf %136, %135 : vector<8x64xf32>
    %138 = arith.mulf %132, %137 : vector<8x64xf32>
    %c0_39 = arith.constant 0 : index
    %c0_40 = arith.constant 0 : index
    %139 = vector.load %arg10[%c0_39, %c0_40] : memref<64x32xf32, #tpu.memory_space<vmem>>, vector<64x32xf32>
    %cst_41 = arith.constant dense<0.000000e+00> : vector<8x32xf32>
    %140 = tpu.matmul %138, %139, %cst_41 {dimension_numbers = #tpu.dot_dimension_numbers<[1], [0], [0], [1], [0, 0, 1, 1], [], []>} : vector<8x64xf32>, vector<64x32xf32>, vector<8x32xf32> -> vector<8x32xf32>
    %c0_42 = arith.constant 0 : index
    %c0_43 = arith.constant 0 : index
    %141 = vector.load %arg11[%c0_42, %c0_43] : memref<1x32xf32, #tpu.memory_space<vmem>>, vector<1x32xf32>
    %142 = vector.broadcast %141 : vector<1x32xf32> to vector<8x32xf32>
    %143 = arith.addf %140, %142 : vector<8x32xf32>
    %144 = arith.addf %143, %101 : vector<8x32xf32>
    %c0_44 = arith.constant 0 : index
    %c0_45 = arith.constant 0 : index
    %145 = vector.load %arg12[%c0_44, %c0_45] : memref<1x32xf32, #tpu.memory_space<vmem>>, vector<1x32xf32>
    %c0_46 = arith.constant 0 : index
    %c0_47 = arith.constant 0 : index
    %146 = vector.load %arg13[%c0_46, %c0_47] : memref<1x32xf32, #tpu.memory_space<vmem>>, vector<1x32xf32>
    %cst_48 = arith.constant dense<0.000000e+00> : vector<8xf32>
    %147 = vector.multi_reduction <add>, %144, %cst_48 [1] : vector<8x32xf32> to vector<8xf32>
    %148 = vector.shape_cast %147 : vector<8xf32> to vector<8x1xf32>
    %cst_49 = arith.constant 3.200000e+01 : f32
    %149 = vector.broadcast %cst_49 : f32 to vector<8x1xf32>
    %150 = arith.divf %148, %149 : vector<8x1xf32>
    %151 = vector.broadcast %150 : vector<8x1xf32> to vector<8x32xf32>
    %152 = arith.subf %144, %151 : vector<8x32xf32>
    %153 = arith.mulf %152, %152 : vector<8x32xf32>
    %cst_50 = arith.constant dense<0.000000e+00> : vector<8xf32>
    %154 = vector.multi_reduction <add>, %153, %cst_50 [1] : vector<8x32xf32> to vector<8xf32>
    %155 = vector.shape_cast %154 : vector<8xf32> to vector<8x1xf32>
    %cst_51 = arith.constant 3.200000e+01 : f32
    %156 = vector.broadcast %cst_51 : f32 to vector<8x1xf32>
    %157 = arith.divf %155, %156 : vector<8x1xf32>
    %158 = vector.broadcast %150 : vector<8x1xf32> to vector<8x32xf32>
    %159 = arith.subf %144, %158 : vector<8x32xf32>
    %cst_52 = arith.constant 9.99999974E-6 : f32
    %160 = vector.broadcast %cst_52 : f32 to vector<8x1xf32>
    %161 = arith.addf %157, %160 : vector<8x1xf32>
    %162 = math.rsqrt %161 : vector<8x1xf32>
    %163 = vector.broadcast %162 : vector<8x1xf32> to vector<8x32xf32>
    %164 = arith.mulf %159, %163 : vector<8x32xf32>
    %165 = vector.broadcast %145 : vector<1x32xf32> to vector<8x32xf32>
    %166 = arith.mulf %164, %165 : vector<8x32xf32>
    %167 = vector.broadcast %146 : vector<1x32xf32> to vector<8x32xf32>
    %168 = arith.addf %166, %167 : vector<8x32xf32>
    %c0_53 = arith.constant 0 : index
    %c0_54 = arith.constant 0 : index
    %169 = vector.load %arg14[%c0_53, %c0_54] : memref<32x2304xf32, #tpu.memory_space<vmem>>, vector<32x2304xf32>
    %cst_55 = arith.constant dense<0.000000e+00> : vector<8x2304xf32>
    %170 = tpu.matmul %168, %169, %cst_55 {dimension_numbers = #tpu.dot_dimension_numbers<[1], [0], [0], [1], [0, 0, 1, 1], [], []>} : vector<8x32xf32>, vector<32x2304xf32>, vector<8x2304xf32> -> vector<8x2304xf32>
    %171 = vector.extract_strided_slice %170 {offsets = [0, 0], sizes = [8, 768], strides = [1, 1]} : vector<8x2304xf32> to vector<8x768xf32>
    %172 = vector.extract_strided_slice %170 {offsets = [0, 768], sizes = [8, 768], strides = [1, 1]} : vector<8x2304xf32> to vector<8x768xf32>
    %173 = vector.extract_strided_slice %170 {offsets = [0, 1536], sizes = [8, 768], strides = [1, 1]} : vector<8x2304xf32> to vector<8x768xf32>
    %174 = vector.extract_strided_slice %171 {offsets = [0, 0], sizes = [8, 64], strides = [1, 1]} : vector<8x768xf32> to vector<8x64xf32>
    %175 = vector.extract_strided_slice %171 {offsets = [0, 64], sizes = [8, 64], strides = [1, 1]} : vector<8x768xf32> to vector<8x64xf32>
    %176 = vector.extract_strided_slice %171 {offsets = [0, 128], sizes = [8, 64], strides = [1, 1]} : vector<8x768xf32> to vector<8x64xf32>
    %177 = vector.extract_strided_slice %171 {offsets = [0, 192], sizes = [8, 64], strides = [1, 1]} : vector<8x768xf32> to vector<8x64xf32>
    %178 = vector.extract_strided_slice %171 {offsets = [0, 256], sizes = [8, 64], strides = [1, 1]} : vector<8x768xf32> to vector<8x64xf32>
    %179 = vector.extract_strided_slice %171 {offsets = [0, 320], sizes = [8, 64], strides = [1, 1]} : vector<8x768xf32> to vector<8x64xf32>
    %180 = vector.extract_strided_slice %171 {offsets = [0, 384], sizes = [8, 64], strides = [1, 1]} : vector<8x768xf32> to vector<8x64xf32>
    %181 = vector.extract_strided_slice %171 {offsets = [0, 448], sizes = [8, 64], strides = [1, 1]} : vector<8x768xf32> to vector<8x64xf32>
    %182 = vector.extract_strided_slice %171 {offsets = [0, 512], sizes = [8, 64], strides = [1, 1]} : vector<8x768xf32> to vector<8x64xf32>
    %183 = vector.extract_strided_slice %171 {offsets = [0, 576], sizes = [8, 64], strides = [1, 1]} : vector<8x768xf32> to vector<8x64xf32>
    %184 = vector.extract_strided_slice %171 {offsets = [0, 640], sizes = [8, 64], strides = [1, 1]} : vector<8x768xf32> to vector<8x64xf32>
    %185 = vector.extract_strided_slice %171 {offsets = [0, 704], sizes = [8, 64], strides = [1, 1]} : vector<8x768xf32> to vector<8x64xf32>
    %186 = tpu.concatenate %174, %175, %176, %177, %178, %179, %180, %181, %182, %183, %184, %185 in 0 : vector<8x64xf32>, vector<8x64xf32>, vector<8x64xf32>, vector<8x64xf32>, vector<8x64xf32>, vector<8x64xf32>, vector<8x64xf32>, vector<8x64xf32>, vector<8x64xf32>, vector<8x64xf32>, vector<8x64xf32>, vector<8x64xf32> -> vector<96x64xf32>
    %187 = vector.extract_strided_slice %172 {offsets = [0, 0], sizes = [8, 64], strides = [1, 1]} : vector<8x768xf32> to vector<8x64xf32>
    %188 = vector.extract_strided_slice %172 {offsets = [0, 64], sizes = [8, 64], strides = [1, 1]} : vector<8x768xf32> to vector<8x64xf32>
    %189 = vector.extract_strided_slice %172 {offsets = [0, 128], sizes = [8, 64], strides = [1, 1]} : vector<8x768xf32> to vector<8x64xf32>
    %190 = vector.extract_strided_slice %172 {offsets = [0, 192], sizes = [8, 64], strides = [1, 1]} : vector<8x768xf32> to vector<8x64xf32>
    %191 = vector.extract_strided_slice %172 {offsets = [0, 256], sizes = [8, 64], strides = [1, 1]} : vector<8x768xf32> to vector<8x64xf32>
    %192 = vector.extract_strided_slice %172 {offsets = [0, 320], sizes = [8, 64], strides = [1, 1]} : vector<8x768xf32> to vector<8x64xf32>
    %193 = vector.extract_strided_slice %172 {offsets = [0, 384], sizes = [8, 64], strides = [1, 1]} : vector<8x768xf32> to vector<8x64xf32>
    %194 = vector.extract_strided_slice %172 {offsets = [0, 448], sizes = [8, 64], strides = [1, 1]} : vector<8x768xf32> to vector<8x64xf32>
    %195 = vector.extract_strided_slice %172 {offsets = [0, 512], sizes = [8, 64], strides = [1, 1]} : vector<8x768xf32> to vector<8x64xf32>
    %196 = vector.extract_strided_slice %172 {offsets = [0, 576], sizes = [8, 64], strides = [1, 1]} : vector<8x768xf32> to vector<8x64xf32>
    %197 = vector.extract_strided_slice %172 {offsets = [0, 640], sizes = [8, 64], strides = [1, 1]} : vector<8x768xf32> to vector<8x64xf32>
    %198 = vector.extract_strided_slice %172 {offsets = [0, 704], sizes = [8, 64], strides = [1, 1]} : vector<8x768xf32> to vector<8x64xf32>
    %199 = tpu.concatenate %187, %188, %189, %190, %191, %192, %193, %194, %195, %196, %197, %198 in 0 : vector<8x64xf32>, vector<8x64xf32>, vector<8x64xf32>, vector<8x64xf32>, vector<8x64xf32>, vector<8x64xf32>, vector<8x64xf32>, vector<8x64xf32>, vector<8x64xf32>, vector<8x64xf32>, vector<8x64xf32>, vector<8x64xf32> -> vector<96x64xf32>
    %200 = vector.extract_strided_slice %173 {offsets = [0, 0], sizes = [8, 64], strides = [1, 1]} : vector<8x768xf32> to vector<8x64xf32>
    %201 = vector.extract_strided_slice %173 {offsets = [0, 64], sizes = [8, 64], strides = [1, 1]} : vector<8x768xf32> to vector<8x64xf32>
    %202 = vector.extract_strided_slice %173 {offsets = [0, 128], sizes = [8, 64], strides = [1, 1]} : vector<8x768xf32> to vector<8x64xf32>
    %203 = vector.extract_strided_slice %173 {offsets = [0, 192], sizes = [8, 64], strides = [1, 1]} : vector<8x768xf32> to vector<8x64xf32>
    %204 = vector.extract_strided_slice %173 {offsets = [0, 256], sizes = [8, 64], strides = [1, 1]} : vector<8x768xf32> to vector<8x64xf32>
    %205 = vector.extract_strided_slice %173 {offsets = [0, 320], sizes = [8, 64], strides = [1, 1]} : vector<8x768xf32> to vector<8x64xf32>
    %206 = vector.extract_strided_slice %173 {offsets = [0, 384], sizes = [8, 64], strides = [1, 1]} : vector<8x768xf32> to vector<8x64xf32>
    %207 = vector.extract_strided_slice %173 {offsets = [0, 448], sizes = [8, 64], strides = [1, 1]} : vector<8x768xf32> to vector<8x64xf32>
    %208 = vector.extract_strided_slice %173 {offsets = [0, 512], sizes = [8, 64], strides = [1, 1]} : vector<8x768xf32> to vector<8x64xf32>
    %209 = vector.extract_strided_slice %173 {offsets = [0, 576], sizes = [8, 64], strides = [1, 1]} : vector<8x768xf32> to vector<8x64xf32>
    %210 = vector.extract_strided_slice %173 {offsets = [0, 640], sizes = [8, 64], strides = [1, 1]} : vector<8x768xf32> to vector<8x64xf32>
    %211 = vector.extract_strided_slice %173 {offsets = [0, 704], sizes = [8, 64], strides = [1, 1]} : vector<8x768xf32> to vector<8x64xf32>
    %212 = tpu.concatenate %200, %201, %202, %203, %204, %205, %206, %207, %208, %209, %210, %211 in 0 : vector<8x64xf32>, vector<8x64xf32>, vector<8x64xf32>, vector<8x64xf32>, vector<8x64xf32>, vector<8x64xf32>, vector<8x64xf32>, vector<8x64xf32>, vector<8x64xf32>, vector<8x64xf32>, vector<8x64xf32>, vector<8x64xf32> -> vector<96x64xf32>
    %cst_56 = arith.constant dense<0.000000e+00> : vector<96x96xf32>
    %213 = tpu.matmul %186, %199, %cst_56 {dimension_numbers = #tpu.dot_dimension_numbers<[1], [1], [0], [0], [0, 0, 1, 0], [], []>} : vector<96x64xf32>, vector<96x64xf32>, vector<96x96xf32> -> vector<96x96xf32>
    %cst_57 = arith.constant 1.250000e-01 : f32
    %214 = vector.broadcast %cst_57 : f32 to vector<96x96xf32>
    %215 = arith.mulf %213, %214 : vector<96x96xf32>
    %cst_58 = arith.constant dense<0xFF800000> : vector<96xf32>
    %216 = vector.multi_reduction <maximumf>, %215, %cst_58 [1] : vector<96x96xf32> to vector<96xf32>
    %217 = vector.shape_cast %216 : vector<96xf32> to vector<96x1xf32>
    %218 = vector.broadcast %217 : vector<96x1xf32> to vector<96x96xf32>
    %219 = arith.subf %215, %218 : vector<96x96xf32>
    %220 = math.exp %219 : vector<96x96xf32>
    %cst_59 = arith.constant dense<0.000000e+00> : vector<96xf32>
    %221 = vector.multi_reduction <add>, %220, %cst_59 [1] : vector<96x96xf32> to vector<96xf32>
    %222 = vector.shape_cast %221 : vector<96xf32> to vector<96x1xf32>
    %223 = tpu.reciprocal %222 {approx = true} : vector<96x1xf32> -> vector<96x1xf32>
    %224 = vector.broadcast %223 : vector<96x1xf32> to vector<96x96xf32>
    %225 = arith.mulf %220, %224 : vector<96x96xf32>
    %cst_60 = arith.constant dense<0.000000e+00> : vector<96x64xf32>
    %226 = tpu.matmul %225, %212, %cst_60 {dimension_numbers = #tpu.dot_dimension_numbers<[1], [0], [0], [1], [0, 0, 1, 1], [], []>} : vector<96x96xf32>, vector<96x64xf32>, vector<96x64xf32> -> vector<96x64xf32>
    %227 = vector.extract_strided_slice %226 {offsets = [0, 0], sizes = [8, 64], strides = [1, 1]} : vector<96x64xf32> to vector<8x64xf32>
    %228 = vector.extract_strided_slice %226 {offsets = [8, 0], sizes = [8, 64], strides = [1, 1]} : vector<96x64xf32> to vector<8x64xf32>
    %229 = vector.extract_strided_slice %226 {offsets = [16, 0], sizes = [8, 64], strides = [1, 1]} : vector<96x64xf32> to vector<8x64xf32>
    %230 = vector.extract_strided_slice %226 {offsets = [24, 0], sizes = [8, 64], strides = [1, 1]} : vector<96x64xf32> to vector<8x64xf32>
    %231 = vector.extract_strided_slice %226 {offsets = [32, 0], sizes = [8, 64], strides = [1, 1]} : vector<96x64xf32> to vector<8x64xf32>
    %232 = vector.extract_strided_slice %226 {offsets = [40, 0], sizes = [8, 64], strides = [1, 1]} : vector<96x64xf32> to vector<8x64xf32>
    %233 = vector.extract_strided_slice %226 {offsets = [48, 0], sizes = [8, 64], strides = [1, 1]} : vector<96x64xf32> to vector<8x64xf32>
    %234 = vector.extract_strided_slice %226 {offsets = [56, 0], sizes = [8, 64], strides = [1, 1]} : vector<96x64xf32> to vector<8x64xf32>
    %235 = vector.extract_strided_slice %226 {offsets = [64, 0], sizes = [8, 64], strides = [1, 1]} : vector<96x64xf32> to vector<8x64xf32>
    %236 = vector.extract_strided_slice %226 {offsets = [72, 0], sizes = [8, 64], strides = [1, 1]} : vector<96x64xf32> to vector<8x64xf32>
    %237 = vector.extract_strided_slice %226 {offsets = [80, 0], sizes = [8, 64], strides = [1, 1]} : vector<96x64xf32> to vector<8x64xf32>
    %238 = vector.extract_strided_slice %226 {offsets = [88, 0], sizes = [8, 64], strides = [1, 1]} : vector<96x64xf32> to vector<8x64xf32>
    %239 = tpu.concatenate %227, %228, %229, %230, %231, %232, %233, %234, %235, %236, %237, %238 in 1 : vector<8x64xf32>, vector<8x64xf32>, vector<8x64xf32>, vector<8x64xf32>, vector<8x64xf32>, vector<8x64xf32>, vector<8x64xf32>, vector<8x64xf32>, vector<8x64xf32>, vector<8x64xf32>, vector<8x64xf32>, vector<8x64xf32> -> vector<8x768xf32>
    %c0_61 = arith.constant 0 : index
    %c0_62 = arith.constant 0 : index
    %240 = vector.load %arg15[%c0_61, %c0_62] : memref<768x32xf32, #tpu.memory_space<vmem>>, vector<768x32xf32>
    %cst_63 = arith.constant dense<0.000000e+00> : vector<8x32xf32>
    %241 = tpu.matmul %239, %240, %cst_63 {dimension_numbers = #tpu.dot_dimension_numbers<[1], [0], [0], [1], [0, 0, 1, 1], [], []>} : vector<8x768xf32>, vector<768x32xf32>, vector<8x32xf32> -> vector<8x32xf32>
    %c0_64 = arith.constant 0 : index
    %c0_65 = arith.constant 0 : index
    %242 = vector.load %arg16[%c0_64, %c0_65] : memref<1x32xf32, #tpu.memory_space<vmem>>, vector<1x32xf32>
    %243 = vector.broadcast %242 : vector<1x32xf32> to vector<8x32xf32>
    %244 = arith.addf %241, %243 : vector<8x32xf32>
    %245 = arith.addf %244, %144 : vector<8x32xf32>
    %c0_66 = arith.constant 0 : index
    %c0_67 = arith.constant 0 : index
    %246 = vector.load %arg17[%c0_66, %c0_67] : memref<1x32xf32, #tpu.memory_space<vmem>>, vector<1x32xf32>
    %c0_68 = arith.constant 0 : index
    %c0_69 = arith.constant 0 : index
    %247 = vector.load %arg18[%c0_68, %c0_69] : memref<1x32xf32, #tpu.memory_space<vmem>>, vector<1x32xf32>
    %cst_70 = arith.constant dense<0.000000e+00> : vector<8xf32>
    %248 = vector.multi_reduction <add>, %245, %cst_70 [1] : vector<8x32xf32> to vector<8xf32>
    %249 = vector.shape_cast %248 : vector<8xf32> to vector<8x1xf32>
    %cst_71 = arith.constant 3.200000e+01 : f32
    %250 = vector.broadcast %cst_71 : f32 to vector<8x1xf32>
    %251 = arith.divf %249, %250 : vector<8x1xf32>
    %252 = vector.broadcast %251 : vector<8x1xf32> to vector<8x32xf32>
    %253 = arith.subf %245, %252 : vector<8x32xf32>
    %254 = arith.mulf %253, %253 : vector<8x32xf32>
    %cst_72 = arith.constant dense<0.000000e+00> : vector<8xf32>
    %255 = vector.multi_reduction <add>, %254, %cst_72 [1] : vector<8x32xf32> to vector<8xf32>
    %256 = vector.shape_cast %255 : vector<8xf32> to vector<8x1xf32>
    %cst_73 = arith.constant 3.200000e+01 : f32
    %257 = vector.broadcast %cst_73 : f32 to vector<8x1xf32>
    %258 = arith.divf %256, %257 : vector<8x1xf32>
    %259 = vector.broadcast %251 : vector<8x1xf32> to vector<8x32xf32>
    %260 = arith.subf %245, %259 : vector<8x32xf32>
    %cst_74 = arith.constant 9.99999974E-6 : f32
    %261 = vector.broadcast %cst_74 : f32 to vector<8x1xf32>
    %262 = arith.addf %258, %261 : vector<8x1xf32>
    %263 = math.rsqrt %262 : vector<8x1xf32>
    %264 = vector.broadcast %263 : vector<8x1xf32> to vector<8x32xf32>
    %265 = arith.mulf %260, %264 : vector<8x32xf32>
    %266 = vector.broadcast %246 : vector<1x32xf32> to vector<8x32xf32>
    %267 = arith.mulf %265, %266 : vector<8x32xf32>
    %268 = vector.broadcast %247 : vector<1x32xf32> to vector<8x32xf32>
    %269 = arith.addf %267, %268 : vector<8x32xf32>
    %c0_75 = arith.constant 0 : index
    %c0_76 = arith.constant 0 : index
    %270 = vector.load %arg19[%c0_75, %c0_76] : memref<32x64xf32, #tpu.memory_space<vmem>>, vector<32x64xf32>
    %cst_77 = arith.constant dense<0.000000e+00> : vector<8x64xf32>
    %271 = tpu.matmul %269, %270, %cst_77 {dimension_numbers = #tpu.dot_dimension_numbers<[1], [0], [0], [1], [0, 0, 1, 1], [], []>} : vector<8x32xf32>, vector<32x64xf32>, vector<8x64xf32> -> vector<8x64xf32>
    %c0_78 = arith.constant 0 : index
    %c0_79 = arith.constant 0 : index
    %272 = vector.load %arg20[%c0_78, %c0_79] : memref<1x64xf32, #tpu.memory_space<vmem>>, vector<1x64xf32>
    %273 = vector.broadcast %272 : vector<1x64xf32> to vector<8x64xf32>
    %274 = arith.addf %271, %273 : vector<8x64xf32>
    %cst_80 = arith.constant 5.000000e-01 : f32
    %275 = vector.broadcast %cst_80 : f32 to vector<8x64xf32>
    %276 = arith.mulf %275, %274 : vector<8x64xf32>
    %cst_81 = arith.constant 0.707106769 : f32
    %277 = vector.broadcast %cst_81 : f32 to vector<8x64xf32>
    %278 = arith.mulf %274, %277 : vector<8x64xf32>
    %279 = math.erf %278 : vector<8x64xf32>
    %cst_82 = arith.constant 1.000000e+00 : f32
    %280 = vector.broadcast %cst_82 : f32 to vector<8x64xf32>
    %281 = arith.addf %280, %279 : vector<8x64xf32>
    %282 = arith.mulf %276, %281 : vector<8x64xf32>
    %c0_83 = arith.constant 0 : index
    %c0_84 = arith.constant 0 : index
    %283 = vector.load %arg21[%c0_83, %c0_84] : memref<64x32xf32, #tpu.memory_space<vmem>>, vector<64x32xf32>
    %cst_85 = arith.constant dense<0.000000e+00> : vector<8x32xf32>
    %284 = tpu.matmul %282, %283, %cst_85 {dimension_numbers = #tpu.dot_dimension_numbers<[1], [0], [0], [1], [0, 0, 1, 1], [], []>} : vector<8x64xf32>, vector<64x32xf32>, vector<8x32xf32> -> vector<8x32xf32>
    %c0_86 = arith.constant 0 : index
    %c0_87 = arith.constant 0 : index
    %285 = vector.load %arg22[%c0_86, %c0_87] : memref<1x32xf32, #tpu.memory_space<vmem>>, vector<1x32xf32>
    %286 = vector.broadcast %285 : vector<1x32xf32> to vector<8x32xf32>
    %287 = arith.addf %284, %286 : vector<8x32xf32>
    %288 = arith.addf %287, %245 : vector<8x32xf32>
    %c0_88 = arith.constant 0 : index
    %c0_89 = arith.constant 0 : index
    %289 = vector.load %arg23[%c0_88, %c0_89] : memref<1x32xf32, #tpu.memory_space<vmem>>, vector<1x32xf32>
    %c0_90 = arith.constant 0 : index
    %c0_91 = arith.constant 0 : index
    %290 = vector.load %arg24[%c0_90, %c0_91] : memref<1x32xf32, #tpu.memory_space<vmem>>, vector<1x32xf32>
    %cst_92 = arith.constant dense<0.000000e+00> : vector<8xf32>
    %291 = vector.multi_reduction <add>, %288, %cst_92 [1] : vector<8x32xf32> to vector<8xf32>
    %292 = vector.shape_cast %291 : vector<8xf32> to vector<8x1xf32>
    %cst_93 = arith.constant 3.200000e+01 : f32
    %293 = vector.broadcast %cst_93 : f32 to vector<8x1xf32>
    %294 = arith.divf %292, %293 : vector<8x1xf32>
    %295 = vector.broadcast %294 : vector<8x1xf32> to vector<8x32xf32>
    %296 = arith.subf %288, %295 : vector<8x32xf32>
    %297 = arith.mulf %296, %296 : vector<8x32xf32>
    %cst_94 = arith.constant dense<0.000000e+00> : vector<8xf32>
    %298 = vector.multi_reduction <add>, %297, %cst_94 [1] : vector<8x32xf32> to vector<8xf32>
    %299 = vector.shape_cast %298 : vector<8xf32> to vector<8x1xf32>
    %cst_95 = arith.constant 3.200000e+01 : f32
    %300 = vector.broadcast %cst_95 : f32 to vector<8x1xf32>
    %301 = arith.divf %299, %300 : vector<8x1xf32>
    %302 = vector.broadcast %294 : vector<8x1xf32> to vector<8x32xf32>
    %303 = arith.subf %288, %302 : vector<8x32xf32>
    %cst_96 = arith.constant 9.99999974E-6 : f32
    %304 = vector.broadcast %cst_96 : f32 to vector<8x1xf32>
    %305 = arith.addf %301, %304 : vector<8x1xf32>
    %306 = math.rsqrt %305 : vector<8x1xf32>
    %307 = vector.broadcast %306 : vector<8x1xf32> to vector<8x32xf32>
    %308 = arith.mulf %303, %307 : vector<8x32xf32>
    %309 = vector.broadcast %289 : vector<1x32xf32> to vector<8x32xf32>
    %310 = arith.mulf %308, %309 : vector<8x32xf32>
    %311 = vector.broadcast %290 : vector<1x32xf32> to vector<8x32xf32>
    %312 = arith.addf %310, %311 : vector<8x32xf32>
    %c0_97 = arith.constant 0 : index
    %c0_98 = arith.constant 0 : index
    %313 = vector.load %arg25[%c0_97, %c0_98] : memref<32x32xf32, #tpu.memory_space<vmem>>, vector<32x32xf32>
    %cst_99 = arith.constant dense<0.000000e+00> : vector<8x32xf32>
    %314 = tpu.matmul %312, %313, %cst_99 {dimension_numbers = #tpu.dot_dimension_numbers<[1], [0], [0], [1], [0, 0, 1, 1], [], []>} : vector<8x32xf32>, vector<32x32xf32>, vector<8x32xf32> -> vector<8x32xf32>
    %c0_100 = arith.constant 0 : index
    %c0_101 = arith.constant 0 : index
    %315 = vector.load %arg26[%c0_100, %c0_101] : memref<1x32xf32, #tpu.memory_space<vmem>>, vector<1x32xf32>
    %316 = vector.broadcast %315 : vector<1x32xf32> to vector<8x32xf32>
    %317 = arith.addf %314, %316 : vector<8x32xf32>
    %c0_102 = arith.constant 0 : index
    %c0_103 = arith.constant 0 : index
    %318 = vector.load %arg27[%c0_102, %c0_103] : memref<1x32xf32, #tpu.memory_space<vmem>>, vector<1x32xf32>
    %c0_104 = arith.constant 0 : index
    %c0_105 = arith.constant 0 : index
    %319 = vector.load %arg28[%c0_104, %c0_105] : memref<1x32xf32, #tpu.memory_space<vmem>>, vector<1x32xf32>
    %cst_106 = arith.constant dense<0.000000e+00> : vector<8xf32>
    %320 = vector.multi_reduction <add>, %317, %cst_106 [1] : vector<8x32xf32> to vector<8xf32>
    %321 = vector.shape_cast %320 : vector<8xf32> to vector<8x1xf32>
    %cst_107 = arith.constant 3.200000e+01 : f32
    %322 = vector.broadcast %cst_107 : f32 to vector<8x1xf32>
    %323 = arith.divf %321, %322 : vector<8x1xf32>
    %324 = vector.broadcast %323 : vector<8x1xf32> to vector<8x32xf32>
    %325 = arith.subf %317, %324 : vector<8x32xf32>
    %326 = arith.mulf %325, %325 : vector<8x32xf32>
    %cst_108 = arith.constant dense<0.000000e+00> : vector<8xf32>
    %327 = vector.multi_reduction <add>, %326, %cst_108 [1] : vector<8x32xf32> to vector<8xf32>
    %328 = vector.shape_cast %327 : vector<8xf32> to vector<8x1xf32>
    %cst_109 = arith.constant 3.200000e+01 : f32
    %329 = vector.broadcast %cst_109 : f32 to vector<8x1xf32>
    %330 = arith.divf %328, %329 : vector<8x1xf32>
    %331 = vector.broadcast %323 : vector<8x1xf32> to vector<8x32xf32>
    %332 = arith.subf %317, %331 : vector<8x32xf32>
    %cst_110 = arith.constant 9.99999974E-6 : f32
    %333 = vector.broadcast %cst_110 : f32 to vector<8x1xf32>
    %334 = arith.addf %330, %333 : vector<8x1xf32>
    %335 = math.rsqrt %334 : vector<8x1xf32>
    %336 = vector.broadcast %335 : vector<8x1xf32> to vector<8x32xf32>
    %337 = arith.mulf %332, %336 : vector<8x32xf32>
    %338 = vector.broadcast %318 : vector<1x32xf32> to vector<8x32xf32>
    %339 = arith.mulf %337, %338 : vector<8x32xf32>
    %340 = vector.broadcast %319 : vector<1x32xf32> to vector<8x32xf32>
    %341 = arith.addf %339, %340 : vector<8x32xf32>
    %cst_111 = arith.constant 5.000000e-01 : f32
    %342 = vector.broadcast %cst_111 : f32 to vector<8x32xf32>
    %343 = arith.mulf %342, %341 : vector<8x32xf32>
    %cst_112 = arith.constant 0.707106769 : f32
    %344 = vector.broadcast %cst_112 : f32 to vector<8x32xf32>
    %345 = arith.mulf %341, %344 : vector<8x32xf32>
    %346 = math.erf %345 : vector<8x32xf32>
    %cst_113 = arith.constant 1.000000e+00 : f32
    %347 = vector.broadcast %cst_113 : f32 to vector<8x32xf32>
    %348 = arith.addf %347, %346 : vector<8x32xf32>
    %349 = arith.mulf %343, %348 : vector<8x32xf32>
    %c0_114 = arith.constant 0 : index
    %c0_115 = arith.constant 0 : index
    %350 = vector.load %arg29[%c0_114, %c0_115] : memref<32x128xf32, #tpu.memory_space<vmem>>, vector<32x128xf32>
    %cst_116 = arith.constant dense<0.000000e+00> : vector<8x128xf32>
    %351 = tpu.matmul %349, %350, %cst_116 {dimension_numbers = #tpu.dot_dimension_numbers<[1], [0], [0], [1], [0, 0, 1, 1], [], []>} : vector<8x32xf32>, vector<32x128xf32>, vector<8x128xf32> -> vector<8x128xf32>
    %c0_117 = arith.constant 0 : index
    %c0_118 = arith.constant 0 : index
    %352 = vector.load %arg30[%c0_117, %c0_118] : memref<1x128xf32, #tpu.memory_space<vmem>>, vector<1x128xf32>
    %353 = vector.broadcast %352 : vector<1x128xf32> to vector<8x128xf32>
    %354 = arith.addf %351, %353 : vector<8x128xf32>
    %c0_119 = arith.constant 0 : index
    %c0_120 = arith.constant 0 : index
    %355 = vector.load %arg31[%c0_119, %c0_120] : memref<8x128xf32, #tpu.memory_space<vmem>>, vector<8x128xf32>
    tpu.vector_store %arg31[%c0_119, %c0_120], %354 {strides = array<i32>} : memref<8x128xf32, #tpu.memory_space<vmem>>, vector<8x128xf32>,
    return
  }
}

</mosaic_0001>

<llo_original>
// kernel: similarity_layer_fwd.1
$region0: #{similarity_layer_fwd.1}
  #allocation0 [shape = 'u32[]', space=smem, size = 0x4, offset = 0x4, fixed_abs, tag = 'smem constant byte address 0x4 - core index']
  #allocation1 [shape = 'u32[144,128]{1,0:T(1,128)}', space=vmem, size = 0x12000, scoped, tag = 'internal scratch']
  %s0 = inlined_call_operand.smem [shape: u32[32], index: -1, kind: input, shape index: {}]
  %s1 = sld [smem:[%s0]]
  %s2 = scalar_lea.smem %s0, 1
  %s3 = sld [smem:[%s2]]
  %s4 = scalar_lea.smem %s0, 2
  %s5 = sld [smem:[%s4]]
  %s6 = scalar_lea.smem %s0, 3
  %s7 = sld [smem:[%s6]]
  %s8 = scalar_lea.smem %s0, 4
  %s9 = sld [smem:[%s8]]
  %s10 = scalar_lea.smem %s0, 5
  %s11 = sld [smem:[%s10]]
  %s12 = scalar_lea.smem %s0, 6
  %s13 = sld [smem:[%s12]]
  %s14 = scalar_lea.smem %s0, 7
  %s15 = sld [smem:[%s14]]
  %s16 = scalar_lea.smem %s0, 8
  %s17 = sld [smem:[%s16]]
  %s18 = scalar_lea.smem %s0, 9
  %s19 = sld [smem:[%s18]]
  %s20 = scalar_lea.smem %s0, 10
  %s21 = sld [smem:[%s20]]
  %s22 = scalar_lea.smem %s0, 11
  %s23 = sld [smem:[%s22]]
  %s24 = scalar_lea.smem %s0, 12
  %s25 = sld [smem:[%s24]]
  %s26 = scalar_lea.smem %s0, 13
  %s27 = sld [smem:[%s26]]
  %s28 = scalar_lea.smem %s0, 14
  %s29 = sld [smem:[%s28]]
  %s30 = scalar_lea.smem %s0, 15
  %s31 = sld [smem:[%s30]]
  %s32 = scalar_lea.smem %s0, 16
  %s33 = sld [smem:[%s32]]
  %s34 = scalar_lea.smem %s0, 17
  %s35 = sld [smem:[%s34]]
  %s36 = scalar_lea.smem %s0, 18
  %s37 = sld [smem:[%s36]]
  %s38 = scalar_lea.smem %s0, 19
  %s39 = sld [smem:[%s38]]
  %s40 = scalar_lea.smem %s0, 20
  %s41 = sld [smem:[%s40]]
  %s42 = scalar_lea.smem %s0, 21
  %s43 = sld [smem:[%s42]]
  %s44 = scalar_lea.smem %s0, 22
  %s45 = sld [smem:[%s44]]
  %s46 = scalar_lea.smem %s0, 23
  %s47 = sld [smem:[%s46]]
  %s48 = scalar_lea.smem %s0, 24
  %s49 = sld [smem:[%s48]]
  %s50 = scalar_lea.smem %s0, 25
  %s51 = sld [smem:[%s50]]
  %s52 = scalar_lea.smem %s0, 26
  %s53 = sld [smem:[%s52]]
  %s54 = scalar_lea.smem %s0, 27
  %s55 = sld [smem:[%s54]]
  %s56 = scalar_lea.smem %s0, 28
  %s57 = sld [smem:[%s56]]
  %s58 = scalar_lea.smem %s0, 29
  %s59 = sld [smem:[%s58]]
  %s60 = scalar_lea.smem %s0, 30
  %s61 = sld [smem:[%s60]]
  %s62 = scalar_lea.smem %s0, 31
  %s63 = sld [smem:[%s62]]
  %s64 = sld [smem:[#allocation0]]
  $region134: #{similarity_layer_fwd.1} parent=0
    _
  %s66 = ssub.s32 1, %s64
  %s67 = scalar_select 0, %s66, %s64
  // Predicated region
  $region2: #{similarity_layer_fwd.1} parent=0 // pred_check
    _
  $region3: #{similarity_layer_fwd.1} parent=0 // pred_check_branch
    %69 = sbr.rel (0) target = $region5
  $region4: #{similarity_layer_fwd.1} parent=0 // pred_region
    _
  $region5: #{similarity_layer_fwd.1} parent=0 // pred_fallthru
    _
  // Predicated region
  $region6: #{similarity_layer_fwd.1} parent=0 // pred_check
    _
  $region7: #{similarity_layer_fwd.1} parent=0 // pred_check_branch
    %71 = sbr.rel (0) target = $region9
  $region8: #{similarity_layer_fwd.1} parent=0 // pred_region
    _
  $region9: #{similarity_layer_fwd.1} parent=0 // pred_fallthru
    _
  // Predicated region
  $region10: #{similarity_layer_fwd.1} parent=0 // pred_check
    _
  $region11: #{similarity_layer_fwd.1} parent=0 // pred_check_branch
    %73 = sbr.rel (0) target = $region13
  $region12: #{similarity_layer_fwd.1} parent=0 // pred_region
    _
  $region13: #{similarity_layer_fwd.1} parent=0 // pred_fallthru
    _
  // Predicated region
  $region14: #{similarity_layer_fwd.1} parent=0 // pred_check
    _
  $region15: #{similarity_layer_fwd.1} parent=0 // pred_check_branch
    %75 = sbr.rel (0) target = $region17
  $region16: #{similarity_layer_fwd.1} parent=0 // pred_region
    _
  $region17: #{similarity_layer_fwd.1} parent=0 // pred_fallthru
    _
  // Predicated region
  $region18: #{similarity_layer_fwd.1} parent=0 // pred_check
    _
  $region19: #{similarity_layer_fwd.1} parent=0 // pred_check_branch
    %77 = sbr.rel (0) target = $region21
  $region20: #{similarity_layer_fwd.1} parent=0 // pred_region
    _
  $region21: #{similarity_layer_fwd.1} parent=0 // pred_fallthru
    _
  // Predicated region
  $region22: #{similarity_layer_fwd.1} parent=0 // pred_check
    _
  $region23: #{similarity_layer_fwd.1} parent=0 // pred_check_branch
    %79 = sbr.rel (0) target = $region25
  $region24: #{similarity_layer_fwd.1} parent=0 // pred_region
    _
  $region25: #{similarity_layer_fwd.1} parent=0 // pred_fallthru
    _
  // Predicated region
  $region26: #{similarity_layer_fwd.1} parent=0 // pred_check
    _
  $region27: #{similarity_layer_fwd.1} parent=0 // pred_check_branch
    %81 = sbr.rel (0) target = $region29
  $region28: #{similarity_layer_fwd.1} parent=0 // pred_region
    _
  $region29: #{similarity_layer_fwd.1} parent=0 // pred_fallthru
    _
  // Predicated region
  $region30: #{similarity_layer_fwd.1} parent=0 // pred_check
    _
  $region31: #{similarity_layer_fwd.1} parent=0 // pred_check_branch
    %83 = sbr.rel (0) target = $region33
  $region32: #{similarity_layer_fwd.1} parent=0 // pred_region
    _
  $region33: #{similarity_layer_fwd.1} parent=0 // pred_fallthru
    _
  // Predicated region
  $region34: #{similarity_layer_fwd.1} parent=0 // pred_check
    _
  $region35: #{similarity_layer_fwd.1} parent=0 // pred_check_branch
    %85 = sbr.rel (0) target = $region37
  $region36: #{similarity_layer_fwd.1} parent=0 // pred_region
    _
  $region37: #{similarity_layer_fwd.1} parent=0 // pred_fallthru
    _
  // Predicated region
  $region38: #{similarity_layer_fwd.1} parent=0 // pred_check
    _
  $region39: #{similarity_layer_fwd.1} parent=0 // pred_check_branch
    %87 = sbr.rel (0) target = $region41
  $region40: #{similarity_layer_fwd.1} parent=0 // pred_region
    _
  $region41: #{similarity_layer_fwd.1} parent=0 // pred_fallthru
    _
  // Predicated region
  $region42: #{similarity_layer_fwd.1} parent=0 // pred_check
    _
  $region43: #{similarity_layer_fwd.1} parent=0 // pred_check_branch
    %89 = sbr.rel (0) target = $region45
  $region44: #{similarity_layer_fwd.1} parent=0 // pred_region
    _
  $region45: #{similarity_layer_fwd.1} parent=0 // pred_fallthru
    _
  // Predicated region
  $region46: #{similarity_layer_fwd.1} parent=0 // pred_check
    _
  $region47: #{similarity_layer_fwd.1} parent=0 // pred_check_branch
    %91 = sbr.rel (0) target = $region49
  $region48: #{similarity_layer_fwd.1} parent=0 // pred_region
    _
  $region49: #{similarity_layer_fwd.1} parent=0 // pred_fallthru
    _
  // Predicated region
  $region50: #{similarity_layer_fwd.1} parent=0 // pred_check
    _
  $region51: #{similarity_layer_fwd.1} parent=0 // pred_check_branch
    %93 = sbr.rel (0) target = $region53
  $region52: #{similarity_layer_fwd.1} parent=0 // pred_region
    _
  $region53: #{similarity_layer_fwd.1} parent=0 // pred_fallthru
    _
  // Predicated region
  $region54: #{similarity_layer_fwd.1} parent=0 // pred_check
    _
  $region55: #{similarity_layer_fwd.1} parent=0 // pred_check_branch
    %95 = sbr.rel (0) target = $region57
  $region56: #{similarity_layer_fwd.1} parent=0 // pred_region
    _
  $region57: #{similarity_layer_fwd.1} parent=0 // pred_fallthru
    _
  // Predicated region
  $region58: #{similarity_layer_fwd.1} parent=0 // pred_check
    _
  $region59: #{similarity_layer_fwd.1} parent=0 // pred_check_branch
    %97 = sbr.rel (0) target = $region61
  $region60: #{similarity_layer_fwd.1} parent=0 // pred_region
    _
  $region61: #{similarity_layer_fwd.1} parent=0 // pred_fallthru
    _
  // Predicated region
  $region62: #{similarity_layer_fwd.1} parent=0 // pred_check
    _
  $region63: #{similarity_layer_fwd.1} parent=0 // pred_check_branch
    %99 = sbr.rel (0) target = $region65
  $region64: #{similarity_layer_fwd.1} parent=0 // pred_region
    _
  $region65: #{similarity_layer_fwd.1} parent=0 // pred_fallthru
    _
  // Predicated region
  $region66: #{similarity_layer_fwd.1} parent=0 // pred_check
    _
  $region67: #{similarity_layer_fwd.1} parent=0 // pred_check_branch
    %101 = sbr.rel (0) target = $region69
  $region68: #{similarity_layer_fwd.1} parent=0 // pred_region
    _
  $region69: #{similarity_layer_fwd.1} parent=0 // pred_fallthru
    _
  // Predicated region
  $region70: #{similarity_layer_fwd.1} parent=0 // pred_check
    _
  $region71: #{similarity_layer_fwd.1} parent=0 // pred_check_branch
    %103 = sbr.rel (0) target = $region73
  $region72: #{similarity_layer_fwd.1} parent=0 // pred_region
    _
  $region73: #{similarity_layer_fwd.1} parent=0 // pred_fallthru
    _
  // Predicated region
  $region74: #{similarity_layer_fwd.1} parent=0 // pred_check
    _
  $region75: #{similarity_layer_fwd.1} parent=0 // pred_check_branch
    %105 = sbr.rel (0) target = $region77
  $region76: #{similarity_layer_fwd.1} parent=0 // pred_region
    _
  $region77: #{similarity_layer_fwd.1} parent=0 // pred_fallthru
    _
  // Predicated region
  $region78: #{similarity_layer_fwd.1} parent=0 // pred_check
    _
  $region79: #{similarity_layer_fwd.1} parent=0 // pred_check_branch
    %107 = sbr.rel (0) target = $region81
  $region80: #{similarity_layer_fwd.1} parent=0 // pred_region
    _
  $region81: #{similarity_layer_fwd.1} parent=0 // pred_fallthru
    _
  // Predicated region
  $region82: #{similarity_layer_fwd.1} parent=0 // pred_check
    _
  $region83: #{similarity_layer_fwd.1} parent=0 // pred_check_branch
    %109 = sbr.rel (0) target = $region85
  $region84: #{similarity_layer_fwd.1} parent=0 // pred_region
    _
  $region85: #{similarity_layer_fwd.1} parent=0 // pred_fallthru
    _
  // Predicated region
  $region86: #{similarity_layer_fwd.1} parent=0 // pred_check
    _
  $region87: #{similarity_layer_fwd.1} parent=0 // pred_check_branch
    %111 = sbr.rel (0) target = $region89
  $region88: #{similarity_layer_fwd.1} parent=0 // pred_region
    _
  $region89: #{similarity_layer_fwd.1} parent=0 // pred_fallthru
    _
  // Predicated region
  $region90: #{similarity_layer_fwd.1} parent=0 // pred_check
    _
  $region91: #{similarity_layer_fwd.1} parent=0 // pred_check_branch
    %113 = sbr.rel (0) target = $region93
  $region92: #{similarity_layer_fwd.1} parent=0 // pred_region
    _
  $region93: #{similarity_layer_fwd.1} parent=0 // pred_fallthru
    _
  // Predicated region
  $region94: #{similarity_layer_fwd.1} parent=0 // pred_check
    _
  $region95: #{similarity_layer_fwd.1} parent=0 // pred_check_branch
    %115 = sbr.rel (0) target = $region97
  $region96: #{similarity_layer_fwd.1} parent=0 // pred_region
    _
  $region97: #{similarity_layer_fwd.1} parent=0 // pred_fallthru
    _
  // Predicated region
  $region98: #{similarity_layer_fwd.1} parent=0 // pred_check
    _
  $region99: #{similarity_layer_fwd.1} parent=0 // pred_check_branch
    %117 = sbr.rel (0) target = $region101
  $region100: #{similarity_layer_fwd.1} parent=0 // pred_region
    _
  $region101: #{similarity_layer_fwd.1} parent=0 // pred_fallthru
    _
  // Predicated region
  $region102: #{similarity_layer_fwd.1} parent=0 // pred_check
    _
  $region103: #{similarity_layer_fwd.1} parent=0 // pred_check_branch
    %119 = sbr.rel (0) target = $region105
  $region104: #{similarity_layer_fwd.1} parent=0 // pred_region
    _
  $region105: #{similarity_layer_fwd.1} parent=0 // pred_fallthru
    _
  // Predicated region
  $region106: #{similarity_layer_fwd.1} parent=0 // pred_check
    _
  $region107: #{similarity_layer_fwd.1} parent=0 // pred_check_branch
    %121 = sbr.rel (0) target = $region109
  $region108: #{similarity_layer_fwd.1} parent=0 // pred_region
    _
  $region109: #{similarity_layer_fwd.1} parent=0 // pred_fallthru
    _
  // Predicated region
  $region110: #{similarity_layer_fwd.1} parent=0 // pred_check
    _
  $region111: #{similarity_layer_fwd.1} parent=0 // pred_check_branch
    %123 = sbr.rel (0) target = $region113
  $region112: #{similarity_layer_fwd.1} parent=0 // pred_region
    _
  $region113: #{similarity_layer_fwd.1} parent=0 // pred_fallthru
    _
  // Predicated region
  $region114: #{similarity_layer_fwd.1} parent=0 // pred_check
    _
  $region115: #{similarity_layer_fwd.1} parent=0 // pred_check_branch
    %125 = sbr.rel (0) target = $region117
  $region116: #{similarity_layer_fwd.1} parent=0 // pred_region
    _
  $region117: #{similarity_layer_fwd.1} parent=0 // pred_fallthru
    _
  // Predicated region
  $region118: #{similarity_layer_fwd.1} parent=0 // pred_check
    _
  $region119: #{similarity_layer_fwd.1} parent=0 // pred_check_branch
    %127 = sbr.rel (0) target = $region121
  $region120: #{similarity_layer_fwd.1} parent=0 // pred_region
    _
  $region121: #{similarity_layer_fwd.1} parent=0 // pred_fallthru
    _
  // Predicated region
  $region122: #{similarity_layer_fwd.1} parent=0 // pred_check
    _
  $region123: #{similarity_layer_fwd.1} parent=0 // pred_check_branch
    %129 = sbr.rel (0) target = $region125
  $region124: #{similarity_layer_fwd.1} parent=0 // pred_region
    _
  $region125: #{similarity_layer_fwd.1} parent=0 // pred_fallthru
    _
  %v130 = vld [vmem:[%s1] sm:$0xff]
  %v131 = vld [vmem:[%s3] sm:$0x1]
  %v132 = vld [vmem:[%s5] sm:$0x1]
  %vm133 = vcmask 261120
  %v134 = vsel %vm133, %v130, 0.0
  %135 = vadd.xlane.f32.xlu0 %v134
  %v136 = vpop.xlane.xlu0 %135
  %v137 = vrcp.pop 32.0
  %v138 = vmul.f32 %v136, %v137
  %v139 = vsub.f32 %v130, %v138
  %v140 = vmul.f32 %v139, %v139
  %v141 = vsel %vm133, %v140, 0.0
  %142 = vadd.xlane.f32.xlu0 %v141
  %v143 = vpop.xlane.xlu0 %142
  %v144 = vmul.f32 %v143, %v137
  %v145 = vadd.f32 %v144, 1e-05
  %v146 = vrsqrt.pop %v145
  %v147 = vmul.f32 %v139, %v146
  %v149 = vlaneseq
  %v150 = vshrl.u32 %v149, 7
  %v151 = vsub.s32 0, %v150
  %v152 = vrot.slane %v131, %v151
  %v154 = vmul.f32 %v147, %v152
  %v156 = vlaneseq
  %v157 = vshrl.u32 %v156, 7
  %v158 = vsub.s32 0, %v157
  %v159 = vrot.slane %v132, %v158
  %v161 = vadd.f32 %v154, %v159
  %v162 = vld [vmem:[%s7] sm:$0xff]
  %v163 = vld [vmem:[%s7 + $0x8] sm:$0xff]
  %v164 = vld [vmem:[%s7 + $0x10] sm:$0xff]
  %v165 = vld [vmem:[%s7 + $0x18] sm:$0xff]
  %v166 = vld [vmem:[%s7 + $0x20] sm:$0xff]
  %v167 = vld [vmem:[%s7 + $0x28] sm:$0xff]
  %v168 = vld [vmem:[%s7 + $0x30] sm:$0xff]
  %v169 = vld [vmem:[%s7 + $0x38] sm:$0xff]
  %v170 = vld [vmem:[%s7 + $0x40] sm:$0xff]
  %v171 = vld [vmem:[%s7 + $0x48] sm:$0xff]
  %v172 = vld [vmem:[%s7 + $0x50] sm:$0xff]
  %v173 = vld [vmem:[%s7 + $0x58] sm:$0xff]
  %v174 = vld [vmem:[%s7 + $0x60] sm:$0xff]
  %v175 = vld [vmem:[%s7 + $0x68] sm:$0xff]
  %v176 = vld [vmem:[%s7 + $0x70] sm:$0xff]
  %v177 = vld [vmem:[%s7 + $0x78] sm:$0xff]
  %v178 = vld [vmem:[%s7 + $0x80] sm:$0xff]
  %v179 = vld [vmem:[%s7 + $0x88] sm:$0xff]
  %v180 = vld [vmem:[%s7 + $0x90] sm:$0xff]
  %v181 = vld [vmem:[%s7 + $0x98] sm:$0xff]
  %v182 = vld [vmem:[%s7 + $0xa0] sm:$0xff]
  %v183 = vld [vmem:[%s7 + $0xa8] sm:$0xff]
  %v184 = vld [vmem:[%s7 + $0xb0] sm:$0xff]
  %v185 = vld [vmem:[%s7 + $0xb8] sm:$0xff]
  %v186 = vld [vmem:[%s7 + $0xc0] sm:$0xff]
  %v187 = vld [vmem:[%s7 + $0xc8] sm:$0xff]
  %v188 = vld [vmem:[%s7 + $0xd0] sm:$0xff]
  %v189 = vld [vmem:[%s7 + $0xd8] sm:$0xff]
  %v190 = vld [vmem:[%s7 + $0xe0] sm:$0xff]
  %v191 = vld [vmem:[%s7 + $0xe8] sm:$0xff]
  %v192 = vld [vmem:[%s7 + $0xf0] sm:$0xff]
  %v193 = vld [vmem:[%s7 + $0xf8] sm:$0xff]
  %v194 = vld [vmem:[%s7 + $0x100] sm:$0xff]
  %v195 = vld [vmem:[%s7 + $0x108] sm:$0xff]
  %v196 = vld [vmem:[%s7 + $0x110] sm:$0xff]
  %v197 = vld [vmem:[%s7 + $0x118] sm:$0xff]
  %v198 = vld [vmem:[%s7 + $0x120] sm:$0xff]
  %v199 = vld [vmem:[%s7 + $0x128] sm:$0xff]
  %v200 = vld [vmem:[%s7 + $0x130] sm:$0xff]
  %v201 = vld [vmem:[%s7 + $0x138] sm:$0xff]
  %v202 = vld [vmem:[%s7 + $0x140] sm:$0xff]
  %v203 = vld [vmem:[%s7 + $0x148] sm:$0xff]
  %v204 = vld [vmem:[%s7 + $0x150] sm:$0xff]
  %v205 = vld [vmem:[%s7 + $0x158] sm:$0xff]
  %v206 = vld [vmem:[%s7 + $0x160] sm:$0xff]
  %v207 = vld [vmem:[%s7 + $0x168] sm:$0xff]
  %v208 = vld [vmem:[%s7 + $0x170] sm:$0xff]
  %v209 = vld [vmem:[%s7 + $0x178] sm:$0xff]
  %v210 = vld [vmem:[%s7 + $0x180] sm:$0xff]
  %v211 = vld [vmem:[%s7 + $0x188] sm:$0xff]
  %v212 = vld [vmem:[%s7 + $0x190] sm:$0xff]
  %v213 = vld [vmem:[%s7 + $0x198] sm:$0xff]
  %v214 = vld [vmem:[%s7 + $0x1a0] sm:$0xff]
  %v215 = vld [vmem:[%s7 + $0x1a8] sm:$0xff]
  %v216 = vld [vmem:[%s7 + $0x1b0] sm:$0xff]
  %v217 = vld [vmem:[%s7 + $0x1b8] sm:$0xff]
  %v218 = vld [vmem:[%s7 + $0x1c0] sm:$0xff]
  %v219 = vld [vmem:[%s7 + $0x1c8] sm:$0xff]
  %v220 = vld [vmem:[%s7 + $0x1d0] sm:$0xff]
  %v221 = vld [vmem:[%s7 + $0x1d8] sm:$0xff]
  %v222 = vld [vmem:[%s7 + $0x1e0] sm:$0xff]
  %v223 = vld [vmem:[%s7 + $0x1e8] sm:$0xff]
  %v224 = vld [vmem:[%s7 + $0x1f0] sm:$0xff]
  %v225 = vld [vmem:[%s7 + $0x1f8] sm:$0xff]
  %v226 = vld [vmem:[%s7 + $0x200] sm:$0xff]
  %v227 = vld [vmem:[%s7 + $0x208] sm:$0xff]
  %v228 = vld [vmem:[%s7 + $0x210] sm:$0xff]
  %v229 = vld [vmem:[%s7 + $0x218] sm:$0xff]
  %v230 = vld [vmem:[%s7 + $0x220] sm:$0xff]
  %v231 = vld [vmem:[%s7 + $0x228] sm:$0xff]
  %v232 = vld [vmem:[%s7 + $0x230] sm:$0xff]
  %v233 = vld [vmem:[%s7 + $0x238] sm:$0xff]
  %v235 = vsel %vm133, %v161, 0
  %237 = vmatprep.subr.mxu0 0.0
  %238 = vmatpush1.msra.mxu0 0.0
  %239 = vmatprep.subr.mxu0 0.0
  %240 = vmatpush1.msra.mxu0 0.0
  %241 = vmatprep.subr.mxu0 0.0
  %242 = vmatpush1.msra.mxu0 0.0
  %243 = vmatprep.subr.mxu0 0.0
  %244 = vmatpush1.msra.mxu0 0.0
  %245 = vmatprep.subr.mxu0 0.0
  %246 = vmatpush1.msra.mxu0 0.0
  %247 = vmatprep.subr.mxu0 0.0
  %248 = vmatpush1.msra.mxu0 0.0
  %249 = vmatprep.subr.mxu0 0.0
  %250 = vmatpush1.msra.mxu0 0.0
  %251 = vmatprep.subr.mxu0 0.0
  %252 = vmatpush1.msra.mxu0 0.0
  %253 = vmatprep.subr.mxu0 0.0
  %254 = vmatpush1.msra.mxu0 0.0
  %255 = vmatprep.subr.mxu0 0.0
  %256 = vmatpush1.msra.mxu0 0.0
  %257 = vmatprep.subr.mxu0 0.0
  %258 = vmatpush1.msra.mxu0 0.0
  %259 = vmatprep.subr.mxu0 0.0
  %260 = vmatpush1.msra.mxu0 0.0
  %261 = vmatprep.subr.mxu0 %v217
  %262 = vmatpush1.msra.mxu0 %v216
  %263 = vmatprep.subr.mxu0 %v199
  %264 = vmatpush1.msra.mxu0 %v198
  %265 = vmatprep.subr.mxu0 %v181
  %266 = vmatpush1.msra.mxu0 %v180
  %267 = vmatprep.subr.mxu0 %v163
  %268 = vmatpush1.msra.mxu0 %v162
  %269 = vmatprep.subr.mxu0 0.0
  %270 = vmatpush2.msra.mxu0 0.0
  %271 = vmatprep.subr.mxu0 0.0
  %272 = vmatpush2.msra.mxu0 0.0
  %273 = vmatprep.subr.mxu0 0.0
  %274 = vmatpush2.msra.mxu0 0.0
  %275 = vmatprep.subr.mxu0 0.0
  %276 = vmatpush2.msra.mxu0 0.0
  %277 = vmatprep.subr.mxu0 0.0
  %278 = vmatpush2.msra.mxu0 0.0
  %279 = vmatprep.subr.mxu0 0.0
  %280 = vmatpush2.msra.mxu0 0.0
  %281 = vmatprep.subr.mxu0 0.0
  %282 = vmatpush2.msra.mxu0 0.0
  %283 = vmatprep.subr.mxu0 0.0
  %284 = vmatpush2.msra.mxu0 0.0
  %285 = vmatprep.subr.mxu0 0.0
  %286 = vmatpush2.msra.mxu0 0.0
  %287 = vmatprep.subr.mxu0 0.0
  %288 = vmatpush2.msra.mxu0 0.0
  %289 = vmatprep.subr.mxu0 0.0
  %290 = vmatpush2.msra.mxu0 0.0
  %291 = vmatprep.subr.mxu0 0.0
  %292 = vmatpush2.msra.mxu0 0.0
  %293 = vmatprep.subr.mxu0 0.0
  %294 = vmatpush2.msra.mxu0 0.0
  %295 = vmatprep.subr.mxu0 0.0
  %296 = vmatpush2.msra.mxu0 0.0
  %297 = vmatprep.subr.mxu0 0.0
  %298 = vmatpush2.msra.mxu0 0.0
  %299 = vmatprep.subr.mxu0 0.0
  %300 = vmatpush2.msra.mxu0 0.0
  %301 = vmatprep.mubr.f32.mxu0 0.0
  %302 = vmatmul.mubr.f32.gmra.mxu0 %v235
  %v303 = vpop.f32.mrf.mxu0
  %v304 = vadd.f32 0.0, %v303
  %v305 = vpop.f32.mrf.mxu0
  %v306 = vadd.f32 0.0, %v305
  %307 = vdwg.mxu0
  %308 = vmatprep.subr.mxu0 0.0
  %309 = vmatpush1.msra.mxu0 0.0
  %310 = vmatprep.subr.mxu0 0.0
  %311 = vmatpush1.msra.mxu0 0.0
  %312 = vmatprep.subr.mxu0 0.0
  %313 = vmatpush1.msra.mxu0 0.0
  %314 = vmatprep.subr.mxu0 0.0
  %315 = vmatpush1.msra.mxu0 0.0
  %316 = vmatprep.subr.mxu0 0.0
  %317 = vmatpush1.msra.mxu0 0.0
  %318 = vmatprep.subr.mxu0 0.0
  %319 = vmatpush1.msra.mxu0 0.0
  %320 = vmatprep.subr.mxu0 0.0
  %321 = vmatpush1.msra.mxu0 0.0
  %322 = vmatprep.subr.mxu0 0.0
  %323 = vmatpush1.msra.mxu0 0.0
  %324 = vmatprep.subr.mxu0 0.0
  %325 = vmatpush1.msra.mxu0 0.0
  %326 = vmatprep.subr.mxu0 0.0
  %327 = vmatpush1.msra.mxu0 0.0
  %328 = vmatprep.subr.mxu0 0.0
  %329 = vmatpush1.msra.mxu0 0.0
  %330 = vmatprep.subr.mxu0 0.0
  %331 = vmatpush1.msra.mxu0 0.0
  %332 = vmatprep.subr.mxu0 %v219
  %333 = vmatpush1.msra.mxu0 %v218
  %334 = vmatprep.subr.mxu0 %v201
  %335 = vmatpush1.msra.mxu0 %v200
  %336 = vmatprep.subr.mxu0 %v183
  %337 = vmatpush1.msra.mxu0 %v182
  %338 = vmatprep.subr.mxu0 %v165
  %339 = vmatpush1.msra.mxu0 %v164
  %340 = vmatprep.subr.mxu0 0.0
  %341 = vmatpush2.msra.mxu0 0.0
  %342 = vmatprep.subr.mxu0 0.0
  %343 = vmatpush2.msra.mxu0 0.0
  %344 = vmatprep.subr.mxu0 0.0
  %345 = vmatpush2.msra.mxu0 0.0
  %346 = vmatprep.subr.mxu0 0.0
  %347 = vmatpush2.msra.mxu0 0.0
  %348 = vmatprep.subr.mxu0 0.0
  %349 = vmatpush2.msra.mxu0 0.0
  %350 = vmatprep.subr.mxu0 0.0
  %351 = vmatpush2.msra.mxu0 0.0
  %352 = vmatprep.subr.mxu0 0.0
  %353 = vmatpush2.msra.mxu0 0.0
  %354 = vmatprep.subr.mxu0 0.0
  %355 = vmatpush2.msra.mxu0 0.0
  %356 = vmatprep.subr.mxu0 0.0
  %357 = vmatpush2.msra.mxu0 0.0
  %358 = vmatprep.subr.mxu0 0.0
  %359 = vmatpush2.msra.mxu0 0.0
  %360 = vmatprep.subr.mxu0 0.0
  %361 = vmatpush2.msra.mxu0 0.0
  %362 = vmatprep.subr.mxu0 0.0
  %363 = vmatpush2.msra.mxu0 0.0
  %364 = vmatprep.subr.mxu0 0.0
  %365 = vmatpush2.msra.mxu0 0.0
  %366 = vmatprep.subr.mxu0 0.0
  %367 = vmatpush2.msra.mxu0 0.0
  %368 = vmatprep.subr.mxu0 0.0
  %369 = vmatpush2.msra.mxu0 0.0
  %370 = vmatprep.subr.mxu0 0.0
  %371 = vmatpush2.msra.mxu0 0.0
  %372 = vmatprep.mubr.f32.mxu0 0.0
  %373 = vmatmul.mubr.f32.gmra.mxu0 %v235
  %v374 = vpop.f32.mrf.mxu0
  %v375 = vadd.f32 0.0, %v374
  %v376 = vpop.f32.mrf.mxu0
  %v377 = vadd.f32 0.0, %v376
  %378 = vdwg.mxu0
  %379 = vmatprep.subr.mxu0 0.0
  %380 = vmatpush1.msra.mxu0 0.0
  %381 = vmatprep.subr.mxu0 0.0
  %382 = vmatpush1.msra.mxu0 0.0
  %383 = vmatprep.subr.mxu0 0.0
  %384 = vmatpush1.msra.mxu0 0.0
  %385 = vmatprep.subr.mxu0 0.0
  %386 = vmatpush1.msra.mxu0 0.0
  %387 = vmatprep.subr.mxu0 0.0
  %388 = vmatpush1.msra.mxu0 0.0
  %389 = vmatprep.subr.mxu0 0.0
  %390 = vmatpush1.msra.mxu0 0.0
  %391 = vmatprep.subr.mxu0 0.0
  %392 = vmatpush1.msra.mxu0 0.0
  %393 = vmatprep.subr.mxu0 0.0
  %394 = vmatpush1.msra.mxu0 0.0
  %395 = vmatprep.subr.mxu0 0.0
  %396 = vmatpush1.msra.mxu0 0.0
  %397 = vmatprep.subr.mxu0 0.0
  %398 = vmatpush1.msra.mxu0 0.0
  %399 = vmatprep.subr.mxu0 0.0
  %400 = vmatpush1.msra.mxu0 0.0
  %401 = vmatprep.subr.mxu0 0.0
  %402 = vmatpush1.msra.mxu0 0.0
  %403 = vmatprep.subr.mxu0 %v221
  %404 = vmatpush1.msra.mxu0 %v220
  %405 = vmatprep.subr.mxu0 %v203
  %406 = vmatpush1.msra.mxu0 %v202
  %407 = vmatprep.subr.mxu0 %v185
  %408 = vmatpush1.msra.mxu0 %v184
  %409 = vmatprep.subr.mxu0 %v167
  %410 = vmatpush1.msra.mxu0 %v166
  %411 = vmatprep.subr.mxu0 0.0
  %412 = vmatpush2.msra.mxu0 0.0
  %413 = vmatprep.subr.mxu0 0.0
  %414 = vmatpush2.msra.mxu0 0.0
  %415 = vmatprep.subr.mxu0 0.0
  %416 = vmatpush2.msra.mxu0 0.0
  %417 = vmatprep.subr.mxu0 0.0
  %418 = vmatpush2.msra.mxu0 0.0
  %419 = vmatprep.subr.mxu0 0.0
  %420 = vmatpush2.msra.mxu0 0.0
  %421 = vmatprep.subr.mxu0 0.0
  %422 = vmatpush2.msra.mxu0 0.0
  %423 = vmatprep.subr.mxu0 0.0
  %424 = vmatpush2.msra.mxu0 0.0
  %425 = vmatprep.subr.mxu0 0.0
  %426 = vmatpush2.msra.mxu0 0.0
  %427 = vmatprep.subr.mxu0 0.0
  %428 = vmatpush2.msra.mxu0 0.0
  %429 = vmatprep.subr.mxu0 0.0
  %430 = vmatpush2.msra.mxu0 0.0
  %431 = vmatprep.subr.mxu0 0.0
  %432 = vmatpush2.msra.mxu0 0.0
  %433 = vmatprep.subr.mxu0 0.0
  %434 = vmatpush2.msra.mxu0 0.0
  %435 = vmatprep.subr.mxu0 0.0
  %436 = vmatpush2.msra.mxu0 0.0
  %437 = vmatprep.subr.mxu0 0.0
  %438 = vmatpush2.msra.mxu0 0.0
  %439 = vmatprep.subr.mxu0 0.0
  %440 = vmatpush2.msra.mxu0 0.0
  %441 = vmatprep.subr.mxu0 0.0
  %442 = vmatpush2.msra.mxu0 0.0
  %443 = vmatprep.mubr.f32.mxu0 0.0
  %444 = vmatmul.mubr.f32.gmra.mxu0 %v235
  %v445 = vpop.f32.mrf.mxu0
  %v446 = vadd.f32 0.0, %v445
  %v447 = vpop.f32.mrf.mxu0
  %v448 = vadd.f32 0.0, %v447
  %449 = vdwg.mxu0
  %450 = vmatprep.subr.mxu0 0.0
  %451 = vmatpush1.msra.mxu0 0.0
  %452 = vmatprep.subr.mxu0 0.0
  %453 = vmatpush1.msra.mxu0 0.0
  %454 = vmatprep.subr.mxu0 0.0
  %455 = vmatpush1.msra.mxu0 0.0
  %456 = vmatprep.subr.mxu0 0.0
  %457 = vmatpush1.msra.mxu0 0.0
  %458 = vmatprep.subr.mxu0 0.0
  %459 = vmatpush1.msra.mxu0 0.0
  %460 = vmatprep.subr.mxu0 0.0
  %461 = vmatpush1.msra.mxu0 0.0
  %462 = vmatprep.subr.mxu0 0.0
  %463 = vmatpush1.msra.mxu0 0.0
  %464 = vmatprep.subr.mxu0 0.0
  %465 = vmatpush1.msra.mxu0 0.0
  %466 = vmatprep.subr.mxu0 0.0
  %467 = vmatpush1.msra.mxu0 0.0
  %468 = vmatprep.subr.mxu0 0.0
  %469 = vmatpush1.msra.mxu0 0.0
  %470 = vmatprep.subr.mxu0 0.0
  %471 = vmatpush1.msra.mxu0 0.0
  %472 = vmatprep.subr.mxu0 0.0
  %473 = vmatpush1.msra.mxu0 0.0
  %474 = vmatprep.subr.mxu0 %v223
  %475 = vmatpush1.msra.mxu0 %v222
  %476 = vmatprep.subr.mxu0 %v205
  %477 = vmatpush1.msra.mxu0 %v204
  %478 = vmatprep.subr.mxu0 %v187
  %479 = vmatpush1.msra.mxu0 %v186
  %480 = vmatprep.subr.mxu0 %v169
  %481 = vmatpush1.msra.mxu0 %v168
  %482 = vmatprep.subr.mxu0 0.0
  %483 = vmatpush2.msra.mxu0 0.0
  %484 = vmatprep.subr.mxu0 0.0
  %485 = vmatpush2.msra.mxu0 0.0
  %486 = vmatprep.subr.mxu0 0.0
  %487 = vmatpush2.msra.mxu0 0.0
  %488 = vmatprep.subr.mxu0 0.0
  %489 = vmatpush2.msra.mxu0 0.0
  %490 = vmatprep.subr.mxu0 0.0
  %491 = vmatpush2.msra.mxu0 0.0
  %492 = vmatprep.subr.mxu0 0.0
  %493 = vmatpush2.msra.mxu0 0.0
  %494 = vmatprep.subr.mxu0 0.0
  %495 = vmatpush2.msra.mxu0 0.0
  %496 = vmatprep.subr.mxu0 0.0
  %497 = vmatpush2.msra.mxu0 0.0
  %498 = vmatprep.subr.mxu0 0.0
  %499 = vmatpush2.msra.mxu0 0.0
  %500 = vmatprep.subr.mxu0 0.0
  %501 = vmatpush2.msra.mxu0 0.0
  %502 = vmatprep.subr.mxu0 0.0
  %503 = vmatpush2.msra.mxu0 0.0
  %504 = vmatprep.subr.mxu0 0.0
  %505 = vmatpush2.msra.mxu0 0.0
  %506 = vmatprep.subr.mxu0 0.0
  %507 = vmatpush2.msra.mxu0 0.0
  %508 = vmatprep.subr.mxu0 0.0
  %509 = vmatpush2.msra.mxu0 0.0
  %510 = vmatprep.subr.mxu0 0.0
  %511 = vmatpush2.msra.mxu0 0.0
  %512 = vmatprep.subr.mxu0 0.0
  %513 = vmatpush2.msra.mxu0 0.0
  %514 = vmatprep.mubr.f32.mxu0 0.0
  %515 = vmatmul.mubr.f32.gmra.mxu0 %v235
  %v516 = vpop.f32.mrf.mxu0
  %v517 = vadd.f32 0.0, %v516
  %v518 = vpop.f32.mrf.mxu0
  %v519 = vadd.f32 0.0, %v518
  %520 = vdwg.mxu0
  %521 = vmatprep.subr.mxu0 0.0
  %522 = vmatpush1.msra.mxu0 0.0
  %523 = vmatprep.subr.mxu0 0.0
  %524 = vmatpush1.msra.mxu0 0.0
  %525 = vmatprep.subr.mxu0 0.0
  %526 = vmatpush1.msra.mxu0 0.0
  %527 = vmatprep.subr.mxu0 0.0
  %528 = vmatpush1.msra.mxu0 0.0
  %529 = vmatprep.subr.mxu0 0.0
  %530 = vmatpush1.msra.mxu0 0.0
  %531 = vmatprep.subr.mxu0 0.0
  %532 = vmatpush1.msra.mxu0 0.0
  %533 = vmatprep.subr.mxu0 0.0
  %534 = vmatpush1.msra.mxu0 0.0
  %535 = vmatprep.subr.mxu0 0.0
  %536 = vmatpush1.msra.mxu0 0.0
  %537 = vmatprep.subr.mxu0 0.0
  %538 = vmatpush1.msra.mxu0 0.0
  %539 = vmatprep.subr.mxu0 0.0
  %540 = vmatpush1.msra.mxu0 0.0
  %541 = vmatprep.subr.mxu0 0.0
  %542 = vmatpush1.msra.mxu0 0.0
  %543 = vmatprep.subr.mxu0 0.0
  %544 = vmatpush1.msra.mxu0 0.0
  %545 = vmatprep.subr.mxu0 %v225
  %546 = vmatpush1.msra.mxu0 %v224
  %547 = vmatprep.subr.mxu0 %v207
  %548 = vmatpush1.msra.mxu0 %v206
  %549 = vmatprep.subr.mxu0 %v189
  %550 = vmatpush1.msra.mxu0 %v188
  %551 = vmatprep.subr.mxu0 %v171
  %552 = vmatpush1.msra.mxu0 %v170
  %553 = vmatprep.subr.mxu0 0.0
  %554 = vmatpush2.msra.mxu0 0.0
  %555 = vmatprep.subr.mxu0 0.0
  %556 = vmatpush2.msra.mxu0 0.0
  %557 = vmatprep.subr.mxu0 0.0
  %558 = vmatpush2.msra.mxu0 0.0
  %559 = vmatprep.subr.mxu0 0.0
  %560 = vmatpush2.msra.mxu0 0.0
  %561 = vmatprep.subr.mxu0 0.0
  %562 = vmatpush2.msra.mxu0 0.0
  %563 = vmatprep.subr.mxu0 0.0
  %564 = vmatpush2.msra.mxu0 0.0
  %565 = vmatprep.subr.mxu0 0.0
  %566 = vmatpush2.msra.mxu0 0.0
  %567 = vmatprep.subr.mxu0 0.0
  %568 = vmatpush2.msra.mxu0 0.0
  %569 = vmatprep.subr.mxu0 0.0
  %570 = vmatpush2.msra.mxu0 0.0
  %571 = vmatprep.subr.mxu0 0.0
  %572 = vmatpush2.msra.mxu0 0.0
  %573 = vmatprep.subr.mxu0 0.0
  %574 = vmatpush2.msra.mxu0 0.0
  %575 = vmatprep.subr.mxu0 0.0
  %576 = vmatpush2.msra.mxu0 0.0
  %577 = vmatprep.subr.mxu0 0.0
  %578 = vmatpush2.msra.mxu0 0.0
  %579 = vmatprep.subr.mxu0 0.0
  %580 = vmatpush2.msra.mxu0 0.0
  %581 = vmatprep.subr.mxu0 0.0
  %582 = vmatpush2.msra.mxu0 0.0
  %583 = vmatprep.subr.mxu0 0.0
  %584 = vmatpush2.msra.mxu0 0.0
  %585 = vmatprep.mubr.f32.mxu0 0.0
  %586 = vmatmul.mubr.f32.gmra.mxu0 %v235
  %v587 = vpop.f32.mrf.mxu0
  %v588 = vadd.f32 0.0, %v587
  %v589 = vpop.f32.mrf.mxu0
  %v590 = vadd.f32 0.0, %v589
  %591 = vdwg.mxu0
  %592 = vmatprep.subr.mxu0 0.0
  %593 = vmatpush1.msra.mxu0 0.0
  %594 = vmatprep.subr.mxu0 0.0
  %595 = vmatpush1.msra.mxu0 0.0
  %596 = vmatprep.subr.mxu0 0.0
  %597 = vmatpush1.msra.mxu0 0.0
  %598 = vmatprep.subr.mxu0 0.0
  %599 = vmatpush1.msra.mxu0 0.0
  %600 = vmatprep.subr.mxu0 0.0
  %601 = vmatpush1.msra.mxu0 0.0
  %602 = vmatprep.subr.mxu0 0.0
  %603 = vmatpush1.msra.mxu0 0.0
  %604 = vmatprep.subr.mxu0 0.0
  %605 = vmatpush1.msra.mxu0 0.0
  %606 = vmatprep.subr.mxu0 0.0
  %607 = vmatpush1.msra.mxu0 0.0
  %608 = vmatprep.subr.mxu0 0.0
  %609 = vmatpush1.msra.mxu0 0.0
  %610 = vmatprep.subr.mxu0 0.0
  %611 = vmatpush1.msra.mxu0 0.0
  %612 = vmatprep.subr.mxu0 0.0
  %613 = vmatpush1.msra.mxu0 0.0
  %614 = vmatprep.subr.mxu0 0.0
  %615 = vmatpush1.msra.mxu0 0.0
  %616 = vmatprep.subr.mxu0 %v227
  %617 = vmatpush1.msra.mxu0 %v226
  %618 = vmatprep.subr.mxu0 %v209
  %619 = vmatpush1.msra.mxu0 %v208
  %620 = vmatprep.subr.mxu0 %v191
  %621 = vmatpush1.msra.mxu0 %v190
  %622 = vmatprep.subr.mxu0 %v173
  %623 = vmatpush1.msra.mxu0 %v172
  %624 = vmatprep.subr.mxu0 0.0
  %625 = vmatpush2.msra.mxu0 0.0
  %626 = vmatprep.subr.mxu0 0.0
  %627 = vmatpush2.msra.mxu0 0.0
  %628 = vmatprep.subr.mxu0 0.0
  %629 = vmatpush2.msra.mxu0 0.0
  %630 = vmatprep.subr.mxu0 0.0
  %631 = vmatpush2.msra.mxu0 0.0
  %632 = vmatprep.subr.mxu0 0.0
  %633 = vmatpush2.msra.mxu0 0.0
  %634 = vmatprep.subr.mxu0 0.0
  %635 = vmatpush2.msra.mxu0 0.0
  %636 = vmatprep.subr.mxu0 0.0
  %637 = vmatpush2.msra.mxu0 0.0
  %638 = vmatprep.subr.mxu0 0.0
  %639 = vmatpush2.msra.mxu0 0.0
  %640 = vmatprep.subr.mxu0 0.0
  %641 = vmatpush2.msra.mxu0 0.0
  %642 = vmatprep.subr.mxu0 0.0
  %643 = vmatpush2.msra.mxu0 0.0
  %644 = vmatprep.subr.mxu0 0.0
  %645 = vmatpush2.msra.mxu0 0.0
  %646 = vmatprep.subr.mxu0 0.0
  %647 = vmatpush2.msra.mxu0 0.0
  %648 = vmatprep.subr.mxu0 0.0
  %649 = vmatpush2.msra.mxu0 0.0
  %650 = vmatprep.subr.mxu0 0.0
  %651 = vmatpush2.msra.mxu0 0.0
  %652 = vmatprep.subr.mxu0 0.0
  %653 = vmatpush2.msra.mxu0 0.0
  %654 = vmatprep.subr.mxu0 0.0
  %655 = vmatpush2.msra.mxu0 0.0
  %656 = vmatprep.mubr.f32.mxu0 0.0
  %657 = vmatmul.mubr.f32.gmra.mxu0 %v235
  %v658 = vpop.f32.mrf.mxu0
  %v659 = vadd.f32 0.0, %v658
  %v660 = vpop.f32.mrf.mxu0
  %v661 = vadd.f32 0.0, %v660
  %662 = vdwg.mxu0
  %663 = vmatprep.subr.mxu0 0.0
  %664 = vmatpush1.msra.mxu0 0.0
  %665 = vmatprep.subr.mxu0 0.0
  %666 = vmatpush1.msra.mxu0 0.0
  %667 = vmatprep.subr.mxu0 0.0
  %668 = vmatpush1.msra.mxu0 0.0
  %669 = vmatprep.subr.mxu0 0.0
  %670 = vmatpush1.msra.mxu0 0.0
  %671 = vmatprep.subr.mxu0 0.0
  %672 = vmatpush1.msra.mxu0 0.0
  %673 = vmatprep.subr.mxu0 0.0
  %674 = vmatpush1.msra.mxu0 0.0
  %675 = vmatprep.subr.mxu0 0.0
  %676 = vmatpush1.msra.mxu0 0.0
  %677 = vmatprep.subr.mxu0 0.0
  %678 = vmatpush1.msra.mxu0 0.0
  %679 = vmatprep.subr.mxu0 0.0
  %680 = vmatpush1.msra.mxu0 0.0
  %681 = vmatprep.subr.mxu0 0.0
  %682 = vmatpush1.msra.mxu0 0.0
  %683 = vmatprep.subr.mxu0 0.0
  %684 = vmatpush1.msra.mxu0 0.0
  %685 = vmatprep.subr.mxu0 0.0
  %686 = vmatpush1.msra.mxu0 0.0
  %687 = vmatprep.subr.mxu0 %v229
  %688 = vmatpush1.msra.mxu0 %v228
  %689 = vmatprep.subr.mxu0 %v211
  %690 = vmatpush1.msra.mxu0 %v210
  %691 = vmatprep.subr.mxu0 %v193
  %692 = vmatpush1.msra.mxu0 %v192
  %693 = vmatprep.subr.mxu0 %v175
  %694 = vmatpush1.msra.mxu0 %v174
  %695 = vmatprep.subr.mxu0 0.0
  %696 = vmatpush2.msra.mxu0 0.0
  %697 = vmatprep.subr.mxu0 0.0
  %698 = vmatpush2.msra.mxu0 0.0
  %699 = vmatprep.subr.mxu0 0.0
  %700 = vmatpush2.msra.mxu0 0.0
  %701 = vmatprep.subr.mxu0 0.0
  %702 = vmatpush2.msra.mxu0 0.0
  %703 = vmatprep.subr.mxu0 0.0
  %704 = vmatpush2.msra.mxu0 0.0
  %705 = vmatprep.subr.mxu0 0.0
  %706 = vmatpush2.msra.mxu0 0.0
  %707 = vmatprep.subr.mxu0 0.0
  %708 = vmatpush2.msra.mxu0 0.0
  %709 = vmatprep.subr.mxu0 0.0
  %710 = vmatpush2.msra.mxu0 0.0
  %711 = vmatprep.subr.mxu0 0.0
  %712 = vmatpush2.msra.mxu0 0.0
  %713 = vmatprep.subr.mxu0 0.0
  %714 = vmatpush2.msra.mxu0 0.0
  %715 = vmatprep.subr.mxu0 0.0
  %716 = vmatpush2.msra.mxu0 0.0
  %717 = vmatprep.subr.mxu0 0.0
  %718 = vmatpush2.msra.mxu0 0.0
  %719 = vmatprep.subr.mxu0 0.0
  %720 = vmatpush2.msra.mxu0 0.0
  %721 = vmatprep.subr.mxu0 0.0
  %722 = vmatpush2.msra.mxu0 0.0
  %723 = vmatprep.subr.mxu0 0.0
  %724 = vmatpush2.msra.mxu0 0.0
  %725 = vmatprep.subr.mxu0 0.0
  %726 = vmatpush2.msra.mxu0 0.0
  %727 = vmatprep.mubr.f32.mxu0 0.0
  %728 = vmatmul.mubr.f32.gmra.mxu0 %v235
  %v729 = vpop.f32.mrf.mxu0
  %v730 = vadd.f32 0.0, %v729
  %v731 = vpop.f32.mrf.mxu0
  %v732 = vadd.f32 0.0, %v731
  %733 = vdwg.mxu0
  %734 = vmatprep.subr.mxu0 0.0
  %735 = vmatpush1.msra.mxu0 0.0
  %736 = vmatprep.subr.mxu0 0.0
  %737 = vmatpush1.msra.mxu0 0.0
  %738 = vmatprep.subr.mxu0 0.0
  %739 = vmatpush1.msra.mxu0 0.0
  %740 = vmatprep.subr.mxu0 0.0
  %741 = vmatpush1.msra.mxu0 0.0
  %742 = vmatprep.subr.mxu0 0.0
  %743 = vmatpush1.msra.mxu0 0.0
  %744 = vmatprep.subr.mxu0 0.0
  %745 = vmatpush1.msra.mxu0 0.0
  %746 = vmatprep.subr.mxu0 0.0
  %747 = vmatpush1.msra.mxu0 0.0
  %748 = vmatprep.subr.mxu0 0.0
  %749 = vmatpush1.msra.mxu0 0.0
  %750 = vmatprep.subr.mxu0 0.0
  %751 = vmatpush1.msra.mxu0 0.0
  %752 = vmatprep.subr.mxu0 0.0
  %753 = vmatpush1.msra.mxu0 0.0
  %754 = vmatprep.subr.mxu0 0.0
  %755 = vmatpush1.msra.mxu0 0.0
  %756 = vmatprep.subr.mxu0 0.0
  %757 = vmatpush1.msra.mxu0 0.0
  %758 = vmatprep.subr.mxu0 %v231
  %759 = vmatpush1.msra.mxu0 %v230
  %760 = vmatprep.subr.mxu0 %v213
  %761 = vmatpush1.msra.mxu0 %v212
  %762 = vmatprep.subr.mxu0 %v195
  %763 = vmatpush1.msra.mxu0 %v194
  %764 = vmatprep.subr.mxu0 %v177
  %765 = vmatpush1.msra.mxu0 %v176
  %766 = vmatprep.subr.mxu0 0.0
  %767 = vmatpush2.msra.mxu0 0.0
  %768 = vmatprep.subr.mxu0 0.0
  %769 = vmatpush2.msra.mxu0 0.0
  %770 = vmatprep.subr.mxu0 0.0
  %771 = vmatpush2.msra.mxu0 0.0
  %772 = vmatprep.subr.mxu0 0.0
  %773 = vmatpush2.msra.mxu0 0.0
  %774 = vmatprep.subr.mxu0 0.0
  %775 = vmatpush2.msra.mxu0 0.0
  %776 = vmatprep.subr.mxu0 0.0
  %777 = vmatpush2.msra.mxu0 0.0
  %778 = vmatprep.subr.mxu0 0.0
  %779 = vmatpush2.msra.mxu0 0.0
  %780 = vmatprep.subr.mxu0 0.0
  %781 = vmatpush2.msra.mxu0 0.0
  %782 = vmatprep.subr.mxu0 0.0
  %783 = vmatpush2.msra.mxu0 0.0
  %784 = vmatprep.subr.mxu0 0.0
  %785 = vmatpush2.msra.mxu0 0.0
  %786 = vmatprep.subr.mxu0 0.0
  %787 = vmatpush2.msra.mxu0 0.0
  %788 = vmatprep.subr.mxu0 0.0
  %789 = vmatpush2.msra.mxu0 0.0
  %790 = vmatprep.subr.mxu0 0.0
  %791 = vmatpush2.msra.mxu0 0.0
  %792 = vmatprep.subr.mxu0 0.0
  %793 = vmatpush2.msra.mxu0 0.0
  %794 = vmatprep.subr.mxu0 0.0
  %795 = vmatpush2.msra.mxu0 0.0
  %796 = vmatprep.subr.mxu0 0.0
  %797 = vmatpush2.msra.mxu0 0.0
  %798 = vmatprep.mubr.f32.mxu0 0.0
  %799 = vmatmul.mubr.f32.gmra.mxu0 %v235
  %v800 = vpop.f32.mrf.mxu0
  %v801 = vadd.f32 0.0, %v800
  %v802 = vpop.f32.mrf.mxu0
  %v803 = vadd.f32 0.0, %v802
  %804 = vdwg.mxu0
  %805 = vmatprep.subr.mxu0 0.0
  %806 = vmatpush1.msra.mxu0 0.0
  %807 = vmatprep.subr.mxu0 0.0
  %808 = vmatpush1.msra.mxu0 0.0
  %809 = vmatprep.subr.mxu0 0.0
  %810 = vmatpush1.msra.mxu0 0.0
  %811 = vmatprep.subr.mxu0 0.0
  %812 = vmatpush1.msra.mxu0 0.0
  %813 = vmatprep.subr.mxu0 0.0
  %814 = vmatpush1.msra.mxu0 0.0
  %815 = vmatprep.subr.mxu0 0.0
  %816 = vmatpush1.msra.mxu0 0.0
  %817 = vmatprep.subr.mxu0 0.0
  %818 = vmatpush1.msra.mxu0 0.0
  %819 = vmatprep.subr.mxu0 0.0
  %820 = vmatpush1.msra.mxu0 0.0
  %821 = vmatprep.subr.mxu0 0.0
  %822 = vmatpush1.msra.mxu0 0.0
  %823 = vmatprep.subr.mxu0 0.0
  %824 = vmatpush1.msra.mxu0 0.0
  %825 = vmatprep.subr.mxu0 0.0
  %826 = vmatpush1.msra.mxu0 0.0
  %827 = vmatprep.subr.mxu0 0.0
  %828 = vmatpush1.msra.mxu0 0.0
  %829 = vmatprep.subr.mxu0 %v233
  %830 = vmatpush1.msra.mxu0 %v232
  %831 = vmatprep.subr.mxu0 %v215
  %832 = vmatpush1.msra.mxu0 %v214
  %833 = vmatprep.subr.mxu0 %v197
  %834 = vmatpush1.msra.mxu0 %v196
  %835 = vmatprep.subr.mxu0 %v179
  %836 = vmatpush1.msra.mxu0 %v178
  %837 = vmatprep.subr.mxu0 0.0
  %838 = vmatpush2.msra.mxu0 0.0
  %839 = vmatprep.subr.mxu0 0.0
  %840 = vmatpush2.msra.mxu0 0.0
  %841 = vmatprep.subr.mxu0 0.0
  %842 = vmatpush2.msra.mxu0 0.0
  %843 = vmatprep.subr.mxu0 0.0
  %844 = vmatpush2.msra.mxu0 0.0
  %845 = vmatprep.subr.mxu0 0.0
  %846 = vmatpush2.msra.mxu0 0.0
  %847 = vmatprep.subr.mxu0 0.0
  %848 = vmatpush2.msra.mxu0 0.0
  %849 = vmatprep.subr.mxu0 0.0
  %850 = vmatpush2.msra.mxu0 0.0
  %851 = vmatprep.subr.mxu0 0.0
  %852 = vmatpush2.msra.mxu0 0.0
  %853 = vmatprep.subr.mxu0 0.0
  %854 = vmatpush2.msra.mxu0 0.0
  %855 = vmatprep.subr.mxu0 0.0
  %856 = vmatpush2.msra.mxu0 0.0
  %857 = vmatprep.subr.mxu0 0.0
  %858 = vmatpush2.msra.mxu0 0.0
  %859 = vmatprep.subr.mxu0 0.0
  %860 = vmatpush2.msra.mxu0 0.0
  %861 = vmatprep.subr.mxu0 0.0
  %862 = vmatpush2.msra.mxu0 0.0
  %863 = vmatprep.subr.mxu0 0.0
  %864 = vmatpush2.msra.mxu0 0.0
  %865 = vmatprep.subr.mxu0 0.0
  %866 = vmatpush2.msra.mxu0 0.0
  %867 = vmatprep.subr.mxu0 0.0
  %868 = vmatpush2.msra.mxu0 0.0
  %869 = vmatprep.mubr.f32.mxu0 0.0
  %870 = vmatmul.mubr.f32.gmra.mxu0 %v235
  %v871 = vpop.f32.mrf.mxu0
  %v872 = vadd.f32 0.0, %v871
  %v873 = vpop.f32.mrf.mxu0
  %v874 = vadd.f32 0.0, %v873
  %875 = vdwg.mxu0
  %877 = vrot.lane.b32.xlu0 %v304, 64
  %v878 = vpop.permute.xlu0 %877
  %880 = vrot.lane.b32.xlu0 %v306, 64
  %v881 = vpop.permute.xlu0 %880
  %883 = vrot.lane.b32.xlu0 %v375, 64
  %v884 = vpop.permute.xlu0 %883
  %886 = vrot.lane.b32.xlu0 %v377, 64
  %v887 = vpop.permute.xlu0 %886
  %889 = vrot.lane.b32.xlu0 %v446, 64
  %v890 = vpop.permute.xlu0 %889
  %892 = vrot.lane.b32.xlu0 %v448, 64
  %v893 = vpop.permute.xlu0 %892
  %895 = vrot.lane.b32.xlu0 %v517, 64
  %v896 = vpop.permute.xlu0 %895
  %898 = vrot.lane.b32.xlu0 %v519, 64
  %v899 = vpop.permute.xlu0 %898
  %901 = vrot.lane.b32.xlu0 %v588, 64
  %v902 = vpop.permute.xlu0 %901
  %904 = vrot.lane.b32.xlu0 %v590, 64
  %v905 = vpop.permute.xlu0 %904
  %907 = vrot.lane.b32.xlu0 %v659, 64
  %v908 = vpop.permute.xlu0 %907
  %910 = vrot.lane.b32.xlu0 %v661, 64
  %v911 = vpop.permute.xlu0 %910
  %913 = vrot.lane.b32.xlu0 %v730, 64
  %v914 = vpop.permute.xlu0 %913
  %917 = vrot.lane.b32.xlu0 %v732, 64
  %v918 = vpop.permute.xlu0 %917
  %921 = vrot.lane.b32.xlu0 %v801, 64
  %v922 = vpop.permute.xlu0 %921
  %925 = vrot.lane.b32.xlu0 %v803, 64
  %v926 = vpop.permute.xlu0 %925
  %929 = vrot.lane.b32.xlu0 %v872, 64
  %v930 = vpop.permute.xlu0 %929
  %933 = vrot.lane.b32.xlu0 %v874, 64
  %v934 = vpop.permute.xlu0 %933
  %vm936 = vcmask 523264
  %v937 = vsel %vm936, %v304, 0
  %v939 = vsel %vm936, %v878, 0
  %v941 = vsel %vm936, %v306, 0
  %v943 = vsel %vm936, %v881, 0
  %v945 = vsel %vm936, %v375, 0
  %v947 = vsel %vm936, %v884, 0
  %v949 = vsel %vm936, %v377, 0
  %v951 = vsel %vm936, %v887, 0
  %v953 = vsel %vm936, %v446, 0
  %v955 = vsel %vm936, %v890, 0
  %v957 = vsel %vm936, %v448, 0
  %v959 = vsel %vm936, %v893, 0
  %v961 = vsel %vm936, %v517, 0
  %v963 = vsel %vm936, %v896, 0
  %v965 = vsel %vm936, %v519, 0
  %v967 = vsel %vm936, %v899, 0
  %v969 = vsel %vm936, %v588, 0
  %v971 = vsel %vm936, %v902, 0
  %v973 = vsel %vm936, %v590, 0
  %v975 = vsel %vm936, %v905, 0
  %v977 = vsel %vm936, %v659, 0
  %v979 = vsel %vm936, %v908, 0
  %v981 = vsel %vm936, %v661, 0
  %v983 = vsel %vm936, %v911, 0
  %985 = vmatprep.subr.mxu0 0.0
  %986 = vmatpush1.xpose.msra.mxu0 0.0
  %987 = vmatprep.subr.mxu0 0.0
  %988 = vmatpush1.xpose.msra.mxu0 0.0
  %989 = vmatprep.subr.mxu0 0.0
  %990 = vmatpush1.xpose.msra.mxu0 0.0
  %991 = vmatprep.subr.mxu0 0.0
  %992 = vmatpush1.xpose.msra.mxu0 0.0
  %993 = vmatprep.subr.mxu0 0.0
  %994 = vmatpush1.xpose.msra.mxu0 %v983
  %995 = vmatprep.subr.mxu0 0.0
  %996 = vmatpush1.xpose.msra.mxu0 %v981
  %997 = vmatprep.subr.mxu0 0.0
  %998 = vmatpush1.xpose.msra.mxu0 %v979
  %999 = vmatprep.subr.mxu0 0.0
  %1000 = vmatpush1.xpose.msra.mxu0 %v977
  %1001 = vmatprep.subr.mxu0 0.0
  %1002 = vmatpush1.xpose.msra.mxu0 %v975
  %1003 = vmatprep.subr.mxu0 0.0
  %1004 = vmatpush1.xpose.msra.mxu0 %v973
  %1005 = vmatprep.subr.mxu0 0.0
  %1006 = vmatpush1.xpose.msra.mxu0 %v971
  %1007 = vmatprep.subr.mxu0 0.0
  %1008 = vmatpush1.xpose.msra.mxu0 %v969
  %1009 = vmatprep.subr.mxu0 0.0
  %1010 = vmatpush1.xpose.msra.mxu0 %v967
  %1011 = vmatprep.subr.mxu0 0.0
  %1012 = vmatpush1.xpose.msra.mxu0 %v965
  %1013 = vmatprep.subr.mxu0 0.0
  %1014 = vmatpush1.xpose.msra.mxu0 %v963
  %1015 = vmatprep.subr.mxu0 0.0
  %1016 = vmatpush1.xpose.msra.mxu0 %v961
  %1017 = vmatprep.subr.mxu0 0.0
  %1018 = vmatpush2.xpose.msra.mxu0 0.0
  %1019 = vmatprep.subr.mxu0 0.0
  %1020 = vmatpush2.xpose.msra.mxu0 0.0
  %1021 = vmatprep.subr.mxu0 0.0
  %1022 = vmatpush2.xpose.msra.mxu0 0.0
  %1023 = vmatprep.subr.mxu0 0.0
  %1024 = vmatpush2.xpose.msra.mxu0 0.0
  %1025 = vmatprep.subr.mxu0 0.0
  %1026 = vmatpush2.xpose.msra.mxu0 0.0
  %1027 = vmatprep.subr.mxu0 0.0
  %1028 = vmatpush2.xpose.msra.mxu0 0.0
  %1029 = vmatprep.subr.mxu0 0.0
  %1030 = vmatpush2.xpose.msra.mxu0 0.0
  %1031 = vmatprep.subr.mxu0 0.0
  %1032 = vmatpush2.xpose.msra.mxu0 0.0
  %1033 = vmatprep.subr.mxu0 0.0
  %1034 = vmatpush2.xpose.msra.mxu0 0.0
  %1035 = vmatprep.subr.mxu0 0.0
  %1036 = vmatpush2.xpose.msra.mxu0 0.0
  %1037 = vmatprep.subr.mxu0 0.0
  %1038 = vmatpush2.xpose.msra.mxu0 0.0
  %1039 = vmatprep.subr.mxu0 0.0
  %1040 = vmatpush2.xpose.msra.mxu0 0.0
  %1041 = vmatprep.subr.mxu0 0.0
  %1042 = vmatpush2.xpose.msra.mxu0 0.0
  %1043 = vmatprep.subr.mxu0 0.0
  %1044 = vmatpush2.xpose.msra.mxu0 0.0
  %1045 = vmatprep.subr.mxu0 0.0
  %1046 = vmatpush2.xpose.msra.mxu0 0.0
  %1047 = vmatprep.subr.mxu0 0.0
  %1048 = vmatpush2.xpose.msra.mxu0 0.0
  %1049 = vmatprep.mubr.f32.mxu0 0.0
  %1050 = vmatmul.mubr.f32.gmra.mxu0 %v937
  %v1051 = vpop.f32.mrf.mxu0
  %v1052 = vadd.f32 0.0, %v1051
  %v1053 = vpop.f32.mrf.mxu0
  %1054 = vmatprep.mubr.f32.mxu0 0.0
  %1055 = vmatmul.mubr.f32.gmra.mxu0 %v939
  %v1056 = vpop.f32.mrf.mxu0
  %v1057 = vadd.f32 0.0, %v1056
  %v1058 = vpop.f32.mrf.mxu0
  %1059 = vmatprep.mubr.f32.mxu0 0.0
  %1060 = vmatmul.mubr.f32.gmra.mxu0 %v941
  %v1061 = vpop.f32.mrf.mxu0
  %v1062 = vadd.f32 0.0, %v1061
  %v1063 = vpop.f32.mrf.mxu0
  %1064 = vmatprep.mubr.f32.mxu0 0.0
  %1065 = vmatmul.mubr.f32.gmra.mxu0 %v943
  %v1066 = vpop.f32.mrf.mxu0
  %v1067 = vadd.f32 0.0, %v1066
  %v1068 = vpop.f32.mrf.mxu0
  %1069 = vmatprep.mubr.f32.mxu0 0.0
  %1070 = vmatmul.mubr.f32.gmra.mxu0 %v945
  %v1071 = vpop.f32.mrf.mxu0
  %v1072 = vadd.f32 0.0, %v1071
  %v1073 = vpop.f32.mrf.mxu0
  %1074 = vmatprep.mubr.f32.mxu0 0.0
  %1075 = vmatmul.mubr.f32.gmra.mxu0 %v947
  %v1076 = vpop.f32.mrf.mxu0
  %v1077 = vadd.f32 0.0, %v1076
  %v1078 = vpop.f32.mrf.mxu0
  %1079 = vmatprep.mubr.f32.mxu0 0.0
  %1080 = vmatmul.mubr.f32.gmra.mxu0 %v949
  %v1081 = vpop.f32.mrf.mxu0
  %v1082 = vadd.f32 0.0, %v1081
  %v1083 = vpop.f32.mrf.mxu0
  %1084 = vmatprep.mubr.f32.mxu0 0.0
  %1085 = vmatmul.mubr.f32.gmra.mxu0 %v951
  %v1086 = vpop.f32.mrf.mxu0
  %v1087 = vadd.f32 0.0, %v1086
  %v1088 = vpop.f32.mrf.mxu0
  %1089 = vmatprep.mubr.f32.mxu0 0.0
  %1090 = vmatmul.mubr.f32.gmra.mxu0 %v953
  %v1091 = vpop.f32.mrf.mxu0
  %v1092 = vadd.f32 0.0, %v1091
  %v1093 = vpop.f32.mrf.mxu0
  %1094 = vmatprep.mubr.f32.mxu0 0.0
  %1095 = vmatmul.mubr.f32.gmra.mxu0 %v955
  %v1096 = vpop.f32.mrf.mxu0
  %v1097 = vadd.f32 0.0, %v1096
  %v1098 = vpop.f32.mrf.mxu0
  %1099 = vmatprep.mubr.f32.mxu0 0.0
  %1100 = vmatmul.mubr.f32.gmra.mxu0 %v957
  %v1101 = vpop.f32.mrf.mxu0
  %v1102 = vadd.f32 0.0, %v1101
  %v1103 = vpop.f32.mrf.mxu0
  %1104 = vmatprep.mubr.f32.mxu0 0.0
  %1105 = vmatmul.mubr.f32.gmra.mxu0 %v959
  %v1106 = vpop.f32.mrf.mxu0
  %v1107 = vadd.f32 0.0, %v1106
  %v1108 = vpop.f32.mrf.mxu0
  %1109 = vdwg.mxu0
  %v1110 = vmul.f32 %v1052, 0.125
  %v1111 = vmul.f32 %v1057, 0.125
  %v1112 = vmul.f32 %v1062, 0.125
  %v1113 = vmul.f32 %v1067, 0.125
  %v1114 = vmul.f32 %v1072, 0.125
  %v1115 = vmul.f32 %v1077, 0.125
  %v1116 = vmul.f32 %v1082, 0.125
  %v1117 = vmul.f32 %v1087, 0.125
  %v1118 = vmul.f32 %v1092, 0.125
  %v1119 = vmul.f32 %v1097, 0.125
  %v1120 = vmul.f32 %v1102, 0.125
  %v1121 = vmul.f32 %v1107, 0.125
  %vm1122 = vcmask 785408
  %v1123 = vsel %vm1122, %v1110, -inf
  %1124 = vmax.xlane.f32.xlu0 %v1123
  %v1125 = vpop.xlane.xlu0 %1124
  %v1126 = vsel %vm1122, %v1111, -inf
  %1127 = vmax.xlane.f32.xlu0 %v1126
  %v1128 = vpop.xlane.xlu0 %1127
  %v1129 = vsel %vm1122, %v1112, -inf
  %1130 = vmax.xlane.f32.xlu0 %v1129
  %v1131 = vpop.xlane.xlu0 %1130
  %v1132 = vsel %vm1122, %v1113, -inf
  %1133 = vmax.xlane.f32.xlu0 %v1132
  %v1134 = vpop.xlane.xlu0 %1133
  %v1135 = vsel %vm1122, %v1114, -inf
  %1136 = vmax.xlane.f32.xlu0 %v1135
  %v1137 = vpop.xlane.xlu0 %1136
  %v1138 = vsel %vm1122, %v1115, -inf
  %1139 = vmax.xlane.f32.xlu0 %v1138
  %v1140 = vpop.xlane.xlu0 %1139
  %v1141 = vsel %vm1122, %v1116, -inf
  %1142 = vmax.xlane.f32.xlu0 %v1141
  %v1143 = vpop.xlane.xlu0 %1142
  %v1144 = vsel %vm1122, %v1117, -inf
  %1145 = vmax.xlane.f32.xlu0 %v1144
  %v1146 = vpop.xlane.xlu0 %1145
  %v1147 = vsel %vm1122, %v1118, -inf
  %1148 = vmax.xlane.f32.xlu0 %v1147
  %v1149 = vpop.xlane.xlu0 %1148
  %v1150 = vsel %vm1122, %v1119, -inf
  %1151 = vmax.xlane.f32.xlu0 %v1150
  %v1152 = vpop.xlane.xlu0 %1151
  %v1153 = vsel %vm1122, %v1120, -inf
  %1154 = vmax.xlane.f32.xlu0 %v1153
  %v1155 = vpop.xlane.xlu0 %1154
  %v1156 = vsel %vm1122, %v1121, -inf
  %1157 = vmax.xlane.f32.xlu0 %v1156
  %v1158 = vpop.xlane.xlu0 %1157
  %v1159 = vsub.f32 %v1110, %v1125
  %v1160 = vsub.f32 %v1111, %v1128
  %v1161 = vsub.f32 %v1112, %v1131
  %v1162 = vsub.f32 %v1113, %v1134
  %v1163 = vsub.f32 %v1114, %v1137
  %v1164 = vsub.f32 %v1115, %v1140
  %v1165 = vsub.f32 %v1116, %v1143
  %v1166 = vsub.f32 %v1117, %v1146
  %v1167 = vsub.f32 %v1118, %v1149
  %v1168 = vsub.f32 %v1119, %v1152
  %v1169 = vsub.f32 %v1120, %v1155
  %v1170 = vsub.f32 %v1121, %v1158
  %v1171 = vmul.f32 %v1159, 1.442695
  %v1172 = vpow.pop %v1171
  %v1173 = vmul.f32 %v1160, 1.442695
  %v1174 = vpow.pop %v1173
  %v1175 = vmul.f32 %v1161, 1.442695
  %v1176 = vpow.pop %v1175
  %v1177 = vmul.f32 %v1162, 1.442695
  %v1178 = vpow.pop %v1177
  %v1179 = vmul.f32 %v1163, 1.442695
  %v1180 = vpow.pop %v1179
  %v1181 = vmul.f32 %v1164, 1.442695
  %v1182 = vpow.pop %v1181
  %v1183 = vmul.f32 %v1165, 1.442695
  %v1184 = vpow.pop %v1183
  %v1185 = vmul.f32 %v1166, 1.442695
  %v1186 = vpow.pop %v1185
  %v1187 = vmul.f32 %v1167, 1.442695
  %v1188 = vpow.pop %v1187
  %v1189 = vmul.f32 %v1168, 1.442695
  %v1190 = vpow.pop %v1189
  %v1191 = vmul.f32 %v1169, 1.442695
  %v1192 = vpow.pop %v1191
  %v1193 = vmul.f32 %v1170, 1.442695
  %v1194 = vpow.pop %v1193
  %v1195 = vsel %vm1122, %v1172, 0.0
  %1196 = vadd.xlane.f32.xlu0 %v1195
  %v1197 = vpop.xlane.xlu0 %1196
  %v1198 = vsel %vm1122, %v1174, 0.0
  %1199 = vadd.xlane.f32.xlu0 %v1198
  %v1200 = vpop.xlane.xlu0 %1199
  %v1201 = vsel %vm1122, %v1176, 0.0
  %1202 = vadd.xlane.f32.xlu0 %v1201
  %v1203 = vpop.xlane.xlu0 %1202
  %v1204 = vsel %vm1122, %v1178, 0.0
  %1205 = vadd.xlane.f32.xlu0 %v1204
  %v1206 = vpop.xlane.xlu0 %1205
  %v1207 = vsel %vm1122, %v1180, 0.0
  %1208 = vadd.xlane.f32.xlu0 %v1207
  %v1209 = vpop.xlane.xlu0 %1208
  %v1210 = vsel %vm1122, %v1182, 0.0
  %1211 = vadd.xlane.f32.xlu0 %v1210
  %v1212 = vpop.xlane.xlu0 %1211
  %v1213 = vsel %vm1122, %v1184, 0.0
  %1214 = vadd.xlane.f32.xlu0 %v1213
  %v1215 = vpop.xlane.xlu0 %1214
  %v1216 = vsel %vm1122, %v1186, 0.0
  %1217 = vadd.xlane.f32.xlu0 %v1216
  %v1218 = vpop.xlane.xlu0 %1217
  %v1219 = vsel %vm1122, %v1188, 0.0
  %1220 = vadd.xlane.f32.xlu0 %v1219
  %v1221 = vpop.xlane.xlu0 %1220
  %v1222 = vsel %vm1122, %v1190, 0.0
  %1223 = vadd.xlane.f32.xlu0 %v1222
  %v1224 = vpop.xlane.xlu0 %1223
  %v1225 = vsel %vm1122, %v1192, 0.0
  %1226 = vadd.xlane.f32.xlu0 %v1225
  %v1227 = vpop.xlane.xlu0 %1226
  %v1228 = vsel %vm1122, %v1194, 0.0
  %1229 = vadd.xlane.f32.xlu0 %v1228
  %v1230 = vpop.xlane.xlu0 %1229
  %v1231 = vrcp.pop %v1197
  %v1232 = vrcp.pop %v1200
  %v1233 = vrcp.pop %v1203
  %v1234 = vrcp.pop %v1206
  %v1235 = vrcp.pop %v1209
  %v1236 = vrcp.pop %v1212
  %v1237 = vrcp.pop %v1215
  %v1238 = vrcp.pop %v1218
  %v1239 = vrcp.pop %v1221
  %v1240 = vrcp.pop %v1224
  %v1241 = vrcp.pop %v1227
  %v1242 = vrcp.pop %v1230
  %v1243 = vmul.f32 %v1172, %v1231
  %v1244 = vmul.f32 %v1174, %v1232
  %v1245 = vmul.f32 %v1176, %v1233
  %v1246 = vmul.f32 %v1178, %v1234
  %v1247 = vmul.f32 %v1180, %v1235
  %v1248 = vmul.f32 %v1182, %v1236
  %v1249 = vmul.f32 %v1184, %v1237
  %v1250 = vmul.f32 %v1186, %v1238
  %v1251 = vmul.f32 %v1188, %v1239
  %v1252 = vmul.f32 %v1190, %v1240
  %v1253 = vmul.f32 %v1192, %v1241
  %v1254 = vmul.f32 %v1194, %v1242
  %v1256 = vsel %vm1122, %v1243, 0
  %v1259 = vsel %vm1122, %v1244, 0
  %v1262 = vsel %vm1122, %v1245, 0
  %v1265 = vsel %vm1122, %v1246, 0
  %v1268 = vsel %vm1122, %v1247, 0
  %v1271 = vsel %vm1122, %v1248, 0
  %v1274 = vsel %vm1122, %v1249, 0
  %v1277 = vsel %vm1122, %v1250, 0
  %v1280 = vsel %vm1122, %v1251, 0
  %v1283 = vsel %vm1122, %v1252, 0
  %v1286 = vsel %vm1122, %v1253, 0
  %v1289 = vsel %vm1122, %v1254, 0
  %1291 = vmatprep.subr.mxu0 0.0
  %1292 = vmatpush1.msra.mxu0 0.0
  %1293 = vmatprep.subr.mxu0 0.0
  %1294 = vmatpush1.msra.mxu0 0.0
  %1295 = vmatprep.subr.mxu0 0.0
  %1296 = vmatpush1.msra.mxu0 0.0
  %1297 = vmatprep.subr.mxu0 0.0
  %1298 = vmatpush1.msra.mxu0 0.0
  %1299 = vmatprep.subr.mxu0 0.0
  %1300 = vmatpush1.msra.mxu0 %v934
  %1301 = vmatprep.subr.mxu0 0.0
  %1302 = vmatpush1.msra.mxu0 %v874
  %1303 = vmatprep.subr.mxu0 0.0
  %1304 = vmatpush1.msra.mxu0 %v930
  %1305 = vmatprep.subr.mxu0 0.0
  %1306 = vmatpush1.msra.mxu0 %v872
  %1307 = vmatprep.subr.mxu0 0.0
  %1308 = vmatpush1.msra.mxu0 %v926
  %1309 = vmatprep.subr.mxu0 0.0
  %1310 = vmatpush1.msra.mxu0 %v803
  %1311 = vmatprep.subr.mxu0 0.0
  %1312 = vmatpush1.msra.mxu0 %v922
  %1313 = vmatprep.subr.mxu0 0.0
  %1314 = vmatpush1.msra.mxu0 %v801
  %1315 = vmatprep.subr.mxu0 0.0
  %1316 = vmatpush1.msra.mxu0 %v918
  %1317 = vmatprep.subr.mxu0 0.0
  %1318 = vmatpush1.msra.mxu0 %v732
  %1319 = vmatprep.subr.mxu0 0.0
  %1320 = vmatpush1.msra.mxu0 %v914
  %1321 = vmatprep.subr.mxu0 0.0
  %1322 = vmatpush1.msra.mxu0 %v730
  %1323 = vmatprep.subr.mxu0 0.0
  %1324 = vmatpush2.msra.mxu0 0.0
  %1325 = vmatprep.subr.mxu0 0.0
  %1326 = vmatpush2.msra.mxu0 0.0
  %1327 = vmatprep.subr.mxu0 0.0
  %1328 = vmatpush2.msra.mxu0 0.0
  %1329 = vmatprep.subr.mxu0 0.0
  %1330 = vmatpush2.msra.mxu0 0.0
  %1331 = vmatprep.subr.mxu0 0.0
  %1332 = vmatpush2.msra.mxu0 0.0
  %1333 = vmatprep.subr.mxu0 0.0
  %1334 = vmatpush2.msra.mxu0 0.0
  %1335 = vmatprep.subr.mxu0 0.0
  %1336 = vmatpush2.msra.mxu0 0.0
  %1337 = vmatprep.subr.mxu0 0.0
  %1338 = vmatpush2.msra.mxu0 0.0
  %1339 = vmatprep.subr.mxu0 0.0
  %1340 = vmatpush2.msra.mxu0 0.0
  %1341 = vmatprep.subr.mxu0 0.0
  %1342 = vmatpush2.msra.mxu0 0.0
  %1343 = vmatprep.subr.mxu0 0.0
  %1344 = vmatpush2.msra.mxu0 0.0
  %1345 = vmatprep.subr.mxu0 0.0
  %1346 = vmatpush2.msra.mxu0 0.0
  %1347 = vmatprep.subr.mxu0 0.0
  %1348 = vmatpush2.msra.mxu0 0.0
  %1349 = vmatprep.subr.mxu0 0.0
  %1350 = vmatpush2.msra.mxu0 0.0
  %1351 = vmatprep.subr.mxu0 0.0
  %1352 = vmatpush2.msra.mxu0 0.0
  %1353 = vmatprep.subr.mxu0 0.0
  %1354 = vmatpush2.msra.mxu0 0.0
  %1355 = vmatprep.mubr.f32.mxu0 0.0
  %1356 = vmatmul.mubr.f32.gmra.mxu0 %v1256
  %v1357 = vpop.f32.mrf.mxu0
  %v1358 = vadd.f32 0.0, %v1357
  %v1359 = vpop.f32.mrf.mxu0
  %1360 = vmatprep.mubr.f32.mxu0 0.0
  %1361 = vmatmul.mubr.f32.gmra.mxu0 %v1259
  %v1362 = vpop.f32.mrf.mxu0
  %v1363 = vadd.f32 0.0, %v1362
  %v1364 = vpop.f32.mrf.mxu0
  %1365 = vmatprep.mubr.f32.mxu0 0.0
  %1366 = vmatmul.mubr.f32.gmra.mxu0 %v1262
  %v1367 = vpop.f32.mrf.mxu0
  %v1368 = vadd.f32 0.0, %v1367
  %v1369 = vpop.f32.mrf.mxu0
  %1370 = vmatprep.mubr.f32.mxu0 0.0
  %1371 = vmatmul.mubr.f32.gmra.mxu0 %v1265
  %v1372 = vpop.f32.mrf.mxu0
  %v1373 = vadd.f32 0.0, %v1372
  %v1374 = vpop.f32.mrf.mxu0
  %1375 = vmatprep.mubr.f32.mxu0 0.0
  %1376 = vmatmul.mubr.f32.gmra.mxu0 %v1268
  %v1377 = vpop.f32.mrf.mxu0
  %v1378 = vadd.f32 0.0, %v1377
  %v1379 = vpop.f32.mrf.mxu0
  %1380 = vmatprep.mubr.f32.mxu0 0.0
  %1381 = vmatmul.mubr.f32.gmra.mxu0 %v1271
  %v1382 = vpop.f32.mrf.mxu0
  %v1383 = vadd.f32 0.0, %v1382
  %v1384 = vpop.f32.mrf.mxu0
  %1385 = vmatprep.mubr.f32.mxu0 0.0
  %1386 = vmatmul.mubr.f32.gmra.mxu0 %v1274
  %v1387 = vpop.f32.mrf.mxu0
  %v1388 = vadd.f32 0.0, %v1387
  %v1389 = vpop.f32.mrf.mxu0
  %1390 = vmatprep.mubr.f32.mxu0 0.0
  %1391 = vmatmul.mubr.f32.gmra.mxu0 %v1277
  %v1392 = vpop.f32.mrf.mxu0
  %v1393 = vadd.f32 0.0, %v1392
  %v1394 = vpop.f32.mrf.mxu0
  %1395 = vmatprep.mubr.f32.mxu0 0.0
  %1396 = vmatmul.mubr.f32.gmra.mxu0 %v1280
  %v1397 = vpop.f32.mrf.mxu0
  %v1398 = vadd.f32 0.0, %v1397
  %v1399 = vpop.f32.mrf.mxu0
  %1400 = vmatprep.mubr.f32.mxu0 0.0
  %1401 = vmatmul.mubr.f32.gmra.mxu0 %v1283
  %v1402 = vpop.f32.mrf.mxu0
  %v1403 = vadd.f32 0.0, %v1402
  %v1404 = vpop.f32.mrf.mxu0
  %1405 = vmatprep.mubr.f32.mxu0 0.0
  %1406 = vmatmul.mubr.f32.gmra.mxu0 %v1286
  %v1407 = vpop.f32.mrf.mxu0
  %v1408 = vadd.f32 0.0, %v1407
  %v1409 = vpop.f32.mrf.mxu0
  %1410 = vmatprep.mubr.f32.mxu0 0.0
  %1411 = vmatmul.mubr.f32.gmra.mxu0 %v1289
  %v1412 = vpop.f32.mrf.mxu0
  %v1413 = vadd.f32 0.0, %v1412
  %v1414 = vpop.f32.mrf.mxu0
  %1415 = vdwg.mxu0
  %1417 = vrot.lane.b32.xlu0 %v1363, 64
  %v1418 = vpop.permute.xlu0 %1417
  %1421 = vrot.lane.b32.xlu0 %v1373, 64
  %v1422 = vpop.permute.xlu0 %1421
  %1425 = vrot.lane.b32.xlu0 %v1383, 64
  %v1426 = vpop.permute.xlu0 %1425
  %1429 = vrot.lane.b32.xlu0 %v1393, 64
  %v1430 = vpop.permute.xlu0 %1429
  %1433 = vrot.lane.b32.xlu0 %v1403, 64
  %v1434 = vpop.permute.xlu0 %1433
  %1437 = vrot.lane.b32.xlu0 %v1413, 64
  %v1438 = vpop.permute.xlu0 %1437
  %v1440 = vsel %vm936, %v1358, %v1418
  %v1441 = vsel %vm936, %v1368, %v1422
  %v1442 = vsel %vm936, %v1378, %v1426
  %v1443 = vsel %vm936, %v1388, %v1430
  %v1444 = vsel %vm936, %v1398, %v1434
  %v1445 = vsel %vm936, %v1408, %v1438
  %v1446 = vld [vmem:[%s9] sm:$0xff]
  %v1447 = vld [vmem:[%s9 + $0x8] sm:$0xff]
  %v1448 = vld [vmem:[%s9 + $0x10] sm:$0xff]
  %v1449 = vld [vmem:[%s9 + $0x18] sm:$0xff]
  %v1450 = vld [vmem:[%s9 + $0x20] sm:$0xff]
  %v1451 = vld [vmem:[%s9 + $0x28] sm:$0xff]
  %v1452 = vld [vmem:[%s9 + $0x30] sm:$0xff]
  %v1453 = vld [vmem:[%s9 + $0x38] sm:$0xff]
  %v1454 = vld [vmem:[%s9 + $0x40] sm:$0xff]
  %v1455 = vld [vmem:[%s9 + $0x48] sm:$0xff]
  %v1456 = vld [vmem:[%s9 + $0x50] sm:$0xff]
  %v1457 = vld [vmem:[%s9 + $0x58] sm:$0xff]
  %v1458 = vld [vmem:[%s9 + $0x60] sm:$0xff]
  %v1459 = vld [vmem:[%s9 + $0x68] sm:$0xff]
  %v1460 = vld [vmem:[%s9 + $0x70] sm:$0xff]
  %v1461 = vld [vmem:[%s9 + $0x78] sm:$0xff]
  %v1462 = vld [vmem:[%s9 + $0x80] sm:$0xff]
  %v1463 = vld [vmem:[%s9 + $0x88] sm:$0xff]
  %v1464 = vld [vmem:[%s9 + $0x90] sm:$0xff]
  %v1465 = vld [vmem:[%s9 + $0x98] sm:$0xff]
  %v1466 = vld [vmem:[%s9 + $0xa0] sm:$0xff]
  %v1467 = vld [vmem:[%s9 + $0xa8] sm:$0xff]
  %v1468 = vld [vmem:[%s9 + $0xb0] sm:$0xff]
  %v1469 = vld [vmem:[%s9 + $0xb8] sm:$0xff]
  %v1470 = vld [vmem:[%s9 + $0xc0] sm:$0xff]
  %v1471 = vld [vmem:[%s9 + $0xc8] sm:$0xff]
  %v1472 = vld [vmem:[%s9 + $0xd0] sm:$0xff]
  %v1473 = vld [vmem:[%s9 + $0xd8] sm:$0xff]
  %v1474 = vld [vmem:[%s9 + $0xe0] sm:$0xff]
  %v1475 = vld [vmem:[%s9 + $0xe8] sm:$0xff]
  %v1476 = vld [vmem:[%s9 + $0xf0] sm:$0xff]
  %v1477 = vld [vmem:[%s9 + $0xf8] sm:$0xff]
  %v1478 = vld [vmem:[%s9 + $0x100] sm:$0xff]
  %v1479 = vld [vmem:[%s9 + $0x108] sm:$0xff]
  %v1480 = vld [vmem:[%s9 + $0x110] sm:$0xff]
  %v1481 = vld [vmem:[%s9 + $0x118] sm:$0xff]
  %v1482 = vld [vmem:[%s9 + $0x120] sm:$0xff]
  %v1483 = vld [vmem:[%s9 + $0x128] sm:$0xff]
  %v1484 = vld [vmem:[%s9 + $0x130] sm:$0xff]
  %v1485 = vld [vmem:[%s9 + $0x138] sm:$0xff]
  %v1486 = vld [vmem:[%s9 + $0x140] sm:$0xff]
  %v1487 = vld [vmem:[%s9 + $0x148] sm:$0xff]
  %v1488 = vld [vmem:[%s9 + $0x150] sm:$0xff]
  %v1489 = vld [vmem:[%s9 + $0x158] sm:$0xff]
  %v1490 = vld [vmem:[%s9 + $0x160] sm:$0xff]
  %v1491 = vld [vmem:[%s9 + $0x168] sm:$0xff]
  %v1492 = vld [vmem:[%s9 + $0x170] sm:$0xff]
  %v1493 = vld [vmem:[%s9 + $0x178] sm:$0xff]
  %v1494 = vld [vmem:[%s9 + $0x180] sm:$0xff]
  %v1495 = vld [vmem:[%s9 + $0x188] sm:$0xff]
  %v1496 = vld [vmem:[%s9 + $0x190] sm:$0xff]
  %v1497 = vld [vmem:[%s9 + $0x198] sm:$0xff]
  %v1498 = vld [vmem:[%s9 + $0x1a0] sm:$0xff]
  %v1499 = vld [vmem:[%s9 + $0x1a8] sm:$0xff]
  %v1500 = vld [vmem:[%s9 + $0x1b0] sm:$0xff]
  %v1501 = vld [vmem:[%s9 + $0x1b8] sm:$0xff]
  %v1502 = vld [vmem:[%s9 + $0x1c0] sm:$0xff]
  %v1503 = vld [vmem:[%s9 + $0x1c8] sm:$0xff]
  %v1504 = vld [vmem:[%s9 + $0x1d0] sm:$0xff]
  %v1505 = vld [vmem:[%s9 + $0x1d8] sm:$0xff]
  %v1506 = vld [vmem:[%s9 + $0x1e0] sm:$0xff]
  %v1507 = vld [vmem:[%s9 + $0x1e8] sm:$0xff]
  %v1508 = vld [vmem:[%s9 + $0x1f0] sm:$0xff]
  %v1509 = vld [vmem:[%s9 + $0x1f8] sm:$0xff]
  %v1510 = vld [vmem:[%s9 + $0x200] sm:$0xff]
  %v1511 = vld [vmem:[%s9 + $0x208] sm:$0xff]
  %v1512 = vld [vmem:[%s9 + $0x210] sm:$0xff]
  %v1513 = vld [vmem:[%s9 + $0x218] sm:$0xff]
  %v1514 = vld [vmem:[%s9 + $0x220] sm:$0xff]
  %v1515 = vld [vmem:[%s9 + $0x228] sm:$0xff]
  %v1516 = vld [vmem:[%s9 + $0x230] sm:$0xff]
  %v1517 = vld [vmem:[%s9 + $0x238] sm:$0xff]
  %v1518 = vld [vmem:[%s9 + $0x240] sm:$0xff]
  %v1519 = vld [vmem:[%s9 + $0x248] sm:$0xff]
  %v1520 = vld [vmem:[%s9 + $0x250] sm:$0xff]
  %v1521 = vld [vmem:[%s9 + $0x258] sm:$0xff]
  %v1522 = vld [vmem:[%s9 + $0x260] sm:$0xff]
  %v1523 = vld [vmem:[%s9 + $0x268] sm:$0xff]
  %v1524 = vld [vmem:[%s9 + $0x270] sm:$0xff]
  %v1525 = vld [vmem:[%s9 + $0x278] sm:$0xff]
  %v1526 = vld [vmem:[%s9 + $0x280] sm:$0xff]
  %v1527 = vld [vmem:[%s9 + $0x288] sm:$0xff]
  %v1528 = vld [vmem:[%s9 + $0x290] sm:$0xff]
  %v1529 = vld [vmem:[%s9 + $0x298] sm:$0xff]
  %v1530 = vld [vmem:[%s9 + $0x2a0] sm:$0xff]
  %v1531 = vld [vmem:[%s9 + $0x2a8] sm:$0xff]
  %v1532 = vld [vmem:[%s9 + $0x2b0] sm:$0xff]
  %v1533 = vld [vmem:[%s9 + $0x2b8] sm:$0xff]
  %v1534 = vld [vmem:[%s9 + $0x2c0] sm:$0xff]
  %v1535 = vld [vmem:[%s9 + $0x2c8] sm:$0xff]
  %v1536 = vld [vmem:[%s9 + $0x2d0] sm:$0xff]
  %v1537 = vld [vmem:[%s9 + $0x2d8] sm:$0xff]
  %v1538 = vld [vmem:[%s9 + $0x2e0] sm:$0xff]
  %v1539 = vld [vmem:[%s9 + $0x2e8] sm:$0xff]
  %v1540 = vld [vmem:[%s9 + $0x2f0] sm:$0xff]
  %v1541 = vld [vmem:[%s9 + $0x2f8] sm:$0xff]
  %v1542 = vld [vmem:[%s11] sm:$0x1]
  %v1544 = vlaneseq
  %v1545 = vshrl.u32 %v1544, 7
  %v1546 = vsub.s32 0, %v1545
  %v1547 = vrot.slane %v1542, %v1546
  %1549 = vmatprep.subr.mxu0 0.0
  %1550 = vmatpush1.msra.mxu0 %v1461
  %1551 = vmatprep.subr.mxu0 0.0
  %1552 = vmatpush1.msra.mxu0 %v1460
  %1553 = vmatprep.subr.mxu0 0.0
  %1554 = vmatpush1.msra.mxu0 %v1459
  %1555 = vmatprep.subr.mxu0 0.0
  %1556 = vmatpush1.msra.mxu0 %v1458
  %1557 = vmatprep.subr.mxu0 0.0
  %1558 = vmatpush1.msra.mxu0 %v1457
  %1559 = vmatprep.subr.mxu0 0.0
  %1560 = vmatpush1.msra.mxu0 %v1456
  %1561 = vmatprep.subr.mxu0 0.0
  %1562 = vmatpush1.msra.mxu0 %v1455
  %1563 = vmatprep.subr.mxu0 0.0
  %1564 = vmatpush1.msra.mxu0 %v1454
  %1565 = vmatprep.subr.mxu0 0.0
  %1566 = vmatpush1.msra.mxu0 %v1453
  %1567 = vmatprep.subr.mxu0 0.0
  %1568 = vmatpush1.msra.mxu0 %v1452
  %1569 = vmatprep.subr.mxu0 0.0
  %1570 = vmatpush1.msra.mxu0 %v1451
  %1571 = vmatprep.subr.mxu0 0.0
  %1572 = vmatpush1.msra.mxu0 %v1450
  %1573 = vmatprep.subr.mxu0 0.0
  %1574 = vmatpush1.msra.mxu0 %v1449
  %1575 = vmatprep.subr.mxu0 0.0
  %1576 = vmatpush1.msra.mxu0 %v1448
  %1577 = vmatprep.subr.mxu0 0.0
  %1578 = vmatpush1.msra.mxu0 %v1447
  %1579 = vmatprep.subr.mxu0 0.0
  %1580 = vmatpush1.msra.mxu0 %v1446
  %1581 = vmatprep.subr.mxu0 0.0
  %1582 = vmatpush2.msra.mxu0 %v1477
  %1583 = vmatprep.subr.mxu0 0.0
  %1584 = vmatpush2.msra.mxu0 %v1476
  %1585 = vmatprep.subr.mxu0 0.0
  %1586 = vmatpush2.msra.mxu0 %v1475
  %1587 = vmatprep.subr.mxu0 0.0
  %1588 = vmatpush2.msra.mxu0 %v1474
  %1589 = vmatprep.subr.mxu0 0.0
  %1590 = vmatpush2.msra.mxu0 %v1473
  %1591 = vmatprep.subr.mxu0 0.0
  %1592 = vmatpush2.msra.mxu0 %v1472
  %1593 = vmatprep.subr.mxu0 0.0
  %1594 = vmatpush2.msra.mxu0 %v1471
  %1595 = vmatprep.subr.mxu0 0.0
  %1596 = vmatpush2.msra.mxu0 %v1470
  %1597 = vmatprep.subr.mxu0 0.0
  %1598 = vmatpush2.msra.mxu0 %v1469
  %1599 = vmatprep.subr.mxu0 0.0
  %1600 = vmatpush2.msra.mxu0 %v1468
  %1601 = vmatprep.subr.mxu0 0.0
  %1602 = vmatpush2.msra.mxu0 %v1467
  %1603 = vmatprep.subr.mxu0 0.0
  %1604 = vmatpush2.msra.mxu0 %v1466
  %1605 = vmatprep.subr.mxu0 0.0
  %1606 = vmatpush2.msra.mxu0 %v1465
  %1607 = vmatprep.subr.mxu0 0.0
  %1608 = vmatpush2.msra.mxu0 %v1464
  %1609 = vmatprep.subr.mxu0 0.0
  %1610 = vmatpush2.msra.mxu0 %v1463
  %1611 = vmatprep.subr.mxu0 0.0
  %1612 = vmatpush2.msra.mxu0 %v1462
  %1613 = vmatprep.mubr.f32.mxu0 %v1441
  %1614 = vmatmul.mubr.f32.gmra.mxu0 %v1440
  %v1615 = vpop.f32.mrf.mxu0
  %v1616 = vadd.f32 %v1547, %v1615
  %v1617 = vpop.f32.mrf.mxu0
  %1618 = vdwg.mxu0
  %1619 = vmatprep.subr.mxu0 0.0
  %1620 = vmatpush1.msra.mxu0 %v1493
  %1621 = vmatprep.subr.mxu0 0.0
  %1622 = vmatpush1.msra.mxu0 %v1492
  %1623 = vmatprep.subr.mxu0 0.0
  %1624 = vmatpush1.msra.mxu0 %v1491
  %1625 = vmatprep.subr.mxu0 0.0
  %1626 = vmatpush1.msra.mxu0 %v1490
  %1627 = vmatprep.subr.mxu0 0.0
  %1628 = vmatpush1.msra.mxu0 %v1489
  %1629 = vmatprep.subr.mxu0 0.0
  %1630 = vmatpush1.msra.mxu0 %v1488
  %1631 = vmatprep.subr.mxu0 0.0
  %1632 = vmatpush1.msra.mxu0 %v1487
  %1633 = vmatprep.subr.mxu0 0.0
  %1634 = vmatpush1.msra.mxu0 %v1486
  %1635 = vmatprep.subr.mxu0 0.0
  %1636 = vmatpush1.msra.mxu0 %v1485
  %1637 = vmatprep.subr.mxu0 0.0
  %1638 = vmatpush1.msra.mxu0 %v1484
  %1639 = vmatprep.subr.mxu0 0.0
  %1640 = vmatpush1.msra.mxu0 %v1483
  %1641 = vmatprep.subr.mxu0 0.0
  %1642 = vmatpush1.msra.mxu0 %v1482
  %1643 = vmatprep.subr.mxu0 0.0
  %1644 = vmatpush1.msra.mxu0 %v1481
  %1645 = vmatprep.subr.mxu0 0.0
  %1646 = vmatpush1.msra.mxu0 %v1480
  %1647 = vmatprep.subr.mxu0 0.0
  %1648 = vmatpush1.msra.mxu0 %v1479
  %1649 = vmatprep.subr.mxu0 0.0
  %1650 = vmatpush1.msra.mxu0 %v1478
  %1651 = vmatprep.subr.mxu0 0.0
  %1652 = vmatpush2.msra.mxu0 %v1509
  %1653 = vmatprep.subr.mxu0 0.0
  %1654 = vmatpush2.msra.mxu0 %v1508
  %1655 = vmatprep.subr.mxu0 0.0
  %1656 = vmatpush2.msra.mxu0 %v1507
  %1657 = vmatprep.subr.mxu0 0.0
  %1658 = vmatpush2.msra.mxu0 %v1506
  %1659 = vmatprep.subr.mxu0 0.0
  %1660 = vmatpush2.msra.mxu0 %v1505
  %1661 = vmatprep.subr.mxu0 0.0
  %1662 = vmatpush2.msra.mxu0 %v1504
  %1663 = vmatprep.subr.mxu0 0.0
  %1664 = vmatpush2.msra.mxu0 %v1503
  %1665 = vmatprep.subr.mxu0 0.0
  %1666 = vmatpush2.msra.mxu0 %v1502
  %1667 = vmatprep.subr.mxu0 0.0
  %1668 = vmatpush2.msra.mxu0 %v1501
  %1669 = vmatprep.subr.mxu0 0.0
  %1670 = vmatpush2.msra.mxu0 %v1500
  %1671 = vmatprep.subr.mxu0 0.0
  %1672 = vmatpush2.msra.mxu0 %v1499
  %1673 = vmatprep.subr.mxu0 0.0
  %1674 = vmatpush2.msra.mxu0 %v1498
  %1675 = vmatprep.subr.mxu0 0.0
  %1676 = vmatpush2.msra.mxu0 %v1497
  %1677 = vmatprep.subr.mxu0 0.0
  %1678 = vmatpush2.msra.mxu0 %v1496
  %1679 = vmatprep.subr.mxu0 0.0
  %1680 = vmatpush2.msra.mxu0 %v1495
  %1681 = vmatprep.subr.mxu0 0.0
  %1682 = vmatpush2.msra.mxu0 %v1494
  %1683 = vmatprep.mubr.f32.mxu0 %v1443
  %1684 = vmatmul.mubr.f32.gmra.mxu0 %v1442
  %v1685 = vpop.f32.mrf.mxu0
  %v1686 = vadd.f32 %v1616, %v1685
  %v1687 = vpop.f32.mrf.mxu0
  %1688 = vdwg.mxu0
  %1689 = vmatprep.subr.mxu0 0.0
  %1690 = vmatpush1.msra.mxu0 %v1525
  %1691 = vmatprep.subr.mxu0 0.0
  %1692 = vmatpush1.msra.mxu0 %v1524
  %1693 = vmatprep.subr.mxu0 0.0
  %1694 = vmatpush1.msra.mxu0 %v1523
  %1695 = vmatprep.subr.mxu0 0.0
  %1696 = vmatpush1.msra.mxu0 %v1522
  %1697 = vmatprep.subr.mxu0 0.0
  %1698 = vmatpush1.msra.mxu0 %v1521
  %1699 = vmatprep.subr.mxu0 0.0
  %1700 = vmatpush1.msra.mxu0 %v1520
  %1701 = vmatprep.subr.mxu0 0.0
  %1702 = vmatpush1.msra.mxu0 %v1519
  %1703 = vmatprep.subr.mxu0 0.0
  %1704 = vmatpush1.msra.mxu0 %v1518
  %1705 = vmatprep.subr.mxu0 0.0
  %1706 = vmatpush1.msra.mxu0 %v1517
  %1707 = vmatprep.subr.mxu0 0.0
  %1708 = vmatpush1.msra.mxu0 %v1516
  %1709 = vmatprep.subr.mxu0 0.0
  %1710 = vmatpush1.msra.mxu0 %v1515
  %1711 = vmatprep.subr.mxu0 0.0
  %1712 = vmatpush1.msra.mxu0 %v1514
  %1713 = vmatprep.subr.mxu0 0.0
  %1714 = vmatpush1.msra.mxu0 %v1513
  %1715 = vmatprep.subr.mxu0 0.0
  %1716 = vmatpush1.msra.mxu0 %v1512
  %1717 = vmatprep.subr.mxu0 0.0
  %1718 = vmatpush1.msra.mxu0 %v1511
  %1719 = vmatprep.subr.mxu0 0.0
  %1720 = vmatpush1.msra.mxu0 %v1510
  %1721 = vmatprep.subr.mxu0 0.0
  %1722 = vmatpush2.msra.mxu0 %v1541
  %1723 = vmatprep.subr.mxu0 0.0
  %1724 = vmatpush2.msra.mxu0 %v1540
  %1725 = vmatprep.subr.mxu0 0.0
  %1726 = vmatpush2.msra.mxu0 %v1539
  %1727 = vmatprep.subr.mxu0 0.0
  %1728 = vmatpush2.msra.mxu0 %v1538
  %1729 = vmatprep.subr.mxu0 0.0
  %1730 = vmatpush2.msra.mxu0 %v1537
  %1731 = vmatprep.subr.mxu0 0.0
  %1732 = vmatpush2.msra.mxu0 %v1536
  %1733 = vmatprep.subr.mxu0 0.0
  %1734 = vmatpush2.msra.mxu0 %v1535
  %1735 = vmatprep.subr.mxu0 0.0
  %1736 = vmatpush2.msra.mxu0 %v1534
  %1737 = vmatprep.subr.mxu0 0.0
  %1738 = vmatpush2.msra.mxu0 %v1533
  %1739 = vmatprep.subr.mxu0 0.0
  %1740 = vmatpush2.msra.mxu0 %v1532
  %1741 = vmatprep.subr.mxu0 0.0
  %1742 = vmatpush2.msra.mxu0 %v1531
  %1743 = vmatprep.subr.mxu0 0.0
  %1744 = vmatpush2.msra.mxu0 %v1530
  %1745 = vmatprep.subr.mxu0 0.0
  %1746 = vmatpush2.msra.mxu0 %v1529
  %1747 = vmatprep.subr.mxu0 0.0
  %1748 = vmatpush2.msra.mxu0 %v1528
  %1749 = vmatprep.subr.mxu0 0.0
  %1750 = vmatpush2.msra.mxu0 %v1527
  %1751 = vmatprep.subr.mxu0 0.0
  %1752 = vmatpush2.msra.mxu0 %v1526
  %1753 = vmatprep.mubr.f32.mxu0 %v1445
  %1754 = vmatmul.mubr.f32.gmra.mxu0 %v1444
  %v1755 = vpop.f32.mrf.mxu0
  %v1756 = vadd.f32 %v1686, %v1755
  %v1757 = vpop.f32.mrf.mxu0
  %1758 = vdwg.mxu0
  %v1759 = vadd.f32 %v1756, %v130
  %v1760 = vld [vmem:[%s13] sm:$0x1]
  %v1761 = vld [vmem:[%s15] sm:$0x1]
  %v1762 = vsel %vm133, %v1759, 0.0
  %1763 = vadd.xlane.f32.xlu0 %v1762
  %v1764 = vpop.xlane.xlu0 %1763
  %v1765 = vmul.f32 %v1764, %v137
  %v1766 = vsub.f32 %v1759, %v1765
  %v1767 = vmul.f32 %v1766, %v1766
  %v1768 = vsel %vm133, %v1767, 0.0
  %1769 = vadd.xlane.f32.xlu0 %v1768
  %v1770 = vpop.xlane.xlu0 %1769
  %v1771 = vmul.f32 %v1770, %v137
  %v1772 = vadd.f32 %v1771, 1e-05
  %v1773 = vrsqrt.pop %v1772
  %v1774 = vmul.f32 %v1766, %v1773
  %v1776 = vlaneseq
  %v1777 = vshrl.u32 %v1776, 7
  %v1778 = vsub.s32 0, %v1777
  %v1779 = vrot.slane %v1760, %v1778
  %v1781 = vmul.f32 %v1774, %v1779
  %v1783 = vlaneseq
  %v1784 = vshrl.u32 %v1783, 7
  %v1785 = vsub.s32 0, %v1784
  %v1786 = vrot.slane %v1761, %v1785
  %v1788 = vadd.f32 %v1781, %v1786
  %v1789 = vld [vmem:[%s17] sm:$0xff]
  %v1790 = vld [vmem:[%s17 + $0x8] sm:$0xff]
  %v1791 = vld [vmem:[%s17 + $0x10] sm:$0xff]
  %v1792 = vld [vmem:[%s17 + $0x18] sm:$0xff]
  %v1793 = vld [vmem:[%s19] sm:$0x1]
  %v1795 = vlaneseq
  %v1796 = vshrl.u32 %v1795, 7
  %v1797 = vsub.s32 0, %v1796
  %v1798 = vrot.slane %v1793, %v1797
  %v1801 = vsel %vm133, %v1788, 0
  %1803 = vmatprep.subr.mxu0 0.0
  %1804 = vmatpush1.msra.mxu0 0.0
  %1805 = vmatprep.subr.mxu0 0.0
  %1806 = vmatpush1.msra.mxu0 0.0
  %1807 = vmatprep.subr.mxu0 0.0
  %1808 = vmatpush1.msra.mxu0 0.0
  %1809 = vmatprep.subr.mxu0 0.0
  %1810 = vmatpush1.msra.mxu0 0.0
  %1811 = vmatprep.subr.mxu0 0.0
  %1812 = vmatpush1.msra.mxu0 0.0
  %1813 = vmatprep.subr.mxu0 0.0
  %1814 = vmatpush1.msra.mxu0 0.0
  %1815 = vmatprep.subr.mxu0 0.0
  %1816 = vmatpush1.msra.mxu0 0.0
  %1817 = vmatprep.subr.mxu0 0.0
  %1818 = vmatpush1.msra.mxu0 0.0
  %1819 = vmatprep.subr.mxu0 0.0
  %1820 = vmatpush1.msra.mxu0 0.0
  %1821 = vmatprep.subr.mxu0 0.0
  %1822 = vmatpush1.msra.mxu0 0.0
  %1823 = vmatprep.subr.mxu0 0.0
  %1824 = vmatpush1.msra.mxu0 0.0
  %1825 = vmatprep.subr.mxu0 0.0
  %1826 = vmatpush1.msra.mxu0 0.0
  %1827 = vmatprep.subr.mxu0 0.0
  %1828 = vmatpush1.msra.mxu0 %v1792
  %1829 = vmatprep.subr.mxu0 0.0
  %1830 = vmatpush1.msra.mxu0 %v1791
  %1831 = vmatprep.subr.mxu0 0.0
  %1832 = vmatpush1.msra.mxu0 %v1790
  %1833 = vmatprep.subr.mxu0 0.0
  %1834 = vmatpush1.msra.mxu0 %v1789
  %1835 = vmatprep.subr.mxu0 0.0
  %1836 = vmatpush2.msra.mxu0 0.0
  %1837 = vmatprep.subr.mxu0 0.0
  %1838 = vmatpush2.msra.mxu0 0.0
  %1839 = vmatprep.subr.mxu0 0.0
  %1840 = vmatpush2.msra.mxu0 0.0
  %1841 = vmatprep.subr.mxu0 0.0
  %1842 = vmatpush2.msra.mxu0 0.0
  %1843 = vmatprep.subr.mxu0 0.0
  %1844 = vmatpush2.msra.mxu0 0.0
  %1845 = vmatprep.subr.mxu0 0.0
  %1846 = vmatpush2.msra.mxu0 0.0
  %1847 = vmatprep.subr.mxu0 0.0
  %1848 = vmatpush2.msra.mxu0 0.0
  %1849 = vmatprep.subr.mxu0 0.0
  %1850 = vmatpush2.msra.mxu0 0.0
  %1851 = vmatprep.subr.mxu0 0.0
  %1852 = vmatpush2.msra.mxu0 0.0
  %1853 = vmatprep.subr.mxu0 0.0
  %1854 = vmatpush2.msra.mxu0 0.0
  %1855 = vmatprep.subr.mxu0 0.0
  %1856 = vmatpush2.msra.mxu0 0.0
  %1857 = vmatprep.subr.mxu0 0.0
  %1858 = vmatpush2.msra.mxu0 0.0
  %1859 = vmatprep.subr.mxu0 0.0
  %1860 = vmatpush2.msra.mxu0 0.0
  %1861 = vmatprep.subr.mxu0 0.0
  %1862 = vmatpush2.msra.mxu0 0.0
  %1863 = vmatprep.subr.mxu0 0.0
  %1864 = vmatpush2.msra.mxu0 0.0
  %1865 = vmatprep.subr.mxu0 0.0
  %1866 = vmatpush2.msra.mxu0 0.0
  %1867 = vmatprep.mubr.f32.mxu0 0.0
  %1868 = vmatmul.mubr.f32.gmra.mxu0 %v1801
  %v1869 = vpop.f32.mrf.mxu0
  %v1870 = vadd.f32 %v1798, %v1869
  %v1871 = vpop.f32.mrf.mxu0
  %1872 = vdwg.mxu0
  %v1873 = vmul.f32 %v1870, 0.5
  %v1874 = vmul.f32 %v1870, 0.70710677
  %v1875 = verf.f32.pop %v1874
  %v1876 = vadd.f32 %v1875, 1.0
  %v1877 = vmul.f32 %v1873, %v1876
  %v1878 = vld [vmem:[%s21] sm:$0xff]
  %v1879 = vld [vmem:[%s21 + $0x8] sm:$0xff]
  %v1880 = vld [vmem:[%s21 + $0x10] sm:$0xff]
  %v1881 = vld [vmem:[%s21 + $0x18] sm:$0xff]
  %v1882 = vld [vmem:[%s21 + $0x20] sm:$0xff]
  %v1883 = vld [vmem:[%s21 + $0x28] sm:$0xff]
  %v1884 = vld [vmem:[%s21 + $0x30] sm:$0xff]
  %v1885 = vld [vmem:[%s21 + $0x38] sm:$0xff]
  %v1886 = vld [vmem:[%s23] sm:$0x1]
  %v1888 = vlaneseq
  %v1889 = vshrl.u32 %v1888, 7
  %v1890 = vsub.s32 0, %v1889
  %v1891 = vrot.slane %v1886, %v1890
  %v1894 = vsel %vm936, %v1877, 0
  %1896 = vmatprep.subr.mxu0 0.0
  %1897 = vmatpush1.msra.mxu0 0.0
  %1898 = vmatprep.subr.mxu0 0.0
  %1899 = vmatpush1.msra.mxu0 0.0
  %1900 = vmatprep.subr.mxu0 0.0
  %1901 = vmatpush1.msra.mxu0 0.0
  %1902 = vmatprep.subr.mxu0 0.0
  %1903 = vmatpush1.msra.mxu0 0.0
  %1904 = vmatprep.subr.mxu0 0.0
  %1905 = vmatpush1.msra.mxu0 0.0
  %1906 = vmatprep.subr.mxu0 0.0
  %1907 = vmatpush1.msra.mxu0 0.0
  %1908 = vmatprep.subr.mxu0 0.0
  %1909 = vmatpush1.msra.mxu0 0.0
  %1910 = vmatprep.subr.mxu0 0.0
  %1911 = vmatpush1.msra.mxu0 0.0
  %1912 = vmatprep.subr.mxu0 0.0
  %1913 = vmatpush1.msra.mxu0 %v1885
  %1914 = vmatprep.subr.mxu0 0.0
  %1915 = vmatpush1.msra.mxu0 %v1884
  %1916 = vmatprep.subr.mxu0 0.0
  %1917 = vmatpush1.msra.mxu0 %v1883
  %1918 = vmatprep.subr.mxu0 0.0
  %1919 = vmatpush1.msra.mxu0 %v1882
  %1920 = vmatprep.subr.mxu0 0.0
  %1921 = vmatpush1.msra.mxu0 %v1881
  %1922 = vmatprep.subr.mxu0 0.0
  %1923 = vmatpush1.msra.mxu0 %v1880
  %1924 = vmatprep.subr.mxu0 0.0
  %1925 = vmatpush1.msra.mxu0 %v1879
  %1926 = vmatprep.subr.mxu0 0.0
  %1927 = vmatpush1.msra.mxu0 %v1878
  %1928 = vmatprep.subr.mxu0 0.0
  %1929 = vmatpush2.msra.mxu0 0.0
  %1930 = vmatprep.subr.mxu0 0.0
  %1931 = vmatpush2.msra.mxu0 0.0
  %1932 = vmatprep.subr.mxu0 0.0
  %1933 = vmatpush2.msra.mxu0 0.0
  %1934 = vmatprep.subr.mxu0 0.0
  %1935 = vmatpush2.msra.mxu0 0.0
  %1936 = vmatprep.subr.mxu0 0.0
  %1937 = vmatpush2.msra.mxu0 0.0
  %1938 = vmatprep.subr.mxu0 0.0
  %1939 = vmatpush2.msra.mxu0 0.0
  %1940 = vmatprep.subr.mxu0 0.0
  %1941 = vmatpush2.msra.mxu0 0.0
  %1942 = vmatprep.subr.mxu0 0.0
  %1943 = vmatpush2.msra.mxu0 0.0
  %1944 = vmatprep.subr.mxu0 0.0
  %1945 = vmatpush2.msra.mxu0 0.0
  %1946 = vmatprep.subr.mxu0 0.0
  %1947 = vmatpush2.msra.mxu0 0.0
  %1948 = vmatprep.subr.mxu0 0.0
  %1949 = vmatpush2.msra.mxu0 0.0
  %1950 = vmatprep.subr.mxu0 0.0
  %1951 = vmatpush2.msra.mxu0 0.0
  %1952 = vmatprep.subr.mxu0 0.0
  %1953 = vmatpush2.msra.mxu0 0.0
  %1954 = vmatprep.subr.mxu0 0.0
  %1955 = vmatpush2.msra.mxu0 0.0
  %1956 = vmatprep.subr.mxu0 0.0
  %1957 = vmatpush2.msra.mxu0 0.0
  %1958 = vmatprep.subr.mxu0 0.0
  %1959 = vmatpush2.msra.mxu0 0.0
  %1960 = vmatprep.mubr.f32.mxu0 0.0
  %1961 = vmatmul.mubr.f32.gmra.mxu0 %v1894
  %v1962 = vpop.f32.mrf.mxu0
  %v1963 = vadd.f32 %v1891, %v1962
  %v1964 = vpop.f32.mrf.mxu0
  %1965 = vdwg.mxu0
  %v1966 = vadd.f32 %v1963, %v1759
  %v1967 = vld [vmem:[%s25] sm:$0x1]
  %v1968 = vld [vmem:[%s27] sm:$0x1]
  %v1969 = vsel %vm133, %v1966, 0.0
  %1970 = vadd.xlane.f32.xlu0 %v1969
  %v1971 = vpop.xlane.xlu0 %1970
  %v1972 = vmul.f32 %v1971, %v137
  %v1973 = vsub.f32 %v1966, %v1972
  %v1974 = vmul.f32 %v1973, %v1973
  %v1975 = vsel %vm133, %v1974, 0.0
  %1976 = vadd.xlane.f32.xlu0 %v1975
  %v1977 = vpop.xlane.xlu0 %1976
  %v1978 = vmul.f32 %v1977, %v137
  %v1979 = vadd.f32 %v1978, 1e-05
  %v1980 = vrsqrt.pop %v1979
  %v1981 = vmul.f32 %v1973, %v1980
  %v1983 = vlaneseq
  %v1984 = vshrl.u32 %v1983, 7
  %v1985 = vsub.s32 0, %v1984
  %v1986 = vrot.slane %v1967, %v1985
  %v1988 = vmul.f32 %v1981, %v1986
  %v1990 = vlaneseq
  %v1991 = vshrl.u32 %v1990, 7
  %v1992 = vsub.s32 0, %v1991
  %v1993 = vrot.slane %v1968, %v1992
  %v1995 = vadd.f32 %v1988, %v1993
  %v1996 = vld [vmem:[%s29] sm:$0xff]
  %v1997 = vld [vmem:[%s29 + $0x8] sm:$0xff]
  %v1998 = vld [vmem:[%s29 + $0x10] sm:$0xff]
  %v1999 = vld [vmem:[%s29 + $0x18] sm:$0xff]
  %v2000 = vld [vmem:[%s29 + $0x20] sm:$0xff]
  %v2001 = vld [vmem:[%s29 + $0x28] sm:$0xff]
  %v2002 = vld [vmem:[%s29 + $0x30] sm:$0xff]
  %v2003 = vld [vmem:[%s29 + $0x38] sm:$0xff]
  %v2004 = vld [vmem:[%s29 + $0x40] sm:$0xff]
  %v2005 = vld [vmem:[%s29 + $0x48] sm:$0xff]
  %v2006 = vld [vmem:[%s29 + $0x50] sm:$0xff]
  %v2007 = vld [vmem:[%s29 + $0x58] sm:$0xff]
  %v2008 = vld [vmem:[%s29 + $0x60] sm:$0xff]
  %v2009 = vld [vmem:[%s29 + $0x68] sm:$0xff]
  %v2010 = vld [vmem:[%s29 + $0x70] sm:$0xff]
  %v2011 = vld [vmem:[%s29 + $0x78] sm:$0xff]
  %v2012 = vld [vmem:[%s29 + $0x80] sm:$0xff]
  %v2013 = vld [vmem:[%s29 + $0x88] sm:$0xff]
  %v2014 = vld [vmem:[%s29 + $0x90] sm:$0xff]
  %v2015 = vld [vmem:[%s29 + $0x98] sm:$0xff]
  %v2016 = vld [vmem:[%s29 + $0xa0] sm:$0xff]
  %v2017 = vld [vmem:[%s29 + $0xa8] sm:$0xff]
  %v2018 = vld [vmem:[%s29 + $0xb0] sm:$0xff]
  %v2019 = vld [vmem:[%s29 + $0xb8] sm:$0xff]
  %v2020 = vld [vmem:[%s29 + $0xc0] sm:$0xff]
  %v2021 = vld [vmem:[%s29 + $0xc8] sm:$0xff]
  %v2022 = vld [vmem:[%s29 + $0xd0] sm:$0xff]
  %v2023 = vld [vmem:[%s29 + $0xd8] sm:$0xff]
  %v2024 = vld [vmem:[%s29 + $0xe0] sm:$0xff]
  %v2025 = vld [vmem:[%s29 + $0xe8] sm:$0xff]
  %v2026 = vld [vmem:[%s29 + $0xf0] sm:$0xff]
  %v2027 = vld [vmem:[%s29 + $0xf8] sm:$0xff]
  %v2028 = vld [vmem:[%s29 + $0x100] sm:$0xff]
  %v2029 = vld [vmem:[%s29 + $0x108] sm:$0xff]
  %v2030 = vld [vmem:[%s29 + $0x110] sm:$0xff]
  %v2031 = vld [vmem:[%s29 + $0x118] sm:$0xff]
  %v2032 = vld [vmem:[%s29 + $0x120] sm:$0xff]
  %v2033 = vld [vmem:[%s29 + $0x128] sm:$0xff]
  %v2034 = vld [vmem:[%s29 + $0x130] sm:$0xff]
  %v2035 = vld [vmem:[%s29 + $0x138] sm:$0xff]
  %v2036 = vld [vmem:[%s29 + $0x140] sm:$0xff]
  %v2037 = vld [vmem:[%s29 + $0x148] sm:$0xff]
  %v2038 = vld [vmem:[%s29 + $0x150] sm:$0xff]
  %v2039 = vld [vmem:[%s29 + $0x158] sm:$0xff]
  %v2040 = vld [vmem:[%s29 + $0x160] sm:$0xff]
  %v2041 = vld [vmem:[%s29 + $0x168] sm:$0xff]
  %v2042 = vld [vmem:[%s29 + $0x170] sm:$0xff]
  %v2043 = vld [vmem:[%s29 + $0x178] sm:$0xff]
  %v2044 = vld [vmem:[%s29 + $0x180] sm:$0xff]
  %v2045 = vld [vmem:[%s29 + $0x188] sm:$0xff]
  %v2046 = vld [vmem:[%s29 + $0x190] sm:$0xff]
  %v2047 = vld [vmem:[%s29 + $0x198] sm:$0xff]
  %v2048 = vld [vmem:[%s29 + $0x1a0] sm:$0xff]
  %v2049 = vld [vmem:[%s29 + $0x1a8] sm:$0xff]
  %v2050 = vld [vmem:[%s29 + $0x1b0] sm:$0xff]
  %v2051 = vld [vmem:[%s29 + $0x1b8] sm:$0xff]
  %v2052 = vld [vmem:[%s29 + $0x1c0] sm:$0xff]
  %v2053 = vld [vmem:[%s29 + $0x1c8] sm:$0xff]
  %v2054 = vld [vmem:[%s29 + $0x1d0] sm:$0xff]
  %v2055 = vld [vmem:[%s29 + $0x1d8] sm:$0xff]
  %v2056 = vld [vmem:[%s29 + $0x1e0] sm:$0xff]
  %v2057 = vld [vmem:[%s29 + $0x1e8] sm:$0xff]
  %v2058 = vld [vmem:[%s29 + $0x1f0] sm:$0xff]
  %v2059 = vld [vmem:[%s29 + $0x1f8] sm:$0xff]
  %v2060 = vld [vmem:[%s29 + $0x200] sm:$0xff]
  %v2061 = vld [vmem:[%s29 + $0x208] sm:$0xff]
  %v2062 = vld [vmem:[%s29 + $0x210] sm:$0xff]
  %v2063 = vld [vmem:[%s29 + $0x218] sm:$0xff]
  %v2064 = vld [vmem:[%s29 + $0x220] sm:$0xff]
  %v2065 = vld [vmem:[%s29 + $0x228] sm:$0xff]
  %v2066 = vld [vmem:[%s29 + $0x230] sm:$0xff]
  %v2067 = vld [vmem:[%s29 + $0x238] sm:$0xff]
  %v2069 = vsel %vm133, %v1995, 0
  %2071 = vmatprep.subr.mxu0 0.0
  %2072 = vmatpush1.msra.mxu0 0.0
  %2073 = vmatprep.subr.mxu0 0.0
  %2074 = vmatpush1.msra.mxu0 0.0
  %2075 = vmatprep.subr.mxu0 0.0
  %2076 = vmatpush1.msra.mxu0 0.0
  %2077 = vmatprep.subr.mxu0 0.0
  %2078 = vmatpush1.msra.mxu0 0.0
  %2079 = vmatprep.subr.mxu0 0.0
  %2080 = vmatpush1.msra.mxu0 0.0
  %2081 = vmatprep.subr.mxu0 0.0
  %2082 = vmatpush1.msra.mxu0 0.0
  %2083 = vmatprep.subr.mxu0 0.0
  %2084 = vmatpush1.msra.mxu0 0.0
  %2085 = vmatprep.subr.mxu0 0.0
  %2086 = vmatpush1.msra.mxu0 0.0
  %2087 = vmatprep.subr.mxu0 0.0
  %2088 = vmatpush1.msra.mxu0 0.0
  %2089 = vmatprep.subr.mxu0 0.0
  %2090 = vmatpush1.msra.mxu0 0.0
  %2091 = vmatprep.subr.mxu0 0.0
  %2092 = vmatpush1.msra.mxu0 0.0
  %2093 = vmatprep.subr.mxu0 0.0
  %2094 = vmatpush1.msra.mxu0 0.0
  %2095 = vmatprep.subr.mxu0 %v2051
  %2096 = vmatpush1.msra.mxu0 %v2050
  %2097 = vmatprep.subr.mxu0 %v2033
  %2098 = vmatpush1.msra.mxu0 %v2032
  %2099 = vmatprep.subr.mxu0 %v2015
  %2100 = vmatpush1.msra.mxu0 %v2014
  %2101 = vmatprep.subr.mxu0 %v1997
  %2102 = vmatpush1.msra.mxu0 %v1996
  %2103 = vmatprep.subr.mxu0 0.0
  %2104 = vmatpush2.msra.mxu0 0.0
  %2105 = vmatprep.subr.mxu0 0.0
  %2106 = vmatpush2.msra.mxu0 0.0
  %2107 = vmatprep.subr.mxu0 0.0
  %2108 = vmatpush2.msra.mxu0 0.0
  %2109 = vmatprep.subr.mxu0 0.0
  %2110 = vmatpush2.msra.mxu0 0.0
  %2111 = vmatprep.subr.mxu0 0.0
  %2112 = vmatpush2.msra.mxu0 0.0
  %2113 = vmatprep.subr.mxu0 0.0
  %2114 = vmatpush2.msra.mxu0 0.0
  %2115 = vmatprep.subr.mxu0 0.0
  %2116 = vmatpush2.msra.mxu0 0.0
  %2117 = vmatprep.subr.mxu0 0.0
  %2118 = vmatpush2.msra.mxu0 0.0
  %2119 = vmatprep.subr.mxu0 0.0
  %2120 = vmatpush2.msra.mxu0 0.0
  %2121 = vmatprep.subr.mxu0 0.0
  %2122 = vmatpush2.msra.mxu0 0.0
  %2123 = vmatprep.subr.mxu0 0.0
  %2124 = vmatpush2.msra.mxu0 0.0
  %2125 = vmatprep.subr.mxu0 0.0
  %2126 = vmatpush2.msra.mxu0 0.0
  %2127 = vmatprep.subr.mxu0 0.0
  %2128 = vmatpush2.msra.mxu0 0.0
  %2129 = vmatprep.subr.mxu0 0.0
  %2130 = vmatpush2.msra.mxu0 0.0
  %2131 = vmatprep.subr.mxu0 0.0
  %2132 = vmatpush2.msra.mxu0 0.0
  %2133 = vmatprep.subr.mxu0 0.0
  %2134 = vmatpush2.msra.mxu0 0.0
  %2135 = vmatprep.mubr.f32.mxu0 0.0
  %2136 = vmatmul.mubr.f32.gmra.mxu0 %v2069
  %v2137 = vpop.f32.mrf.mxu0
  %v2138 = vadd.f32 0.0, %v2137
  %v2139 = vpop.f32.mrf.mxu0
  %v2140 = vadd.f32 0.0, %v2139
  %2141 = vdwg.mxu0
  %2142 = vmatprep.subr.mxu0 0.0
  %2143 = vmatpush1.msra.mxu0 0.0
  %2144 = vmatprep.subr.mxu0 0.0
  %2145 = vmatpush1.msra.mxu0 0.0
  %2146 = vmatprep.subr.mxu0 0.0
  %2147 = vmatpush1.msra.mxu0 0.0
  %2148 = vmatprep.subr.mxu0 0.0
  %2149 = vmatpush1.msra.mxu0 0.0
  %2150 = vmatprep.subr.mxu0 0.0
  %2151 = vmatpush1.msra.mxu0 0.0
  %2152 = vmatprep.subr.mxu0 0.0
  %2153 = vmatpush1.msra.mxu0 0.0
  %2154 = vmatprep.subr.mxu0 0.0
  %2155 = vmatpush1.msra.mxu0 0.0
  %2156 = vmatprep.subr.mxu0 0.0
  %2157 = vmatpush1.msra.mxu0 0.0
  %2158 = vmatprep.subr.mxu0 0.0
  %2159 = vmatpush1.msra.mxu0 0.0
  %2160 = vmatprep.subr.mxu0 0.0
  %2161 = vmatpush1.msra.mxu0 0.0
  %2162 = vmatprep.subr.mxu0 0.0
  %2163 = vmatpush1.msra.mxu0 0.0
  %2164 = vmatprep.subr.mxu0 0.0
  %2165 = vmatpush1.msra.mxu0 0.0
  %2166 = vmatprep.subr.mxu0 %v2053
  %2167 = vmatpush1.msra.mxu0 %v2052
  %2168 = vmatprep.subr.mxu0 %v2035
  %2169 = vmatpush1.msra.mxu0 %v2034
  %2170 = vmatprep.subr.mxu0 %v2017
  %2171 = vmatpush1.msra.mxu0 %v2016
  %2172 = vmatprep.subr.mxu0 %v1999
  %2173 = vmatpush1.msra.mxu0 %v1998
  %2174 = vmatprep.subr.mxu0 0.0
  %2175 = vmatpush2.msra.mxu0 0.0
  %2176 = vmatprep.subr.mxu0 0.0
  %2177 = vmatpush2.msra.mxu0 0.0
  %2178 = vmatprep.subr.mxu0 0.0
  %2179 = vmatpush2.msra.mxu0 0.0
  %2180 = vmatprep.subr.mxu0 0.0
  %2181 = vmatpush2.msra.mxu0 0.0
  %2182 = vmatprep.subr.mxu0 0.0
  %2183 = vmatpush2.msra.mxu0 0.0
  %2184 = vmatprep.subr.mxu0 0.0
  %2185 = vmatpush2.msra.mxu0 0.0
  %2186 = vmatprep.subr.mxu0 0.0
  %2187 = vmatpush2.msra.mxu0 0.0
  %2188 = vmatprep.subr.mxu0 0.0
  %2189 = vmatpush2.msra.mxu0 0.0
  %2190 = vmatprep.subr.mxu0 0.0
  %2191 = vmatpush2.msra.mxu0 0.0
  %2192 = vmatprep.subr.mxu0 0.0
  %2193 = vmatpush2.msra.mxu0 0.0
  %2194 = vmatprep.subr.mxu0 0.0
  %2195 = vmatpush2.msra.mxu0 0.0
  %2196 = vmatprep.subr.mxu0 0.0
  %2197 = vmatpush2.msra.mxu0 0.0
  %2198 = vmatprep.subr.mxu0 0.0
  %2199 = vmatpush2.msra.mxu0 0.0
  %2200 = vmatprep.subr.mxu0 0.0
  %2201 = vmatpush2.msra.mxu0 0.0
  %2202 = vmatprep.subr.mxu0 0.0
  %2203 = vmatpush2.msra.mxu0 0.0
  %2204 = vmatprep.subr.mxu0 0.0
  %2205 = vmatpush2.msra.mxu0 0.0
  %2206 = vmatprep.mubr.f32.mxu0 0.0
  %2207 = vmatmul.mubr.f32.gmra.mxu0 %v2069
  %v2208 = vpop.f32.mrf.mxu0
  %v2209 = vadd.f32 0.0, %v2208
  %v2210 = vpop.f32.mrf.mxu0
  %v2211 = vadd.f32 0.0, %v2210
  %2212 = vdwg.mxu0
  %2213 = vmatprep.subr.mxu0 0.0
  %2214 = vmatpush1.msra.mxu0 0.0
  %2215 = vmatprep.subr.mxu0 0.0
  %2216 = vmatpush1.msra.mxu0 0.0
  %2217 = vmatprep.subr.mxu0 0.0
  %2218 = vmatpush1.msra.mxu0 0.0
  %2219 = vmatprep.subr.mxu0 0.0
  %2220 = vmatpush1.msra.mxu0 0.0
  %2221 = vmatprep.subr.mxu0 0.0
  %2222 = vmatpush1.msra.mxu0 0.0
  %2223 = vmatprep.subr.mxu0 0.0
  %2224 = vmatpush1.msra.mxu0 0.0
  %2225 = vmatprep.subr.mxu0 0.0
  %2226 = vmatpush1.msra.mxu0 0.0
  %2227 = vmatprep.subr.mxu0 0.0
  %2228 = vmatpush1.msra.mxu0 0.0
  %2229 = vmatprep.subr.mxu0 0.0
  %2230 = vmatpush1.msra.mxu0 0.0
  %2231 = vmatprep.subr.mxu0 0.0
  %2232 = vmatpush1.msra.mxu0 0.0
  %2233 = vmatprep.subr.mxu0 0.0
  %2234 = vmatpush1.msra.mxu0 0.0
  %2235 = vmatprep.subr.mxu0 0.0
  %2236 = vmatpush1.msra.mxu0 0.0
  %2237 = vmatprep.subr.mxu0 %v2055
  %2238 = vmatpush1.msra.mxu0 %v2054
  %2239 = vmatprep.subr.mxu0 %v2037
  %2240 = vmatpush1.msra.mxu0 %v2036
  %2241 = vmatprep.subr.mxu0 %v2019
  %2242 = vmatpush1.msra.mxu0 %v2018
  %2243 = vmatprep.subr.mxu0 %v2001
  %2244 = vmatpush1.msra.mxu0 %v2000
  %2245 = vmatprep.subr.mxu0 0.0
  %2246 = vmatpush2.msra.mxu0 0.0
  %2247 = vmatprep.subr.mxu0 0.0
  %2248 = vmatpush2.msra.mxu0 0.0
  %2249 = vmatprep.subr.mxu0 0.0
  %2250 = vmatpush2.msra.mxu0 0.0
  %2251 = vmatprep.subr.mxu0 0.0
  %2252 = vmatpush2.msra.mxu0 0.0
  %2253 = vmatprep.subr.mxu0 0.0
  %2254 = vmatpush2.msra.mxu0 0.0
  %2255 = vmatprep.subr.mxu0 0.0
  %2256 = vmatpush2.msra.mxu0 0.0
  %2257 = vmatprep.subr.mxu0 0.0
  %2258 = vmatpush2.msra.mxu0 0.0
  %2259 = vmatprep.subr.mxu0 0.0
  %2260 = vmatpush2.msra.mxu0 0.0
  %2261 = vmatprep.subr.mxu0 0.0
  %2262 = vmatpush2.msra.mxu0 0.0
  %2263 = vmatprep.subr.mxu0 0.0
  %2264 = vmatpush2.msra.mxu0 0.0
  %2265 = vmatprep.subr.mxu0 0.0
  %2266 = vmatpush2.msra.mxu0 0.0
  %2267 = vmatprep.subr.mxu0 0.0
  %2268 = vmatpush2.msra.mxu0 0.0
  %2269 = vmatprep.subr.mxu0 0.0
  %2270 = vmatpush2.msra.mxu0 0.0
  %2271 = vmatprep.subr.mxu0 0.0
  %2272 = vmatpush2.msra.mxu0 0.0
  %2273 = vmatprep.subr.mxu0 0.0
  %2274 = vmatpush2.msra.mxu0 0.0
  %2275 = vmatprep.subr.mxu0 0.0
  %2276 = vmatpush2.msra.mxu0 0.0
  %2277 = vmatprep.mubr.f32.mxu0 0.0
  %2278 = vmatmul.mubr.f32.gmra.mxu0 %v2069
  %v2279 = vpop.f32.mrf.mxu0
  %v2280 = vadd.f32 0.0, %v2279
  %v2281 = vpop.f32.mrf.mxu0
  %v2282 = vadd.f32 0.0, %v2281
  %2283 = vdwg.mxu0
  %2284 = vmatprep.subr.mxu0 0.0
  %2285 = vmatpush1.msra.mxu0 0.0
  %2286 = vmatprep.subr.mxu0 0.0
  %2287 = vmatpush1.msra.mxu0 0.0
  %2288 = vmatprep.subr.mxu0 0.0
  %2289 = vmatpush1.msra.mxu0 0.0
  %2290 = vmatprep.subr.mxu0 0.0
  %2291 = vmatpush1.msra.mxu0 0.0
  %2292 = vmatprep.subr.mxu0 0.0
  %2293 = vmatpush1.msra.mxu0 0.0
  %2294 = vmatprep.subr.mxu0 0.0
  %2295 = vmatpush1.msra.mxu0 0.0
  %2296 = vmatprep.subr.mxu0 0.0
  %2297 = vmatpush1.msra.mxu0 0.0
  %2298 = vmatprep.subr.mxu0 0.0
  %2299 = vmatpush1.msra.mxu0 0.0
  %2300 = vmatprep.subr.mxu0 0.0
  %2301 = vmatpush1.msra.mxu0 0.0
  %2302 = vmatprep.subr.mxu0 0.0
  %2303 = vmatpush1.msra.mxu0 0.0
  %2304 = vmatprep.subr.mxu0 0.0
  %2305 = vmatpush1.msra.mxu0 0.0
  %2306 = vmatprep.subr.mxu0 0.0
  %2307 = vmatpush1.msra.mxu0 0.0
  %2308 = vmatprep.subr.mxu0 %v2057
  %2309 = vmatpush1.msra.mxu0 %v2056
  %2310 = vmatprep.subr.mxu0 %v2039
  %2311 = vmatpush1.msra.mxu0 %v2038
  %2312 = vmatprep.subr.mxu0 %v2021
  %2313 = vmatpush1.msra.mxu0 %v2020
  %2314 = vmatprep.subr.mxu0 %v2003
  %2315 = vmatpush1.msra.mxu0 %v2002
  %2316 = vmatprep.subr.mxu0 0.0
  %2317 = vmatpush2.msra.mxu0 0.0
  %2318 = vmatprep.subr.mxu0 0.0
  %2319 = vmatpush2.msra.mxu0 0.0
  %2320 = vmatprep.subr.mxu0 0.0
  %2321 = vmatpush2.msra.mxu0 0.0
  %2322 = vmatprep.subr.mxu0 0.0
  %2323 = vmatpush2.msra.mxu0 0.0
  %2324 = vmatprep.subr.mxu0 0.0
  %2325 = vmatpush2.msra.mxu0 0.0
  %2326 = vmatprep.subr.mxu0 0.0
  %2327 = vmatpush2.msra.mxu0 0.0
  %2328 = vmatprep.subr.mxu0 0.0
  %2329 = vmatpush2.msra.mxu0 0.0
  %2330 = vmatprep.subr.mxu0 0.0
  %2331 = vmatpush2.msra.mxu0 0.0
  %2332 = vmatprep.subr.mxu0 0.0
  %2333 = vmatpush2.msra.mxu0 0.0
  %2334 = vmatprep.subr.mxu0 0.0
  %2335 = vmatpush2.msra.mxu0 0.0
  %2336 = vmatprep.subr.mxu0 0.0
  %2337 = vmatpush2.msra.mxu0 0.0
  %2338 = vmatprep.subr.mxu0 0.0
  %2339 = vmatpush2.msra.mxu0 0.0
  %2340 = vmatprep.subr.mxu0 0.0
  %2341 = vmatpush2.msra.mxu0 0.0
  %2342 = vmatprep.subr.mxu0 0.0
  %2343 = vmatpush2.msra.mxu0 0.0
  %2344 = vmatprep.subr.mxu0 0.0
  %2345 = vmatpush2.msra.mxu0 0.0
  %2346 = vmatprep.subr.mxu0 0.0
  %2347 = vmatpush2.msra.mxu0 0.0
  %2348 = vmatprep.mubr.f32.mxu0 0.0
  %2349 = vmatmul.mubr.f32.gmra.mxu0 %v2069
  %v2350 = vpop.f32.mrf.mxu0
  %v2351 = vadd.f32 0.0, %v2350
  %v2352 = vpop.f32.mrf.mxu0
  %v2353 = vadd.f32 0.0, %v2352
  %2354 = vdwg.mxu0
  %2355 = vmatprep.subr.mxu0 0.0
  %2356 = vmatpush1.msra.mxu0 0.0
  %2357 = vmatprep.subr.mxu0 0.0
  %2358 = vmatpush1.msra.mxu0 0.0
  %2359 = vmatprep.subr.mxu0 0.0
  %2360 = vmatpush1.msra.mxu0 0.0
  %2361 = vmatprep.subr.mxu0 0.0
  %2362 = vmatpush1.msra.mxu0 0.0
  %2363 = vmatprep.subr.mxu0 0.0
  %2364 = vmatpush1.msra.mxu0 0.0
  %2365 = vmatprep.subr.mxu0 0.0
  %2366 = vmatpush1.msra.mxu0 0.0
  %2367 = vmatprep.subr.mxu0 0.0
  %2368 = vmatpush1.msra.mxu0 0.0
  %2369 = vmatprep.subr.mxu0 0.0
  %2370 = vmatpush1.msra.mxu0 0.0
  %2371 = vmatprep.subr.mxu0 0.0
  %2372 = vmatpush1.msra.mxu0 0.0
  %2373 = vmatprep.subr.mxu0 0.0
  %2374 = vmatpush1.msra.mxu0 0.0
  %2375 = vmatprep.subr.mxu0 0.0
  %2376 = vmatpush1.msra.mxu0 0.0
  %2377 = vmatprep.subr.mxu0 0.0
  %2378 = vmatpush1.msra.mxu0 0.0
  %2379 = vmatprep.subr.mxu0 %v2059
  %2380 = vmatpush1.msra.mxu0 %v2058
  %2381 = vmatprep.subr.mxu0 %v2041
  %2382 = vmatpush1.msra.mxu0 %v2040
  %2383 = vmatprep.subr.mxu0 %v2023
  %2384 = vmatpush1.msra.mxu0 %v2022
  %2385 = vmatprep.subr.mxu0 %v2005
  %2386 = vmatpush1.msra.mxu0 %v2004
  %2387 = vmatprep.subr.mxu0 0.0
  %2388 = vmatpush2.msra.mxu0 0.0
  %2389 = vmatprep.subr.mxu0 0.0
  %2390 = vmatpush2.msra.mxu0 0.0
  %2391 = vmatprep.subr.mxu0 0.0
  %2392 = vmatpush2.msra.mxu0 0.0
  %2393 = vmatprep.subr.mxu0 0.0
  %2394 = vmatpush2.msra.mxu0 0.0
  %2395 = vmatprep.subr.mxu0 0.0
  %2396 = vmatpush2.msra.mxu0 0.0
  %2397 = vmatprep.subr.mxu0 0.0
  %2398 = vmatpush2.msra.mxu0 0.0
  %2399 = vmatprep.subr.mxu0 0.0
  %2400 = vmatpush2.msra.mxu0 0.0
  %2401 = vmatprep.subr.mxu0 0.0
  %2402 = vmatpush2.msra.mxu0 0.0
  %2403 = vmatprep.subr.mxu0 0.0
  %2404 = vmatpush2.msra.mxu0 0.0
  %2405 = vmatprep.subr.mxu0 0.0
  %2406 = vmatpush2.msra.mxu0 0.0
  %2407 = vmatprep.subr.mxu0 0.0
  %2408 = vmatpush2.msra.mxu0 0.0
  %2409 = vmatprep.subr.mxu0 0.0
  %2410 = vmatpush2.msra.mxu0 0.0
  %2411 = vmatprep.subr.mxu0 0.0
  %2412 = vmatpush2.msra.mxu0 0.0
  %2413 = vmatprep.subr.mxu0 0.0
  %2414 = vmatpush2.msra.mxu0 0.0
  %2415 = vmatprep.subr.mxu0 0.0
  %2416 = vmatpush2.msra.mxu0 0.0
  %2417 = vmatprep.subr.mxu0 0.0
  %2418 = vmatpush2.msra.mxu0 0.0
  %2419 = vmatprep.mubr.f32.mxu0 0.0
  %2420 = vmatmul.mubr.f32.gmra.mxu0 %v2069
  %v2421 = vpop.f32.mrf.mxu0
  %v2422 = vadd.f32 0.0, %v2421
  %v2423 = vpop.f32.mrf.mxu0
  %v2424 = vadd.f32 0.0, %v2423
  %2425 = vdwg.mxu0
  %2426 = vmatprep.subr.mxu0 0.0
  %2427 = vmatpush1.msra.mxu0 0.0
  %2428 = vmatprep.subr.mxu0 0.0
  %2429 = vmatpush1.msra.mxu0 0.0
  %2430 = vmatprep.subr.mxu0 0.0
  %2431 = vmatpush1.msra.mxu0 0.0
  %2432 = vmatprep.subr.mxu0 0.0
  %2433 = vmatpush1.msra.mxu0 0.0
  %2434 = vmatprep.subr.mxu0 0.0
  %2435 = vmatpush1.msra.mxu0 0.0
  %2436 = vmatprep.subr.mxu0 0.0
  %2437 = vmatpush1.msra.mxu0 0.0
  %2438 = vmatprep.subr.mxu0 0.0
  %2439 = vmatpush1.msra.mxu0 0.0
  %2440 = vmatprep.subr.mxu0 0.0
  %2441 = vmatpush1.msra.mxu0 0.0
  %2442 = vmatprep.subr.mxu0 0.0
  %2443 = vmatpush1.msra.mxu0 0.0
  %2444 = vmatprep.subr.mxu0 0.0
  %2445 = vmatpush1.msra.mxu0 0.0
  %2446 = vmatprep.subr.mxu0 0.0
  %2447 = vmatpush1.msra.mxu0 0.0
  %2448 = vmatprep.subr.mxu0 0.0
  %2449 = vmatpush1.msra.mxu0 0.0
  %2450 = vmatprep.subr.mxu0 %v2061
  %2451 = vmatpush1.msra.mxu0 %v2060
  %2452 = vmatprep.subr.mxu0 %v2043
  %2453 = vmatpush1.msra.mxu0 %v2042
  %2454 = vmatprep.subr.mxu0 %v2025
  %2455 = vmatpush1.msra.mxu0 %v2024
  %2456 = vmatprep.subr.mxu0 %v2007
  %2457 = vmatpush1.msra.mxu0 %v2006
  %2458 = vmatprep.subr.mxu0 0.0
  %2459 = vmatpush2.msra.mxu0 0.0
  %2460 = vmatprep.subr.mxu0 0.0
  %2461 = vmatpush2.msra.mxu0 0.0
  %2462 = vmatprep.subr.mxu0 0.0
  %2463 = vmatpush2.msra.mxu0 0.0
  %2464 = vmatprep.subr.mxu0 0.0
  %2465 = vmatpush2.msra.mxu0 0.0
  %2466 = vmatprep.subr.mxu0 0.0
  %2467 = vmatpush2.msra.mxu0 0.0
  %2468 = vmatprep.subr.mxu0 0.0
  %2469 = vmatpush2.msra.mxu0 0.0
  %2470 = vmatprep.subr.mxu0 0.0
  %2471 = vmatpush2.msra.mxu0 0.0
  %2472 = vmatprep.subr.mxu0 0.0
  %2473 = vmatpush2.msra.mxu0 0.0
  %2474 = vmatprep.subr.mxu0 0.0
  %2475 = vmatpush2.msra.mxu0 0.0
  %2476 = vmatprep.subr.mxu0 0.0
  %2477 = vmatpush2.msra.mxu0 0.0
  %2478 = vmatprep.subr.mxu0 0.0
  %2479 = vmatpush2.msra.mxu0 0.0
  %2480 = vmatprep.subr.mxu0 0.0
  %2481 = vmatpush2.msra.mxu0 0.0
  %2482 = vmatprep.subr.mxu0 0.0
  %2483 = vmatpush2.msra.mxu0 0.0
  %2484 = vmatprep.subr.mxu0 0.0
  %2485 = vmatpush2.msra.mxu0 0.0
  %2486 = vmatprep.subr.mxu0 0.0
  %2487 = vmatpush2.msra.mxu0 0.0
  %2488 = vmatprep.subr.mxu0 0.0
  %2489 = vmatpush2.msra.mxu0 0.0
  %2490 = vmatprep.mubr.f32.mxu0 0.0
  %2491 = vmatmul.mubr.f32.gmra.mxu0 %v2069
  %v2492 = vpop.f32.mrf.mxu0
  %v2493 = vadd.f32 0.0, %v2492
  %v2494 = vpop.f32.mrf.mxu0
  %v2495 = vadd.f32 0.0, %v2494
  %2496 = vdwg.mxu0
  %2497 = vmatprep.subr.mxu0 0.0
  %2498 = vmatpush1.msra.mxu0 0.0
  %2499 = vmatprep.subr.mxu0 0.0
  %2500 = vmatpush1.msra.mxu0 0.0
  %2501 = vmatprep.subr.mxu0 0.0
  %2502 = vmatpush1.msra.mxu0 0.0
  %2503 = vmatprep.subr.mxu0 0.0
  %2504 = vmatpush1.msra.mxu0 0.0
  %2505 = vmatprep.subr.mxu0 0.0
  %2506 = vmatpush1.msra.mxu0 0.0
  %2507 = vmatprep.subr.mxu0 0.0
  %2508 = vmatpush1.msra.mxu0 0.0
  %2509 = vmatprep.subr.mxu0 0.0
  %2510 = vmatpush1.msra.mxu0 0.0
  %2511 = vmatprep.subr.mxu0 0.0
  %2512 = vmatpush1.msra.mxu0 0.0
  %2513 = vmatprep.subr.mxu0 0.0
  %2514 = vmatpush1.msra.mxu0 0.0
  %2515 = vmatprep.subr.mxu0 0.0
  %2516 = vmatpush1.msra.mxu0 0.0
  %2517 = vmatprep.subr.mxu0 0.0
  %2518 = vmatpush1.msra.mxu0 0.0
  %2519 = vmatprep.subr.mxu0 0.0
  %2520 = vmatpush1.msra.mxu0 0.0
  %2521 = vmatprep.subr.mxu0 %v2063
  %2522 = vmatpush1.msra.mxu0 %v2062
  %2523 = vmatprep.subr.mxu0 %v2045
  %2524 = vmatpush1.msra.mxu0 %v2044
  %2525 = vmatprep.subr.mxu0 %v2027
  %2526 = vmatpush1.msra.mxu0 %v2026
  %2527 = vmatprep.subr.mxu0 %v2009
  %2528 = vmatpush1.msra.mxu0 %v2008
  %2529 = vmatprep.subr.mxu0 0.0
  %2530 = vmatpush2.msra.mxu0 0.0
  %2531 = vmatprep.subr.mxu0 0.0
  %2532 = vmatpush2.msra.mxu0 0.0
  %2533 = vmatprep.subr.mxu0 0.0
  %2534 = vmatpush2.msra.mxu0 0.0
  %2535 = vmatprep.subr.mxu0 0.0
  %2536 = vmatpush2.msra.mxu0 0.0
  %2537 = vmatprep.subr.mxu0 0.0
  %2538 = vmatpush2.msra.mxu0 0.0
  %2539 = vmatprep.subr.mxu0 0.0
  %2540 = vmatpush2.msra.mxu0 0.0
  %2541 = vmatprep.subr.mxu0 0.0
  %2542 = vmatpush2.msra.mxu0 0.0
  %2543 = vmatprep.subr.mxu0 0.0
  %2544 = vmatpush2.msra.mxu0 0.0
  %2545 = vmatprep.subr.mxu0 0.0
  %2546 = vmatpush2.msra.mxu0 0.0
  %2547 = vmatprep.subr.mxu0 0.0
  %2548 = vmatpush2.msra.mxu0 0.0
  %2549 = vmatprep.subr.mxu0 0.0
  %2550 = vmatpush2.msra.mxu0 0.0
  %2551 = vmatprep.subr.mxu0 0.0
  %2552 = vmatpush2.msra.mxu0 0.0
  %2553 = vmatprep.subr.mxu0 0.0
  %2554 = vmatpush2.msra.mxu0 0.0
  %2555 = vmatprep.subr.mxu0 0.0
  %2556 = vmatpush2.msra.mxu0 0.0
  %2557 = vmatprep.subr.mxu0 0.0
  %2558 = vmatpush2.msra.mxu0 0.0
  %2559 = vmatprep.subr.mxu0 0.0
  %2560 = vmatpush2.msra.mxu0 0.0
  %2561 = vmatprep.mubr.f32.mxu0 0.0
  %2562 = vmatmul.mubr.f32.gmra.mxu0 %v2069
  %v2563 = vpop.f32.mrf.mxu0
  %v2564 = vadd.f32 0.0, %v2563
  %v2565 = vpop.f32.mrf.mxu0
  %v2566 = vadd.f32 0.0, %v2565
  %2567 = vdwg.mxu0
  %2568 = vmatprep.subr.mxu0 0.0
  %2569 = vmatpush1.msra.mxu0 0.0
  %2570 = vmatprep.subr.mxu0 0.0
  %2571 = vmatpush1.msra.mxu0 0.0
  %2572 = vmatprep.subr.mxu0 0.0
  %2573 = vmatpush1.msra.mxu0 0.0
  %2574 = vmatprep.subr.mxu0 0.0
  %2575 = vmatpush1.msra.mxu0 0.0
  %2576 = vmatprep.subr.mxu0 0.0
  %2577 = vmatpush1.msra.mxu0 0.0
  %2578 = vmatprep.subr.mxu0 0.0
  %2579 = vmatpush1.msra.mxu0 0.0
  %2580 = vmatprep.subr.mxu0 0.0
  %2581 = vmatpush1.msra.mxu0 0.0
  %2582 = vmatprep.subr.mxu0 0.0
  %2583 = vmatpush1.msra.mxu0 0.0
  %2584 = vmatprep.subr.mxu0 0.0
  %2585 = vmatpush1.msra.mxu0 0.0
  %2586 = vmatprep.subr.mxu0 0.0
  %2587 = vmatpush1.msra.mxu0 0.0
  %2588 = vmatprep.subr.mxu0 0.0
  %2589 = vmatpush1.msra.mxu0 0.0
  %2590 = vmatprep.subr.mxu0 0.0
  %2591 = vmatpush1.msra.mxu0 0.0
  %2592 = vmatprep.subr.mxu0 %v2065
  %2593 = vmatpush1.msra.mxu0 %v2064
  %2594 = vmatprep.subr.mxu0 %v2047
  %2595 = vmatpush1.msra.mxu0 %v2046
  %2596 = vmatprep.subr.mxu0 %v2029
  %2597 = vmatpush1.msra.mxu0 %v2028
  %2598 = vmatprep.subr.mxu0 %v2011
  %2599 = vmatpush1.msra.mxu0 %v2010
  %2600 = vmatprep.subr.mxu0 0.0
  %2601 = vmatpush2.msra.mxu0 0.0
  %2602 = vmatprep.subr.mxu0 0.0
  %2603 = vmatpush2.msra.mxu0 0.0
  %2604 = vmatprep.subr.mxu0 0.0
  %2605 = vmatpush2.msra.mxu0 0.0
  %2606 = vmatprep.subr.mxu0 0.0
  %2607 = vmatpush2.msra.mxu0 0.0
  %2608 = vmatprep.subr.mxu0 0.0
  %2609 = vmatpush2.msra.mxu0 0.0
  %2610 = vmatprep.subr.mxu0 0.0
  %2611 = vmatpush2.msra.mxu0 0.0
  %2612 = vmatprep.subr.mxu0 0.0
  %2613 = vmatpush2.msra.mxu0 0.0
  %2614 = vmatprep.subr.mxu0 0.0
  %2615 = vmatpush2.msra.mxu0 0.0
  %2616 = vmatprep.subr.mxu0 0.0
  %2617 = vmatpush2.msra.mxu0 0.0
  %2618 = vmatprep.subr.mxu0 0.0
  %2619 = vmatpush2.msra.mxu0 0.0
  %2620 = vmatprep.subr.mxu0 0.0
  %2621 = vmatpush2.msra.mxu0 0.0
  %2622 = vmatprep.subr.mxu0 0.0
  %2623 = vmatpush2.msra.mxu0 0.0
  %2624 = vmatprep.subr.mxu0 0.0
  %2625 = vmatpush2.msra.mxu0 0.0
  %2626 = vmatprep.subr.mxu0 0.0
  %2627 = vmatpush2.msra.mxu0 0.0
  %2628 = vmatprep.subr.mxu0 0.0
  %2629 = vmatpush2.msra.mxu0 0.0
  %2630 = vmatprep.subr.mxu0 0.0
  %2631 = vmatpush2.msra.mxu0 0.0
  %2632 = vmatprep.mubr.f32.mxu0 0.0
  %2633 = vmatmul.mubr.f32.gmra.mxu0 %v2069
  %v2634 = vpop.f32.mrf.mxu0
  %v2635 = vadd.f32 0.0, %v2634
  %v2636 = vpop.f32.mrf.mxu0
  %v2637 = vadd.f32 0.0, %v2636
  %2638 = vdwg.mxu0
  %2639 = vmatprep.subr.mxu0 0.0
  %2640 = vmatpush1.msra.mxu0 0.0
  %2641 = vmatprep.subr.mxu0 0.0
  %2642 = vmatpush1.msra.mxu0 0.0
  %2643 = vmatprep.subr.mxu0 0.0
  %2644 = vmatpush1.msra.mxu0 0.0
  %2645 = vmatprep.subr.mxu0 0.0
  %2646 = vmatpush1.msra.mxu0 0.0
  %2647 = vmatprep.subr.mxu0 0.0
  %2648 = vmatpush1.msra.mxu0 0.0
  %2649 = vmatprep.subr.mxu0 0.0
  %2650 = vmatpush1.msra.mxu0 0.0
  %2651 = vmatprep.subr.mxu0 0.0
  %2652 = vmatpush1.msra.mxu0 0.0
  %2653 = vmatprep.subr.mxu0 0.0
  %2654 = vmatpush1.msra.mxu0 0.0
  %2655 = vmatprep.subr.mxu0 0.0
  %2656 = vmatpush1.msra.mxu0 0.0
  %2657 = vmatprep.subr.mxu0 0.0
  %2658 = vmatpush1.msra.mxu0 0.0
  %2659 = vmatprep.subr.mxu0 0.0
  %2660 = vmatpush1.msra.mxu0 0.0
  %2661 = vmatprep.subr.mxu0 0.0
  %2662 = vmatpush1.msra.mxu0 0.0
  %2663 = vmatprep.subr.mxu0 %v2067
  %2664 = vmatpush1.msra.mxu0 %v2066
  %2665 = vmatprep.subr.mxu0 %v2049
  %2666 = vmatpush1.msra.mxu0 %v2048
  %2667 = vmatprep.subr.mxu0 %v2031
  %2668 = vmatpush1.msra.mxu0 %v2030
  %2669 = vmatprep.subr.mxu0 %v2013
  %2670 = vmatpush1.msra.mxu0 %v2012
  %2671 = vmatprep.subr.mxu0 0.0
  %2672 = vmatpush2.msra.mxu0 0.0
  %2673 = vmatprep.subr.mxu0 0.0
  %2674 = vmatpush2.msra.mxu0 0.0
  %2675 = vmatprep.subr.mxu0 0.0
  %2676 = vmatpush2.msra.mxu0 0.0
  %2677 = vmatprep.subr.mxu0 0.0
  %2678 = vmatpush2.msra.mxu0 0.0
  %2679 = vmatprep.subr.mxu0 0.0
  %2680 = vmatpush2.msra.mxu0 0.0
  %2681 = vmatprep.subr.mxu0 0.0
  %2682 = vmatpush2.msra.mxu0 0.0
  %2683 = vmatprep.subr.mxu0 0.0
  %2684 = vmatpush2.msra.mxu0 0.0
  %2685 = vmatprep.subr.mxu0 0.0
  %2686 = vmatpush2.msra.mxu0 0.0
  %2687 = vmatprep.subr.mxu0 0.0
  %2688 = vmatpush2.msra.mxu0 0.0
  %2689 = vmatprep.subr.mxu0 0.0
  %2690 = vmatpush2.msra.mxu0 0.0
  %2691 = vmatprep.subr.mxu0 0.0
  %2692 = vmatpush2.msra.mxu0 0.0
  %2693 = vmatprep.subr.mxu0 0.0
  %2694 = vmatpush2.msra.mxu0 0.0
  %2695 = vmatprep.subr.mxu0 0.0
  %2696 = vmatpush2.msra.mxu0 0.0
  %2697 = vmatprep.subr.mxu0 0.0
  %2698 = vmatpush2.msra.mxu0 0.0
  %2699 = vmatprep.subr.mxu0 0.0
  %2700 = vmatpush2.msra.mxu0 0.0
  %2701 = vmatprep.subr.mxu0 0.0
  %2702 = vmatpush2.msra.mxu0 0.0
  %2703 = vmatprep.mubr.f32.mxu0 0.0
  %2704 = vmatmul.mubr.f32.gmra.mxu0 %v2069
  %v2705 = vpop.f32.mrf.mxu0
  %v2706 = vadd.f32 0.0, %v2705
  %v2707 = vpop.f32.mrf.mxu0
  %v2708 = vadd.f32 0.0, %v2707
  %2709 = vdwg.mxu0
  %2711 = vrot.lane.b32.xlu0 %v2138, 64
  %v2712 = vpop.permute.xlu0 %2711
  %2714 = vrot.lane.b32.xlu0 %v2140, 64
  %v2715 = vpop.permute.xlu0 %2714
  %2717 = vrot.lane.b32.xlu0 %v2209, 64
  %v2718 = vpop.permute.xlu0 %2717
  %2720 = vrot.lane.b32.xlu0 %v2211, 64
  %v2721 = vpop.permute.xlu0 %2720
  %2723 = vrot.lane.b32.xlu0 %v2280, 64
  %v2724 = vpop.permute.xlu0 %2723
  %2726 = vrot.lane.b32.xlu0 %v2282, 64
  %v2727 = vpop.permute.xlu0 %2726
  %2729 = vrot.lane.b32.xlu0 %v2351, 64
  %v2730 = vpop.permute.xlu0 %2729
  %2732 = vrot.lane.b32.xlu0 %v2353, 64
  %v2733 = vpop.permute.xlu0 %2732
  %2735 = vrot.lane.b32.xlu0 %v2422, 64
  %v2736 = vpop.permute.xlu0 %2735
  %2738 = vrot.lane.b32.xlu0 %v2424, 64
  %v2739 = vpop.permute.xlu0 %2738
  %2741 = vrot.lane.b32.xlu0 %v2493, 64
  %v2742 = vpop.permute.xlu0 %2741
  %2744 = vrot.lane.b32.xlu0 %v2495, 64
  %v2745 = vpop.permute.xlu0 %2744
  %2747 = vrot.lane.b32.xlu0 %v2564, 64
  %v2748 = vpop.permute.xlu0 %2747
  %2751 = vrot.lane.b32.xlu0 %v2566, 64
  %v2752 = vpop.permute.xlu0 %2751
  %2755 = vrot.lane.b32.xlu0 %v2635, 64
  %v2756 = vpop.permute.xlu0 %2755
  %2759 = vrot.lane.b32.xlu0 %v2637, 64
  %v2760 = vpop.permute.xlu0 %2759
  %2763 = vrot.lane.b32.xlu0 %v2706, 64
  %v2764 = vpop.permute.xlu0 %2763
  %2767 = vrot.lane.b32.xlu0 %v2708, 64
  %v2768 = vpop.permute.xlu0 %2767
  %v2770 = vsel %vm936, %v2138, 0
  %v2772 = vsel %vm936, %v2712, 0
  %v2774 = vsel %vm936, %v2140, 0
  %v2776 = vsel %vm936, %v2715, 0
  %v2778 = vsel %vm936, %v2209, 0
  %v2780 = vsel %vm936, %v2718, 0
  %v2782 = vsel %vm936, %v2211, 0
  %v2784 = vsel %vm936, %v2721, 0
  %v2786 = vsel %vm936, %v2280, 0
  %v2788 = vsel %vm936, %v2724, 0
  %v2790 = vsel %vm936, %v2282, 0
  %v2792 = vsel %vm936, %v2727, 0
  %v2794 = vsel %vm936, %v2351, 0
  %v2796 = vsel %vm936, %v2730, 0
  %v2798 = vsel %vm936, %v2353, 0
  %v2800 = vsel %vm936, %v2733, 0
  %v2802 = vsel %vm936, %v2422, 0
  %v2804 = vsel %vm936, %v2736, 0
  %v2806 = vsel %vm936, %v2424, 0
  %v2808 = vsel %vm936, %v2739, 0
  %v2810 = vsel %vm936, %v2493, 0
  %v2812 = vsel %vm936, %v2742, 0
  %v2814 = vsel %vm936, %v2495, 0
  %v2816 = vsel %vm936, %v2745, 0
  %2818 = vmatprep.subr.mxu0 0.0
  %2819 = vmatpush1.xpose.msra.mxu0 0.0
  %2820 = vmatprep.subr.mxu0 0.0
  %2821 = vmatpush1.xpose.msra.mxu0 0.0
  %2822 = vmatprep.subr.mxu0 0.0
  %2823 = vmatpush1.xpose.msra.mxu0 0.0
  %2824 = vmatprep.subr.mxu0 0.0
  %2825 = vmatpush1.xpose.msra.mxu0 0.0
  %2826 = vmatprep.subr.mxu0 0.0
  %2827 = vmatpush1.xpose.msra.mxu0 %v2816
  %2828 = vmatprep.subr.mxu0 0.0
  %2829 = vmatpush1.xpose.msra.mxu0 %v2814
  %2830 = vmatprep.subr.mxu0 0.0
  %2831 = vmatpush1.xpose.msra.mxu0 %v2812
  %2832 = vmatprep.subr.mxu0 0.0
  %2833 = vmatpush1.xpose.msra.mxu0 %v2810
  %2834 = vmatprep.subr.mxu0 0.0
  %2835 = vmatpush1.xpose.msra.mxu0 %v2808
  %2836 = vmatprep.subr.mxu0 0.0
  %2837 = vmatpush1.xpose.msra.mxu0 %v2806
  %2838 = vmatprep.subr.mxu0 0.0
  %2839 = vmatpush1.xpose.msra.mxu0 %v2804
  %2840 = vmatprep.subr.mxu0 0.0
  %2841 = vmatpush1.xpose.msra.mxu0 %v2802
  %2842 = vmatprep.subr.mxu0 0.0
  %2843 = vmatpush1.xpose.msra.mxu0 %v2800
  %2844 = vmatprep.subr.mxu0 0.0
  %2845 = vmatpush1.xpose.msra.mxu0 %v2798
  %2846 = vmatprep.subr.mxu0 0.0
  %2847 = vmatpush1.xpose.msra.mxu0 %v2796
  %2848 = vmatprep.subr.mxu0 0.0
  %2849 = vmatpush1.xpose.msra.mxu0 %v2794
  %2850 = vmatprep.subr.mxu0 0.0
  %2851 = vmatpush2.xpose.msra.mxu0 0.0
  %2852 = vmatprep.subr.mxu0 0.0
  %2853 = vmatpush2.xpose.msra.mxu0 0.0
  %2854 = vmatprep.subr.mxu0 0.0
  %2855 = vmatpush2.xpose.msra.mxu0 0.0
  %2856 = vmatprep.subr.mxu0 0.0
  %2857 = vmatpush2.xpose.msra.mxu0 0.0
  %2858 = vmatprep.subr.mxu0 0.0
  %2859 = vmatpush2.xpose.msra.mxu0 0.0
  %2860 = vmatprep.subr.mxu0 0.0
  %2861 = vmatpush2.xpose.msra.mxu0 0.0
  %2862 = vmatprep.subr.mxu0 0.0
  %2863 = vmatpush2.xpose.msra.mxu0 0.0
  %2864 = vmatprep.subr.mxu0 0.0
  %2865 = vmatpush2.xpose.msra.mxu0 0.0
  %2866 = vmatprep.subr.mxu0 0.0
  %2867 = vmatpush2.xpose.msra.mxu0 0.0
  %2868 = vmatprep.subr.mxu0 0.0
  %2869 = vmatpush2.xpose.msra.mxu0 0.0
  %2870 = vmatprep.subr.mxu0 0.0
  %2871 = vmatpush2.xpose.msra.mxu0 0.0
  %2872 = vmatprep.subr.mxu0 0.0
  %2873 = vmatpush2.xpose.msra.mxu0 0.0
  %2874 = vmatprep.subr.mxu0 0.0
  %2875 = vmatpush2.xpose.msra.mxu0 0.0
  %2876 = vmatprep.subr.mxu0 0.0
  %2877 = vmatpush2.xpose.msra.mxu0 0.0
  %2878 = vmatprep.subr.mxu0 0.0
  %2879 = vmatpush2.xpose.msra.mxu0 0.0
  %2880 = vmatprep.subr.mxu0 0.0
  %2881 = vmatpush2.xpose.msra.mxu0 0.0
  %2882 = vmatprep.mubr.f32.mxu0 0.0
  %2883 = vmatmul.mubr.f32.gmra.mxu0 %v2770
  %v2884 = vpop.f32.mrf.mxu0
  %v2885 = vadd.f32 0.0, %v2884
  %v2886 = vpop.f32.mrf.mxu0
  %2887 = vmatprep.mubr.f32.mxu0 0.0
  %2888 = vmatmul.mubr.f32.gmra.mxu0 %v2772
  %v2889 = vpop.f32.mrf.mxu0
  %v2890 = vadd.f32 0.0, %v2889
  %v2891 = vpop.f32.mrf.mxu0
  %2892 = vmatprep.mubr.f32.mxu0 0.0
  %2893 = vmatmul.mubr.f32.gmra.mxu0 %v2774
  %v2894 = vpop.f32.mrf.mxu0
  %v2895 = vadd.f32 0.0, %v2894
  %v2896 = vpop.f32.mrf.mxu0
  %2897 = vmatprep.mubr.f32.mxu0 0.0
  %2898 = vmatmul.mubr.f32.gmra.mxu0 %v2776
  %v2899 = vpop.f32.mrf.mxu0
  %v2900 = vadd.f32 0.0, %v2899
  %v2901 = vpop.f32.mrf.mxu0
  %2902 = vmatprep.mubr.f32.mxu0 0.0
  %2903 = vmatmul.mubr.f32.gmra.mxu0 %v2778
  %v2904 = vpop.f32.mrf.mxu0
  %v2905 = vadd.f32 0.0, %v2904
  %v2906 = vpop.f32.mrf.mxu0
  %2907 = vmatprep.mubr.f32.mxu0 0.0
  %2908 = vmatmul.mubr.f32.gmra.mxu0 %v2780
  %v2909 = vpop.f32.mrf.mxu0
  %v2910 = vadd.f32 0.0, %v2909
  %v2911 = vpop.f32.mrf.mxu0
  %2912 = vmatprep.mubr.f32.mxu0 0.0
  %2913 = vmatmul.mubr.f32.gmra.mxu0 %v2782
  %v2914 = vpop.f32.mrf.mxu0
  %v2915 = vadd.f32 0.0, %v2914
  %v2916 = vpop.f32.mrf.mxu0
  %2917 = vmatprep.mubr.f32.mxu0 0.0
  %2918 = vmatmul.mubr.f32.gmra.mxu0 %v2784
  %v2919 = vpop.f32.mrf.mxu0
  %v2920 = vadd.f32 0.0, %v2919
  %v2921 = vpop.f32.mrf.mxu0
  %2922 = vmatprep.mubr.f32.mxu0 0.0
  %2923 = vmatmul.mubr.f32.gmra.mxu0 %v2786
  %v2924 = vpop.f32.mrf.mxu0
  %v2925 = vadd.f32 0.0, %v2924
  %v2926 = vpop.f32.mrf.mxu0
  %2927 = vmatprep.mubr.f32.mxu0 0.0
  %2928 = vmatmul.mubr.f32.gmra.mxu0 %v2788
  %v2929 = vpop.f32.mrf.mxu0
  %v2930 = vadd.f32 0.0, %v2929
  %v2931 = vpop.f32.mrf.mxu0
  %2932 = vmatprep.mubr.f32.mxu0 0.0
  %2933 = vmatmul.mubr.f32.gmra.mxu0 %v2790
  %v2934 = vpop.f32.mrf.mxu0
  %v2935 = vadd.f32 0.0, %v2934
  %v2936 = vpop.f32.mrf.mxu0
  %2937 = vmatprep.mubr.f32.mxu0 0.0
  %2938 = vmatmul.mubr.f32.gmra.mxu0 %v2792
  %v2939 = vpop.f32.mrf.mxu0
  %v2940 = vadd.f32 0.0, %v2939
  %v2941 = vpop.f32.mrf.mxu0
  %2942 = vdwg.mxu0
  %v2943 = vmul.f32 %v2885, 0.125
  %v2944 = vmul.f32 %v2890, 0.125
  %v2945 = vmul.f32 %v2895, 0.125
  %v2946 = vmul.f32 %v2900, 0.125
  %v2947 = vmul.f32 %v2905, 0.125
  %v2948 = vmul.f32 %v2910, 0.125
  %v2949 = vmul.f32 %v2915, 0.125
  %v2950 = vmul.f32 %v2920, 0.125
  %v2951 = vmul.f32 %v2925, 0.125
  %v2952 = vmul.f32 %v2930, 0.125
  %v2953 = vmul.f32 %v2935, 0.125
  %v2954 = vmul.f32 %v2940, 0.125
  %v2955 = vsel %vm1122, %v2943, -inf
  %2956 = vmax.xlane.f32.xlu0 %v2955
  %v2957 = vpop.xlane.xlu0 %2956
  %v2958 = vsel %vm1122, %v2944, -inf
  %2959 = vmax.xlane.f32.xlu0 %v2958
  %v2960 = vpop.xlane.xlu0 %2959
  %v2961 = vsel %vm1122, %v2945, -inf
  %2962 = vmax.xlane.f32.xlu0 %v2961
  %v2963 = vpop.xlane.xlu0 %2962
  %v2964 = vsel %vm1122, %v2946, -inf
  %2965 = vmax.xlane.f32.xlu0 %v2964
  %v2966 = vpop.xlane.xlu0 %2965
  %v2967 = vsel %vm1122, %v2947, -inf
  %2968 = vmax.xlane.f32.xlu0 %v2967
  %v2969 = vpop.xlane.xlu0 %2968
  %v2970 = vsel %vm1122, %v2948, -inf
  %2971 = vmax.xlane.f32.xlu0 %v2970
  %v2972 = vpop.xlane.xlu0 %2971
  %v2973 = vsel %vm1122, %v2949, -inf
  %2974 = vmax.xlane.f32.xlu0 %v2973
  %v2975 = vpop.xlane.xlu0 %2974
  %v2976 = vsel %vm1122, %v2950, -inf
  %2977 = vmax.xlane.f32.xlu0 %v2976
  %v2978 = vpop.xlane.xlu0 %2977
  %v2979 = vsel %vm1122, %v2951, -inf
  %2980 = vmax.xlane.f32.xlu0 %v2979
  %v2981 = vpop.xlane.xlu0 %2980
  %v2982 = vsel %vm1122, %v2952, -inf
  %2983 = vmax.xlane.f32.xlu0 %v2982
  %v2984 = vpop.xlane.xlu0 %2983
  %v2985 = vsel %vm1122, %v2953, -inf
  %2986 = vmax.xlane.f32.xlu0 %v2985
  %v2987 = vpop.xlane.xlu0 %2986
  %v2988 = vsel %vm1122, %v2954, -inf
  %2989 = vmax.xlane.f32.xlu0 %v2988
  %v2990 = vpop.xlane.xlu0 %2989
  %v2991 = vsub.f32 %v2943, %v2957
  %v2992 = vsub.f32 %v2944, %v2960
  %v2993 = vsub.f32 %v2945, %v2963
  %v2994 = vsub.f32 %v2946, %v2966
  %v2995 = vsub.f32 %v2947, %v2969
  %v2996 = vsub.f32 %v2948, %v2972
  %v2997 = vsub.f32 %v2949, %v2975
  %v2998 = vsub.f32 %v2950, %v2978
  %v2999 = vsub.f32 %v2951, %v2981
  %v3000 = vsub.f32 %v2952, %v2984
  %v3001 = vsub.f32 %v2953, %v2987
  %v3002 = vsub.f32 %v2954, %v2990
  %v3003 = vmul.f32 %v2991, 1.442695
  %v3004 = vpow.pop %v3003
  %v3005 = vmul.f32 %v2992, 1.442695
  %v3006 = vpow.pop %v3005
  %v3007 = vmul.f32 %v2993, 1.442695
  %v3008 = vpow.pop %v3007
  %v3009 = vmul.f32 %v2994, 1.442695
  %v3010 = vpow.pop %v3009
  %v3011 = vmul.f32 %v2995, 1.442695
  %v3012 = vpow.pop %v3011
  %v3013 = vmul.f32 %v2996, 1.442695
  %v3014 = vpow.pop %v3013
  %v3015 = vmul.f32 %v2997, 1.442695
  %v3016 = vpow.pop %v3015
  %v3017 = vmul.f32 %v2998, 1.442695
  %v3018 = vpow.pop %v3017
  %v3019 = vmul.f32 %v2999, 1.442695
  %v3020 = vpow.pop %v3019
  %v3021 = vmul.f32 %v3000, 1.442695
  %v3022 = vpow.pop %v3021
  %v3023 = vmul.f32 %v3001, 1.442695
  %v3024 = vpow.pop %v3023
  %v3025 = vmul.f32 %v3002, 1.442695
  %v3026 = vpow.pop %v3025
  %v3027 = vsel %vm1122, %v3004, 0.0
  %3028 = vadd.xlane.f32.xlu0 %v3027
  %v3029 = vpop.xlane.xlu0 %3028
  %v3030 = vsel %vm1122, %v3006, 0.0
  %3031 = vadd.xlane.f32.xlu0 %v3030
  %v3032 = vpop.xlane.xlu0 %3031
  %v3033 = vsel %vm1122, %v3008, 0.0
  %3034 = vadd.xlane.f32.xlu0 %v3033
  %v3035 = vpop.xlane.xlu0 %3034
  %v3036 = vsel %vm1122, %v3010, 0.0
  %3037 = vadd.xlane.f32.xlu0 %v3036
  %v3038 = vpop.xlane.xlu0 %3037
  %v3039 = vsel %vm1122, %v3012, 0.0
  %3040 = vadd.xlane.f32.xlu0 %v3039
  %v3041 = vpop.xlane.xlu0 %3040
  %v3042 = vsel %vm1122, %v3014, 0.0
  %3043 = vadd.xlane.f32.xlu0 %v3042
  %v3044 = vpop.xlane.xlu0 %3043
  %v3045 = vsel %vm1122, %v3016, 0.0
  %3046 = vadd.xlane.f32.xlu0 %v3045
  %v3047 = vpop.xlane.xlu0 %3046
  %v3048 = vsel %vm1122, %v3018, 0.0
  %3049 = vadd.xlane.f32.xlu0 %v3048
  %v3050 = vpop.xlane.xlu0 %3049
  %v3051 = vsel %vm1122, %v3020, 0.0
  %3052 = vadd.xlane.f32.xlu0 %v3051
  %v3053 = vpop.xlane.xlu0 %3052
  %v3054 = vsel %vm1122, %v3022, 0.0
  %3055 = vadd.xlane.f32.xlu0 %v3054
  %v3056 = vpop.xlane.xlu0 %3055
  %v3057 = vsel %vm1122, %v3024, 0.0
  %3058 = vadd.xlane.f32.xlu0 %v3057
  %v3059 = vpop.xlane.xlu0 %3058
  %v3060 = vsel %vm1122, %v3026, 0.0
  %3061 = vadd.xlane.f32.xlu0 %v3060
  %v3062 = vpop.xlane.xlu0 %3061
  %v3063 = vrcp.pop %v3029
  %v3064 = vrcp.pop %v3032
  %v3065 = vrcp.pop %v3035
  %v3066 = vrcp.pop %v3038
  %v3067 = vrcp.pop %v3041
  %v3068 = vrcp.pop %v3044
  %v3069 = vrcp.pop %v3047
  %v3070 = vrcp.pop %v3050
  %v3071 = vrcp.pop %v3053
  %v3072 = vrcp.pop %v3056
  %v3073 = vrcp.pop %v3059
  %v3074 = vrcp.pop %v3062
  %v3075 = vmul.f32 %v3004, %v3063
  %v3076 = vmul.f32 %v3006, %v3064
  %v3077 = vmul.f32 %v3008, %v3065
  %v3078 = vmul.f32 %v3010, %v3066
  %v3079 = vmul.f32 %v3012, %v3067
  %v3080 = vmul.f32 %v3014, %v3068
  %v3081 = vmul.f32 %v3016, %v3069
  %v3082 = vmul.f32 %v3018, %v3070
  %v3083 = vmul.f32 %v3020, %v3071
  %v3084 = vmul.f32 %v3022, %v3072
  %v3085 = vmul.f32 %v3024, %v3073
  %v3086 = vmul.f32 %v3026, %v3074
  %v3088 = vsel %vm1122, %v3075, 0
  %v3091 = vsel %vm1122, %v3076, 0
  %v3094 = vsel %vm1122, %v3077, 0
  %v3097 = vsel %vm1122, %v3078, 0
  %v3100 = vsel %vm1122, %v3079, 0
  %v3103 = vsel %vm1122, %v3080, 0
  %v3106 = vsel %vm1122, %v3081, 0
  %v3109 = vsel %vm1122, %v3082, 0
  %v3112 = vsel %vm1122, %v3083, 0
  %v3115 = vsel %vm1122, %v3084, 0
  %v3118 = vsel %vm1122, %v3085, 0
  %v3121 = vsel %vm1122, %v3086, 0
  %3123 = vmatprep.subr.mxu0 0.0
  %3124 = vmatpush1.msra.mxu0 0.0
  %3125 = vmatprep.subr.mxu0 0.0
  %3126 = vmatpush1.msra.mxu0 0.0
  %3127 = vmatprep.subr.mxu0 0.0
  %3128 = vmatpush1.msra.mxu0 0.0
  %3129 = vmatprep.subr.mxu0 0.0
  %3130 = vmatpush1.msra.mxu0 0.0
  %3131 = vmatprep.subr.mxu0 0.0
  %3132 = vmatpush1.msra.mxu0 %v2768
  %3133 = vmatprep.subr.mxu0 0.0
  %3134 = vmatpush1.msra.mxu0 %v2708
  %3135 = vmatprep.subr.mxu0 0.0
  %3136 = vmatpush1.msra.mxu0 %v2764
  %3137 = vmatprep.subr.mxu0 0.0
  %3138 = vmatpush1.msra.mxu0 %v2706
  %3139 = vmatprep.subr.mxu0 0.0
  %3140 = vmatpush1.msra.mxu0 %v2760
  %3141 = vmatprep.subr.mxu0 0.0
  %3142 = vmatpush1.msra.mxu0 %v2637
  %3143 = vmatprep.subr.mxu0 0.0
  %3144 = vmatpush1.msra.mxu0 %v2756
  %3145 = vmatprep.subr.mxu0 0.0
  %3146 = vmatpush1.msra.mxu0 %v2635
  %3147 = vmatprep.subr.mxu0 0.0
  %3148 = vmatpush1.msra.mxu0 %v2752
  %3149 = vmatprep.subr.mxu0 0.0
  %3150 = vmatpush1.msra.mxu0 %v2566
  %3151 = vmatprep.subr.mxu0 0.0
  %3152 = vmatpush1.msra.mxu0 %v2748
  %3153 = vmatprep.subr.mxu0 0.0
  %3154 = vmatpush1.msra.mxu0 %v2564
  %3155 = vmatprep.subr.mxu0 0.0
  %3156 = vmatpush2.msra.mxu0 0.0
  %3157 = vmatprep.subr.mxu0 0.0
  %3158 = vmatpush2.msra.mxu0 0.0
  %3159 = vmatprep.subr.mxu0 0.0
  %3160 = vmatpush2.msra.mxu0 0.0
  %3161 = vmatprep.subr.mxu0 0.0
  %3162 = vmatpush2.msra.mxu0 0.0
  %3163 = vmatprep.subr.mxu0 0.0
  %3164 = vmatpush2.msra.mxu0 0.0
  %3165 = vmatprep.subr.mxu0 0.0
  %3166 = vmatpush2.msra.mxu0 0.0
  %3167 = vmatprep.subr.mxu0 0.0
  %3168 = vmatpush2.msra.mxu0 0.0
  %3169 = vmatprep.subr.mxu0 0.0
  %3170 = vmatpush2.msra.mxu0 0.0
  %3171 = vmatprep.subr.mxu0 0.0
  %3172 = vmatpush2.msra.mxu0 0.0
  %3173 = vmatprep.subr.mxu0 0.0
  %3174 = vmatpush2.msra.mxu0 0.0
  %3175 = vmatprep.subr.mxu0 0.0
  %3176 = vmatpush2.msra.mxu0 0.0
  %3177 = vmatprep.subr.mxu0 0.0
  %3178 = vmatpush2.msra.mxu0 0.0
  %3179 = vmatprep.subr.mxu0 0.0
  %3180 = vmatpush2.msra.mxu0 0.0
  %3181 = vmatprep.subr.mxu0 0.0
  %3182 = vmatpush2.msra.mxu0 0.0
  %3183 = vmatprep.subr.mxu0 0.0
  %3184 = vmatpush2.msra.mxu0 0.0
  %3185 = vmatprep.subr.mxu0 0.0
  %3186 = vmatpush2.msra.mxu0 0.0
  %3187 = vmatprep.mubr.f32.mxu0 0.0
  %3188 = vmatmul.mubr.f32.gmra.mxu0 %v3088
  %v3189 = vpop.f32.mrf.mxu0
  %v3190 = vadd.f32 0.0, %v3189
  %v3191 = vpop.f32.mrf.mxu0
  %3192 = vmatprep.mubr.f32.mxu0 0.0
  %3193 = vmatmul.mubr.f32.gmra.mxu0 %v3091
  %v3194 = vpop.f32.mrf.mxu0
  %v3195 = vadd.f32 0.0, %v3194
  %v3196 = vpop.f32.mrf.mxu0
  %3197 = vmatprep.mubr.f32.mxu0 0.0
  %3198 = vmatmul.mubr.f32.gmra.mxu0 %v3094
  %v3199 = vpop.f32.mrf.mxu0
  %v3200 = vadd.f32 0.0, %v3199
  %v3201 = vpop.f32.mrf.mxu0
  %3202 = vmatprep.mubr.f32.mxu0 0.0
  %3203 = vmatmul.mubr.f32.gmra.mxu0 %v3097
  %v3204 = vpop.f32.mrf.mxu0
  %v3205 = vadd.f32 0.0, %v3204
  %v3206 = vpop.f32.mrf.mxu0
  %3207 = vmatprep.mubr.f32.mxu0 0.0
  %3208 = vmatmul.mubr.f32.gmra.mxu0 %v3100
  %v3209 = vpop.f32.mrf.mxu0
  %v3210 = vadd.f32 0.0, %v3209
  %v3211 = vpop.f32.mrf.mxu0
  %3212 = vmatprep.mubr.f32.mxu0 0.0
  %3213 = vmatmul.mubr.f32.gmra.mxu0 %v3103
  %v3214 = vpop.f32.mrf.mxu0
  %v3215 = vadd.f32 0.0, %v3214
  %v3216 = vpop.f32.mrf.mxu0
  %3217 = vmatprep.mubr.f32.mxu0 0.0
  %3218 = vmatmul.mubr.f32.gmra.mxu0 %v3106
  %v3219 = vpop.f32.mrf.mxu0
  %v3220 = vadd.f32 0.0, %v3219
  %v3221 = vpop.f32.mrf.mxu0
  %3222 = vmatprep.mubr.f32.mxu0 0.0
  %3223 = vmatmul.mubr.f32.gmra.mxu0 %v3109
  %v3224 = vpop.f32.mrf.mxu0
  %v3225 = vadd.f32 0.0, %v3224
  %v3226 = vpop.f32.mrf.mxu0
  %3227 = vmatprep.mubr.f32.mxu0 0.0
  %3228 = vmatmul.mubr.f32.gmra.mxu0 %v3112
  %v3229 = vpop.f32.mrf.mxu0
  %v3230 = vadd.f32 0.0, %v3229
  %v3231 = vpop.f32.mrf.mxu0
  %3232 = vmatprep.mubr.f32.mxu0 0.0
  %3233 = vmatmul.mubr.f32.gmra.mxu0 %v3115
  %v3234 = vpop.f32.mrf.mxu0
  %v3235 = vadd.f32 0.0, %v3234
  %v3236 = vpop.f32.mrf.mxu0
  %3237 = vmatprep.mubr.f32.mxu0 0.0
  %3238 = vmatmul.mubr.f32.gmra.mxu0 %v3118
  %v3239 = vpop.f32.mrf.mxu0
  %v3240 = vadd.f32 0.0, %v3239
  %v3241 = vpop.f32.mrf.mxu0
  %3242 = vmatprep.mubr.f32.mxu0 0.0
  %3243 = vmatmul.mubr.f32.gmra.mxu0 %v3121
  %v3244 = vpop.f32.mrf.mxu0
  %v3245 = vadd.f32 0.0, %v3244
  %v3246 = vpop.f32.mrf.mxu0
  %3247 = vdwg.mxu0
  %3249 = vrot.lane.b32.xlu0 %v3195, 64
  %v3250 = vpop.permute.xlu0 %3249
  %3253 = vrot.lane.b32.xlu0 %v3205, 64
  %v3254 = vpop.permute.xlu0 %3253
  %3257 = vrot.lane.b32.xlu0 %v3215, 64
  %v3258 = vpop.permute.xlu0 %3257
  %3261 = vrot.lane.b32.xlu0 %v3225, 64
  %v3262 = vpop.permute.xlu0 %3261
  %3265 = vrot.lane.b32.xlu0 %v3235, 64
  %v3266 = vpop.permute.xlu0 %3265
  %3269 = vrot.lane.b32.xlu0 %v3245, 64
  %v3270 = vpop.permute.xlu0 %3269
  %v3272 = vsel %vm936, %v3190, %v3250
  %v3273 = vsel %vm936, %v3200, %v3254
  %v3274 = vsel %vm936, %v3210, %v3258
  %v3275 = vsel %vm936, %v3220, %v3262
  %v3276 = vsel %vm936, %v3230, %v3266
  %v3277 = vsel %vm936, %v3240, %v3270
  %v3278 = vld [vmem:[%s31] sm:$0xff]
  %v3279 = vld [vmem:[%s31 + $0x8] sm:$0xff]
  %v3280 = vld [vmem:[%s31 + $0x10] sm:$0xff]
  %v3281 = vld [vmem:[%s31 + $0x18] sm:$0xff]
  %v3282 = vld [vmem:[%s31 + $0x20] sm:$0xff]
  %v3283 = vld [vmem:[%s31 + $0x28] sm:$0xff]
  %v3284 = vld [vmem:[%s31 + $0x30] sm:$0xff]
  %v3285 = vld [vmem:[%s31 + $0x38] sm:$0xff]
  %v3286 = vld [vmem:[%s31 + $0x40] sm:$0xff]
  %v3287 = vld [vmem:[%s31 + $0x48] sm:$0xff]
  %v3288 = vld [vmem:[%s31 + $0x50] sm:$0xff]
  %v3289 = vld [vmem:[%s31 + $0x58] sm:$0xff]
  %v3290 = vld [vmem:[%s31 + $0x60] sm:$0xff]
  %v3291 = vld [vmem:[%s31 + $0x68] sm:$0xff]
  %v3292 = vld [vmem:[%s31 + $0x70] sm:$0xff]
  %v3293 = vld [vmem:[%s31 + $0x78] sm:$0xff]
  %v3294 = vld [vmem:[%s31 + $0x80] sm:$0xff]
  %v3295 = vld [vmem:[%s31 + $0x88] sm:$0xff]
  %v3296 = vld [vmem:[%s31 + $0x90] sm:$0xff]
  %v3297 = vld [vmem:[%s31 + $0x98] sm:$0xff]
  %v3298 = vld [vmem:[%s31 + $0xa0] sm:$0xff]
  %v3299 = vld [vmem:[%s31 + $0xa8] sm:$0xff]
  %v3300 = vld [vmem:[%s31 + $0xb0] sm:$0xff]
  %v3301 = vld [vmem:[%s31 + $0xb8] sm:$0xff]
  %v3302 = vld [vmem:[%s31 + $0xc0] sm:$0xff]
  %v3303 = vld [vmem:[%s31 + $0xc8] sm:$0xff]
  %v3304 = vld [vmem:[%s31 + $0xd0] sm:$0xff]
  %v3305 = vld [vmem:[%s31 + $0xd8] sm:$0xff]
  %v3306 = vld [vmem:[%s31 + $0xe0] sm:$0xff]
  %v3307 = vld [vmem:[%s31 + $0xe8] sm:$0xff]
  %v3308 = vld [vmem:[%s31 + $0xf0] sm:$0xff]
  %v3309 = vld [vmem:[%s31 + $0xf8] sm:$0xff]
  %v3310 = vld [vmem:[%s31 + $0x100] sm:$0xff]
  %v3311 = vld [vmem:[%s31 + $0x108] sm:$0xff]
  %v3312 = vld [vmem:[%s31 + $0x110] sm:$0xff]
  %v3313 = vld [vmem:[%s31 + $0x118] sm:$0xff]
  %v3314 = vld [vmem:[%s31 + $0x120] sm:$0xff]
  %v3315 = vld [vmem:[%s31 + $0x128] sm:$0xff]
  %v3316 = vld [vmem:[%s31 + $0x130] sm:$0xff]
  %v3317 = vld [vmem:[%s31 + $0x138] sm:$0xff]
  %v3318 = vld [vmem:[%s31 + $0x140] sm:$0xff]
  %v3319 = vld [vmem:[%s31 + $0x148] sm:$0xff]
  %v3320 = vld [vmem:[%s31 + $0x150] sm:$0xff]
  %v3321 = vld [vmem:[%s31 + $0x158] sm:$0xff]
  %v3322 = vld [vmem:[%s31 + $0x160] sm:$0xff]
  %v3323 = vld [vmem:[%s31 + $0x168] sm:$0xff]
  %v3324 = vld [vmem:[%s31 + $0x170] sm:$0xff]
  %v3325 = vld [vmem:[%s31 + $0x178] sm:$0xff]
  %v3326 = vld [vmem:[%s31 + $0x180] sm:$0xff]
  %v3327 = vld [vmem:[%s31 + $0x188] sm:$0xff]
  %v3328 = vld [vmem:[%s31 + $0x190] sm:$0xff]
  %v3329 = vld [vmem:[%s31 + $0x198] sm:$0xff]
  %v3330 = vld [vmem:[%s31 + $0x1a0] sm:$0xff]
  %v3331 = vld [vmem:[%s31 + $0x1a8] sm:$0xff]
  %v3332 = vld [vmem:[%s31 + $0x1b0] sm:$0xff]
  %v3333 = vld [vmem:[%s31 + $0x1b8] sm:$0xff]
  %v3334 = vld [vmem:[%s31 + $0x1c0] sm:$0xff]
  %v3335 = vld [vmem:[%s31 + $0x1c8] sm:$0xff]
  %v3336 = vld [vmem:[%s31 + $0x1d0] sm:$0xff]
  %v3337 = vld [vmem:[%s31 + $0x1d8] sm:$0xff]
  %v3338 = vld [vmem:[%s31 + $0x1e0] sm:$0xff]
  %v3339 = vld [vmem:[%s31 + $0x1e8] sm:$0xff]
  %v3340 = vld [vmem:[%s31 + $0x1f0] sm:$0xff]
  %v3341 = vld [vmem:[%s31 + $0x1f8] sm:$0xff]
  %v3342 = vld [vmem:[%s31 + $0x200] sm:$0xff]
  %v3343 = vld [vmem:[%s31 + $0x208] sm:$0xff]
  %v3344 = vld [vmem:[%s31 + $0x210] sm:$0xff]
  %v3345 = vld [vmem:[%s31 + $0x218] sm:$0xff]
  %v3346 = vld [vmem:[%s31 + $0x220] sm:$0xff]
  %v3347 = vld [vmem:[%s31 + $0x228] sm:$0xff]
  %v3348 = vld [vmem:[%s31 + $0x230] sm:$0xff]
  %v3349 = vld [vmem:[%s31 + $0x238] sm:$0xff]
  %v3350 = vld [vmem:[%s31 + $0x240] sm:$0xff]
  %v3351 = vld [vmem:[%s31 + $0x248] sm:$0xff]
  %v3352 = vld [vmem:[%s31 + $0x250] sm:$0xff]
  %v3353 = vld [vmem:[%s31 + $0x258] sm:$0xff]
  %v3354 = vld [vmem:[%s31 + $0x260] sm:$0xff]
  %v3355 = vld [vmem:[%s31 + $0x268] sm:$0xff]
  %v3356 = vld [vmem:[%s31 + $0x270] sm:$0xff]
  %v3357 = vld [vmem:[%s31 + $0x278] sm:$0xff]
  %v3358 = vld [vmem:[%s31 + $0x280] sm:$0xff]
  %v3359 = vld [vmem:[%s31 + $0x288] sm:$0xff]
  %v3360 = vld [vmem:[%s31 + $0x290] sm:$0xff]
  %v3361 = vld [vmem:[%s31 + $0x298] sm:$0xff]
  %v3362 = vld [vmem:[%s31 + $0x2a0] sm:$0xff]
  %v3363 = vld [vmem:[%s31 + $0x2a8] sm:$0xff]
  %v3364 = vld [vmem:[%s31 + $0x2b0] sm:$0xff]
  %v3365 = vld [vmem:[%s31 + $0x2b8] sm:$0xff]
  %v3366 = vld [vmem:[%s31 + $0x2c0] sm:$0xff]
  %v3367 = vld [vmem:[%s31 + $0x2c8] sm:$0xff]
  %v3368 = vld [vmem:[%s31 + $0x2d0] sm:$0xff]
  %v3369 = vld [vmem:[%s31 + $0x2d8] sm:$0xff]
  %v3370 = vld [vmem:[%s31 + $0x2e0] sm:$0xff]
  %v3371 = vld [vmem:[%s31 + $0x2e8] sm:$0xff]
  %v3372 = vld [vmem:[%s31 + $0x2f0] sm:$0xff]
  %v3373 = vld [vmem:[%s31 + $0x2f8] sm:$0xff]
  %v3374 = vld [vmem:[%s33] sm:$0x1]
  %v3376 = vlaneseq
  %v3377 = vshrl.u32 %v3376, 7
  %v3378 = vsub.s32 0, %v3377
  %v3379 = vrot.slane %v3374, %v3378
  %3381 = vmatprep.subr.mxu0 0.0
  %3382 = vmatpush1.msra.mxu0 %v3293
  %3383 = vmatprep.subr.mxu0 0.0
  %3384 = vmatpush1.msra.mxu0 %v3292
  %3385 = vmatprep.subr.mxu0 0.0
  %3386 = vmatpush1.msra.mxu0 %v3291
  %3387 = vmatprep.subr.mxu0 0.0
  %3388 = vmatpush1.msra.mxu0 %v3290
  %3389 = vmatprep.subr.mxu0 0.0
  %3390 = vmatpush1.msra.mxu0 %v3289
  %3391 = vmatprep.subr.mxu0 0.0
  %3392 = vmatpush1.msra.mxu0 %v3288
  %3393 = vmatprep.subr.mxu0 0.0
  %3394 = vmatpush1.msra.mxu0 %v3287
  %3395 = vmatprep.subr.mxu0 0.0
  %3396 = vmatpush1.msra.mxu0 %v3286
  %3397 = vmatprep.subr.mxu0 0.0
  %3398 = vmatpush1.msra.mxu0 %v3285
  %3399 = vmatprep.subr.mxu0 0.0
  %3400 = vmatpush1.msra.mxu0 %v3284
  %3401 = vmatprep.subr.mxu0 0.0
  %3402 = vmatpush1.msra.mxu0 %v3283
  %3403 = vmatprep.subr.mxu0 0.0
  %3404 = vmatpush1.msra.mxu0 %v3282
  %3405 = vmatprep.subr.mxu0 0.0
  %3406 = vmatpush1.msra.mxu0 %v3281
  %3407 = vmatprep.subr.mxu0 0.0
  %3408 = vmatpush1.msra.mxu0 %v3280
  %3409 = vmatprep.subr.mxu0 0.0
  %3410 = vmatpush1.msra.mxu0 %v3279
  %3411 = vmatprep.subr.mxu0 0.0
  %3412 = vmatpush1.msra.mxu0 %v3278
  %3413 = vmatprep.subr.mxu0 0.0
  %3414 = vmatpush2.msra.mxu0 %v3309
  %3415 = vmatprep.subr.mxu0 0.0
  %3416 = vmatpush2.msra.mxu0 %v3308
  %3417 = vmatprep.subr.mxu0 0.0
  %3418 = vmatpush2.msra.mxu0 %v3307
  %3419 = vmatprep.subr.mxu0 0.0
  %3420 = vmatpush2.msra.mxu0 %v3306
  %3421 = vmatprep.subr.mxu0 0.0
  %3422 = vmatpush2.msra.mxu0 %v3305
  %3423 = vmatprep.subr.mxu0 0.0
  %3424 = vmatpush2.msra.mxu0 %v3304
  %3425 = vmatprep.subr.mxu0 0.0
  %3426 = vmatpush2.msra.mxu0 %v3303
  %3427 = vmatprep.subr.mxu0 0.0
  %3428 = vmatpush2.msra.mxu0 %v3302
  %3429 = vmatprep.subr.mxu0 0.0
  %3430 = vmatpush2.msra.mxu0 %v3301
  %3431 = vmatprep.subr.mxu0 0.0
  %3432 = vmatpush2.msra.mxu0 %v3300
  %3433 = vmatprep.subr.mxu0 0.0
  %3434 = vmatpush2.msra.mxu0 %v3299
  %3435 = vmatprep.subr.mxu0 0.0
  %3436 = vmatpush2.msra.mxu0 %v3298
  %3437 = vmatprep.subr.mxu0 0.0
  %3438 = vmatpush2.msra.mxu0 %v3297
  %3439 = vmatprep.subr.mxu0 0.0
  %3440 = vmatpush2.msra.mxu0 %v3296
  %3441 = vmatprep.subr.mxu0 0.0
  %3442 = vmatpush2.msra.mxu0 %v3295
  %3443 = vmatprep.subr.mxu0 0.0
  %3444 = vmatpush2.msra.mxu0 %v3294
  %3445 = vmatprep.mubr.f32.mxu0 %v3273
  %3446 = vmatmul.mubr.f32.gmra.mxu0 %v3272
  %v3447 = vpop.f32.mrf.mxu0
  %v3448 = vadd.f32 %v3379, %v3447
  %v3449 = vpop.f32.mrf.mxu0
  %3450 = vdwg.mxu0
  %3451 = vmatprep.subr.mxu0 0.0
  %3452 = vmatpush1.msra.mxu0 %v3325
  %3453 = vmatprep.subr.mxu0 0.0
  %3454 = vmatpush1.msra.mxu0 %v3324
  %3455 = vmatprep.subr.mxu0 0.0
  %3456 = vmatpush1.msra.mxu0 %v3323
  %3457 = vmatprep.subr.mxu0 0.0
  %3458 = vmatpush1.msra.mxu0 %v3322
  %3459 = vmatprep.subr.mxu0 0.0
  %3460 = vmatpush1.msra.mxu0 %v3321
  %3461 = vmatprep.subr.mxu0 0.0
  %3462 = vmatpush1.msra.mxu0 %v3320
  %3463 = vmatprep.subr.mxu0 0.0
  %3464 = vmatpush1.msra.mxu0 %v3319
  %3465 = vmatprep.subr.mxu0 0.0
  %3466 = vmatpush1.msra.mxu0 %v3318
  %3467 = vmatprep.subr.mxu0 0.0
  %3468 = vmatpush1.msra.mxu0 %v3317
  %3469 = vmatprep.subr.mxu0 0.0
  %3470 = vmatpush1.msra.mxu0 %v3316
  %3471 = vmatprep.subr.mxu0 0.0
  %3472 = vmatpush1.msra.mxu0 %v3315
  %3473 = vmatprep.subr.mxu0 0.0
  %3474 = vmatpush1.msra.mxu0 %v3314
  %3475 = vmatprep.subr.mxu0 0.0
  %3476 = vmatpush1.msra.mxu0 %v3313
  %3477 = vmatprep.subr.mxu0 0.0
  %3478 = vmatpush1.msra.mxu0 %v3312
  %3479 = vmatprep.subr.mxu0 0.0
  %3480 = vmatpush1.msra.mxu0 %v3311
  %3481 = vmatprep.subr.mxu0 0.0
  %3482 = vmatpush1.msra.mxu0 %v3310
  %3483 = vmatprep.subr.mxu0 0.0
  %3484 = vmatpush2.msra.mxu0 %v3341
  %3485 = vmatprep.subr.mxu0 0.0
  %3486 = vmatpush2.msra.mxu0 %v3340
  %3487 = vmatprep.subr.mxu0 0.0
  %3488 = vmatpush2.msra.mxu0 %v3339
  %3489 = vmatprep.subr.mxu0 0.0
  %3490 = vmatpush2.msra.mxu0 %v3338
  %3491 = vmatprep.subr.mxu0 0.0
  %3492 = vmatpush2.msra.mxu0 %v3337
  %3493 = vmatprep.subr.mxu0 0.0
  %3494 = vmatpush2.msra.mxu0 %v3336
  %3495 = vmatprep.subr.mxu0 0.0
  %3496 = vmatpush2.msra.mxu0 %v3335
  %3497 = vmatprep.subr.mxu0 0.0
  %3498 = vmatpush2.msra.mxu0 %v3334
  %3499 = vmatprep.subr.mxu0 0.0
  %3500 = vmatpush2.msra.mxu0 %v3333
  %3501 = vmatprep.subr.mxu0 0.0
  %3502 = vmatpush2.msra.mxu0 %v3332
  %3503 = vmatprep.subr.mxu0 0.0
  %3504 = vmatpush2.msra.mxu0 %v3331
  %3505 = vmatprep.subr.mxu0 0.0
  %3506 = vmatpush2.msra.mxu0 %v3330
  %3507 = vmatprep.subr.mxu0 0.0
  %3508 = vmatpush2.msra.mxu0 %v3329
  %3509 = vmatprep.subr.mxu0 0.0
  %3510 = vmatpush2.msra.mxu0 %v3328
  %3511 = vmatprep.subr.mxu0 0.0
  %3512 = vmatpush2.msra.mxu0 %v3327
  %3513 = vmatprep.subr.mxu0 0.0
  %3514 = vmatpush2.msra.mxu0 %v3326
  %3515 = vmatprep.mubr.f32.mxu0 %v3275
  %3516 = vmatmul.mubr.f32.gmra.mxu0 %v3274
  %v3517 = vpop.f32.mrf.mxu0
  %v3518 = vadd.f32 %v3448, %v3517
  %v3519 = vpop.f32.mrf.mxu0
  %3520 = vdwg.mxu0
  %3521 = vmatprep.subr.mxu0 0.0
  %3522 = vmatpush1.msra.mxu0 %v3357
  %3523 = vmatprep.subr.mxu0 0.0
  %3524 = vmatpush1.msra.mxu0 %v3356
  %3525 = vmatprep.subr.mxu0 0.0
  %3526 = vmatpush1.msra.mxu0 %v3355
  %3527 = vmatprep.subr.mxu0 0.0
  %3528 = vmatpush1.msra.mxu0 %v3354
  %3529 = vmatprep.subr.mxu0 0.0
  %3530 = vmatpush1.msra.mxu0 %v3353
  %3531 = vmatprep.subr.mxu0 0.0
  %3532 = vmatpush1.msra.mxu0 %v3352
  %3533 = vmatprep.subr.mxu0 0.0
  %3534 = vmatpush1.msra.mxu0 %v3351
  %3535 = vmatprep.subr.mxu0 0.0
  %3536 = vmatpush1.msra.mxu0 %v3350
  %3537 = vmatprep.subr.mxu0 0.0
  %3538 = vmatpush1.msra.mxu0 %v3349
  %3539 = vmatprep.subr.mxu0 0.0
  %3540 = vmatpush1.msra.mxu0 %v3348
  %3541 = vmatprep.subr.mxu0 0.0
  %3542 = vmatpush1.msra.mxu0 %v3347
  %3543 = vmatprep.subr.mxu0 0.0
  %3544 = vmatpush1.msra.mxu0 %v3346
  %3545 = vmatprep.subr.mxu0 0.0
  %3546 = vmatpush1.msra.mxu0 %v3345
  %3547 = vmatprep.subr.mxu0 0.0
  %3548 = vmatpush1.msra.mxu0 %v3344
  %3549 = vmatprep.subr.mxu0 0.0
  %3550 = vmatpush1.msra.mxu0 %v3343
  %3551 = vmatprep.subr.mxu0 0.0
  %3552 = vmatpush1.msra.mxu0 %v3342
  %3553 = vmatprep.subr.mxu0 0.0
  %3554 = vmatpush2.msra.mxu0 %v3373
  %3555 = vmatprep.subr.mxu0 0.0
  %3556 = vmatpush2.msra.mxu0 %v3372
  %3557 = vmatprep.subr.mxu0 0.0
  %3558 = vmatpush2.msra.mxu0 %v3371
  %3559 = vmatprep.subr.mxu0 0.0
  %3560 = vmatpush2.msra.mxu0 %v3370
  %3561 = vmatprep.subr.mxu0 0.0
  %3562 = vmatpush2.msra.mxu0 %v3369
  %3563 = vmatprep.subr.mxu0 0.0
  %3564 = vmatpush2.msra.mxu0 %v3368
  %3565 = vmatprep.subr.mxu0 0.0
  %3566 = vmatpush2.msra.mxu0 %v3367
  %3567 = vmatprep.subr.mxu0 0.0
  %3568 = vmatpush2.msra.mxu0 %v3366
  %3569 = vmatprep.subr.mxu0 0.0
  %3570 = vmatpush2.msra.mxu0 %v3365
  %3571 = vmatprep.subr.mxu0 0.0
  %3572 = vmatpush2.msra.mxu0 %v3364
  %3573 = vmatprep.subr.mxu0 0.0
  %3574 = vmatpush2.msra.mxu0 %v3363
  %3575 = vmatprep.subr.mxu0 0.0
  %3576 = vmatpush2.msra.mxu0 %v3362
  %3577 = vmatprep.subr.mxu0 0.0
  %3578 = vmatpush2.msra.mxu0 %v3361
  %3579 = vmatprep.subr.mxu0 0.0
  %3580 = vmatpush2.msra.mxu0 %v3360
  %3581 = vmatprep.subr.mxu0 0.0
  %3582 = vmatpush2.msra.mxu0 %v3359
  %3583 = vmatprep.subr.mxu0 0.0
  %3584 = vmatpush2.msra.mxu0 %v3358
  %3585 = vmatprep.mubr.f32.mxu0 %v3277
  %3586 = vmatmul.mubr.f32.gmra.mxu0 %v3276
  %v3587 = vpop.f32.mrf.mxu0
  %v3588 = vadd.f32 %v3518, %v3587
  %v3589 = vpop.f32.mrf.mxu0
  %3590 = vdwg.mxu0
  %v3591 = vadd.f32 %v3588, %v1966
  %v3592 = vld [vmem:[%s35] sm:$0x1]
  %v3593 = vld [vmem:[%s37] sm:$0x1]
  %v3594 = vsel %vm133, %v3591, 0.0
  %3595 = vadd.xlane.f32.xlu0 %v3594
  %v3596 = vpop.xlane.xlu0 %3595
  %v3597 = vmul.f32 %v3596, %v137
  %v3598 = vsub.f32 %v3591, %v3597
  %v3599 = vmul.f32 %v3598, %v3598
  %v3600 = vsel %vm133, %v3599, 0.0
  %3601 = vadd.xlane.f32.xlu0 %v3600
  %v3602 = vpop.xlane.xlu0 %3601
  %v3603 = vmul.f32 %v3602, %v137
  %v3604 = vadd.f32 %v3603, 1e-05
  %v3605 = vrsqrt.pop %v3604
  %v3606 = vmul.f32 %v3598, %v3605
  %v3608 = vlaneseq
  %v3609 = vshrl.u32 %v3608, 7
  %v3610 = vsub.s32 0, %v3609
  %v3611 = vrot.slane %v3592, %v3610
  %v3613 = vmul.f32 %v3606, %v3611
  %v3615 = vlaneseq
  %v3616 = vshrl.u32 %v3615, 7
  %v3617 = vsub.s32 0, %v3616
  %v3618 = vrot.slane %v3593, %v3617
  %v3620 = vadd.f32 %v3613, %v3618
  %v3621 = vld [vmem:[%s39] sm:$0xff]
  %v3622 = vld [vmem:[%s39 + $0x8] sm:$0xff]
  %v3623 = vld [vmem:[%s39 + $0x10] sm:$0xff]
  %v3624 = vld [vmem:[%s39 + $0x18] sm:$0xff]
  %v3625 = vld [vmem:[%s41] sm:$0x1]
  %v3627 = vlaneseq
  %v3628 = vshrl.u32 %v3627, 7
  %v3629 = vsub.s32 0, %v3628
  %v3630 = vrot.slane %v3625, %v3629
  %v3633 = vsel %vm133, %v3620, 0
  %3635 = vmatprep.subr.mxu0 0.0
  %3636 = vmatpush1.msra.mxu0 0.0
  %3637 = vmatprep.subr.mxu0 0.0
  %3638 = vmatpush1.msra.mxu0 0.0
  %3639 = vmatprep.subr.mxu0 0.0
  %3640 = vmatpush1.msra.mxu0 0.0
  %3641 = vmatprep.subr.mxu0 0.0
  %3642 = vmatpush1.msra.mxu0 0.0
  %3643 = vmatprep.subr.mxu0 0.0
  %3644 = vmatpush1.msra.mxu0 0.0
  %3645 = vmatprep.subr.mxu0 0.0
  %3646 = vmatpush1.msra.mxu0 0.0
  %3647 = vmatprep.subr.mxu0 0.0
  %3648 = vmatpush1.msra.mxu0 0.0
  %3649 = vmatprep.subr.mxu0 0.0
  %3650 = vmatpush1.msra.mxu0 0.0
  %3651 = vmatprep.subr.mxu0 0.0
  %3652 = vmatpush1.msra.mxu0 0.0
  %3653 = vmatprep.subr.mxu0 0.0
  %3654 = vmatpush1.msra.mxu0 0.0
  %3655 = vmatprep.subr.mxu0 0.0
  %3656 = vmatpush1.msra.mxu0 0.0
  %3657 = vmatprep.subr.mxu0 0.0
  %3658 = vmatpush1.msra.mxu0 0.0
  %3659 = vmatprep.subr.mxu0 0.0
  %3660 = vmatpush1.msra.mxu0 %v3624
  %3661 = vmatprep.subr.mxu0 0.0
  %3662 = vmatpush1.msra.mxu0 %v3623
  %3663 = vmatprep.subr.mxu0 0.0
  %3664 = vmatpush1.msra.mxu0 %v3622
  %3665 = vmatprep.subr.mxu0 0.0
  %3666 = vmatpush1.msra.mxu0 %v3621
  %3667 = vmatprep.subr.mxu0 0.0
  %3668 = vmatpush2.msra.mxu0 0.0
  %3669 = vmatprep.subr.mxu0 0.0
  %3670 = vmatpush2.msra.mxu0 0.0
  %3671 = vmatprep.subr.mxu0 0.0
  %3672 = vmatpush2.msra.mxu0 0.0
  %3673 = vmatprep.subr.mxu0 0.0
  %3674 = vmatpush2.msra.mxu0 0.0
  %3675 = vmatprep.subr.mxu0 0.0
  %3676 = vmatpush2.msra.mxu0 0.0
  %3677 = vmatprep.subr.mxu0 0.0
  %3678 = vmatpush2.msra.mxu0 0.0
  %3679 = vmatprep.subr.mxu0 0.0
  %3680 = vmatpush2.msra.mxu0 0.0
  %3681 = vmatprep.subr.mxu0 0.0
  %3682 = vmatpush2.msra.mxu0 0.0
  %3683 = vmatprep.subr.mxu0 0.0
  %3684 = vmatpush2.msra.mxu0 0.0
  %3685 = vmatprep.subr.mxu0 0.0
  %3686 = vmatpush2.msra.mxu0 0.0
  %3687 = vmatprep.subr.mxu0 0.0
  %3688 = vmatpush2.msra.mxu0 0.0
  %3689 = vmatprep.subr.mxu0 0.0
  %3690 = vmatpush2.msra.mxu0 0.0
  %3691 = vmatprep.subr.mxu0 0.0
  %3692 = vmatpush2.msra.mxu0 0.0
  %3693 = vmatprep.subr.mxu0 0.0
  %3694 = vmatpush2.msra.mxu0 0.0
  %3695 = vmatprep.subr.mxu0 0.0
  %3696 = vmatpush2.msra.mxu0 0.0
  %3697 = vmatprep.subr.mxu0 0.0
  %3698 = vmatpush2.msra.mxu0 0.0
  %3699 = vmatprep.mubr.f32.mxu0 0.0
  %3700 = vmatmul.mubr.f32.gmra.mxu0 %v3633
  %v3701 = vpop.f32.mrf.mxu0
  %v3702 = vadd.f32 %v3630, %v3701
  %v3703 = vpop.f32.mrf.mxu0
  %3704 = vdwg.mxu0
  %v3705 = vmul.f32 %v3702, 0.5
  %v3706 = vmul.f32 %v3702, 0.70710677
  %v3707 = verf.f32.pop %v3706
  %v3708 = vadd.f32 %v3707, 1.0
  %v3709 = vmul.f32 %v3705, %v3708
  %v3710 = vld [vmem:[%s43] sm:$0xff]
  %v3711 = vld [vmem:[%s43 + $0x8] sm:$0xff]
  %v3712 = vld [vmem:[%s43 + $0x10] sm:$0xff]
  %v3713 = vld [vmem:[%s43 + $0x18] sm:$0xff]
  %v3714 = vld [vmem:[%s43 + $0x20] sm:$0xff]
  %v3715 = vld [vmem:[%s43 + $0x28] sm:$0xff]
  %v3716 = vld [vmem:[%s43 + $0x30] sm:$0xff]
  %v3717 = vld [vmem:[%s43 + $0x38] sm:$0xff]
  %v3718 = vld [vmem:[%s45] sm:$0x1]
  %v3720 = vlaneseq
  %v3721 = vshrl.u32 %v3720, 7
  %v3722 = vsub.s32 0, %v3721
  %v3723 = vrot.slane %v3718, %v3722
  %v3726 = vsel %vm936, %v3709, 0
  %3728 = vmatprep.subr.mxu0 0.0
  %3729 = vmatpush1.msra.mxu0 0.0
  %3730 = vmatprep.subr.mxu0 0.0
  %3731 = vmatpush1.msra.mxu0 0.0
  %3732 = vmatprep.subr.mxu0 0.0
  %3733 = vmatpush1.msra.mxu0 0.0
  %3734 = vmatprep.subr.mxu0 0.0
  %3735 = vmatpush1.msra.mxu0 0.0
  %3736 = vmatprep.subr.mxu0 0.0
  %3737 = vmatpush1.msra.mxu0 0.0
  %3738 = vmatprep.subr.mxu0 0.0
  %3739 = vmatpush1.msra.mxu0 0.0
  %3740 = vmatprep.subr.mxu0 0.0
  %3741 = vmatpush1.msra.mxu0 0.0
  %3742 = vmatprep.subr.mxu0 0.0
  %3743 = vmatpush1.msra.mxu0 0.0
  %3744 = vmatprep.subr.mxu0 0.0
  %3745 = vmatpush1.msra.mxu0 %v3717
  %3746 = vmatprep.subr.mxu0 0.0
  %3747 = vmatpush1.msra.mxu0 %v3716
  %3748 = vmatprep.subr.mxu0 0.0
  %3749 = vmatpush1.msra.mxu0 %v3715
  %3750 = vmatprep.subr.mxu0 0.0
  %3751 = vmatpush1.msra.mxu0 %v3714
  %3752 = vmatprep.subr.mxu0 0.0
  %3753 = vmatpush1.msra.mxu0 %v3713
  %3754 = vmatprep.subr.mxu0 0.0
  %3755 = vmatpush1.msra.mxu0 %v3712
  %3756 = vmatprep.subr.mxu0 0.0
  %3757 = vmatpush1.msra.mxu0 %v3711
  %3758 = vmatprep.subr.mxu0 0.0
  %3759 = vmatpush1.msra.mxu0 %v3710
  %3760 = vmatprep.subr.mxu0 0.0
  %3761 = vmatpush2.msra.mxu0 0.0
  %3762 = vmatprep.subr.mxu0 0.0
  %3763 = vmatpush2.msra.mxu0 0.0
  %3764 = vmatprep.subr.mxu0 0.0
  %3765 = vmatpush2.msra.mxu0 0.0
  %3766 = vmatprep.subr.mxu0 0.0
  %3767 = vmatpush2.msra.mxu0 0.0
  %3768 = vmatprep.subr.mxu0 0.0
  %3769 = vmatpush2.msra.mxu0 0.0
  %3770 = vmatprep.subr.mxu0 0.0
  %3771 = vmatpush2.msra.mxu0 0.0
  %3772 = vmatprep.subr.mxu0 0.0
  %3773 = vmatpush2.msra.mxu0 0.0
  %3774 = vmatprep.subr.mxu0 0.0
  %3775 = vmatpush2.msra.mxu0 0.0
  %3776 = vmatprep.subr.mxu0 0.0
  %3777 = vmatpush2.msra.mxu0 0.0
  %3778 = vmatprep.subr.mxu0 0.0
  %3779 = vmatpush2.msra.mxu0 0.0
  %3780 = vmatprep.subr.mxu0 0.0
  %3781 = vmatpush2.msra.mxu0 0.0
  %3782 = vmatprep.subr.mxu0 0.0
  %3783 = vmatpush2.msra.mxu0 0.0
  %3784 = vmatprep.subr.mxu0 0.0
  %3785 = vmatpush2.msra.mxu0 0.0
  %3786 = vmatprep.subr.mxu0 0.0
  %3787 = vmatpush2.msra.mxu0 0.0
  %3788 = vmatprep.subr.mxu0 0.0
  %3789 = vmatpush2.msra.mxu0 0.0
  %3790 = vmatprep.subr.mxu0 0.0
  %3791 = vmatpush2.msra.mxu0 0.0
  %3792 = vmatprep.mubr.f32.mxu0 0.0
  %3793 = vmatmul.mubr.f32.gmra.mxu0 %v3726
  %v3794 = vpop.f32.mrf.mxu0
  %v3795 = vadd.f32 %v3723, %v3794
  %v3796 = vpop.f32.mrf.mxu0
  %3797 = vdwg.mxu0
  %v3798 = vadd.f32 %v3795, %v3591
  %v3799 = vld [vmem:[%s47] sm:$0x1]
  %v3800 = vld [vmem:[%s49] sm:$0x1]
  %v3801 = vsel %vm133, %v3798, 0.0
  %3802 = vadd.xlane.f32.xlu0 %v3801
  %v3803 = vpop.xlane.xlu0 %3802
  %v3804 = vmul.f32 %v3803, %v137
  %v3805 = vsub.f32 %v3798, %v3804
  %v3806 = vmul.f32 %v3805, %v3805
  %v3807 = vsel %vm133, %v3806, 0.0
  %3808 = vadd.xlane.f32.xlu0 %v3807
  %v3809 = vpop.xlane.xlu0 %3808
  %v3810 = vmul.f32 %v3809, %v137
  %v3811 = vadd.f32 %v3810, 1e-05
  %v3812 = vrsqrt.pop %v3811
  %v3813 = vmul.f32 %v3805, %v3812
  %v3815 = vlaneseq
  %v3816 = vshrl.u32 %v3815, 7
  %v3817 = vsub.s32 0, %v3816
  %v3818 = vrot.slane %v3799, %v3817
  %v3820 = vmul.f32 %v3813, %v3818
  %v3822 = vlaneseq
  %v3823 = vshrl.u32 %v3822, 7
  %v3824 = vsub.s32 0, %v3823
  %v3825 = vrot.slane %v3800, %v3824
  %v3827 = vadd.f32 %v3820, %v3825
  %v3828 = vld [vmem:[%s51] sm:$0xff]
  %v3829 = vld [vmem:[%s51 + $0x8] sm:$0xff]
  %v3830 = vld [vmem:[%s51 + $0x10] sm:$0xff]
  %v3831 = vld [vmem:[%s51 + $0x18] sm:$0xff]
  %v3832 = vld [vmem:[%s53] sm:$0x1]
  %v3834 = vlaneseq
  %v3835 = vshrl.u32 %v3834, 7
  %v3836 = vsub.s32 0, %v3835
  %v3837 = vrot.slane %v3832, %v3836
  %v3840 = vsel %vm133, %v3827, 0
  %3842 = vmatprep.subr.mxu0 0.0
  %3843 = vmatpush1.msra.mxu0 0.0
  %3844 = vmatprep.subr.mxu0 0.0
  %3845 = vmatpush1.msra.mxu0 0.0
  %3846 = vmatprep.subr.mxu0 0.0
  %3847 = vmatpush1.msra.mxu0 0.0
  %3848 = vmatprep.subr.mxu0 0.0
  %3849 = vmatpush1.msra.mxu0 0.0
  %3850 = vmatprep.subr.mxu0 0.0
  %3851 = vmatpush1.msra.mxu0 0.0
  %3852 = vmatprep.subr.mxu0 0.0
  %3853 = vmatpush1.msra.mxu0 0.0
  %3854 = vmatprep.subr.mxu0 0.0
  %3855 = vmatpush1.msra.mxu0 0.0
  %3856 = vmatprep.subr.mxu0 0.0
  %3857 = vmatpush1.msra.mxu0 0.0
  %3858 = vmatprep.subr.mxu0 0.0
  %3859 = vmatpush1.msra.mxu0 0.0
  %3860 = vmatprep.subr.mxu0 0.0
  %3861 = vmatpush1.msra.mxu0 0.0
  %3862 = vmatprep.subr.mxu0 0.0
  %3863 = vmatpush1.msra.mxu0 0.0
  %3864 = vmatprep.subr.mxu0 0.0
  %3865 = vmatpush1.msra.mxu0 0.0
  %3866 = vmatprep.subr.mxu0 0.0
  %3867 = vmatpush1.msra.mxu0 %v3831
  %3868 = vmatprep.subr.mxu0 0.0
  %3869 = vmatpush1.msra.mxu0 %v3830
  %3870 = vmatprep.subr.mxu0 0.0
  %3871 = vmatpush1.msra.mxu0 %v3829
  %3872 = vmatprep.subr.mxu0 0.0
  %3873 = vmatpush1.msra.mxu0 %v3828
  %3874 = vmatprep.subr.mxu0 0.0
  %3875 = vmatpush2.msra.mxu0 0.0
  %3876 = vmatprep.subr.mxu0 0.0
  %3877 = vmatpush2.msra.mxu0 0.0
  %3878 = vmatprep.subr.mxu0 0.0
  %3879 = vmatpush2.msra.mxu0 0.0
  %3880 = vmatprep.subr.mxu0 0.0
  %3881 = vmatpush2.msra.mxu0 0.0
  %3882 = vmatprep.subr.mxu0 0.0
  %3883 = vmatpush2.msra.mxu0 0.0
  %3884 = vmatprep.subr.mxu0 0.0
  %3885 = vmatpush2.msra.mxu0 0.0
  %3886 = vmatprep.subr.mxu0 0.0
  %3887 = vmatpush2.msra.mxu0 0.0
  %3888 = vmatprep.subr.mxu0 0.0
  %3889 = vmatpush2.msra.mxu0 0.0
  %3890 = vmatprep.subr.mxu0 0.0
  %3891 = vmatpush2.msra.mxu0 0.0
  %3892 = vmatprep.subr.mxu0 0.0
  %3893 = vmatpush2.msra.mxu0 0.0
  %3894 = vmatprep.subr.mxu0 0.0
  %3895 = vmatpush2.msra.mxu0 0.0
  %3896 = vmatprep.subr.mxu0 0.0
  %3897 = vmatpush2.msra.mxu0 0.0
  %3898 = vmatprep.subr.mxu0 0.0
  %3899 = vmatpush2.msra.mxu0 0.0
  %3900 = vmatprep.subr.mxu0 0.0
  %3901 = vmatpush2.msra.mxu0 0.0
  %3902 = vmatprep.subr.mxu0 0.0
  %3903 = vmatpush2.msra.mxu0 0.0
  %3904 = vmatprep.subr.mxu0 0.0
  %3905 = vmatpush2.msra.mxu0 0.0
  %3906 = vmatprep.mubr.f32.mxu0 0.0
  %3907 = vmatmul.mubr.f32.gmra.mxu0 %v3840
  %v3908 = vpop.f32.mrf.mxu0
  %v3909 = vadd.f32 %v3837, %v3908
  %v3910 = vpop.f32.mrf.mxu0
  %3911 = vdwg.mxu0
  %v3912 = vld [vmem:[%s55] sm:$0x1]
  %v3913 = vld [vmem:[%s57] sm:$0x1]
  %v3914 = vsel %vm133, %v3909, 0.0
  %3915 = vadd.xlane.f32.xlu0 %v3914
  %v3916 = vpop.xlane.xlu0 %3915
  %v3917 = vmul.f32 %v3916, %v137
  %v3918 = vsub.f32 %v3909, %v3917
  %v3919 = vmul.f32 %v3918, %v3918
  %v3920 = vsel %vm133, %v3919, 0.0
  %3921 = vadd.xlane.f32.xlu0 %v3920
  %v3922 = vpop.xlane.xlu0 %3921
  %v3923 = vmul.f32 %v3922, %v137
  %v3924 = vadd.f32 %v3923, 1e-05
  %v3925 = vrsqrt.pop %v3924
  %v3926 = vmul.f32 %v3918, %v3925
  %v3928 = vlaneseq
  %v3929 = vshrl.u32 %v3928, 7
  %v3930 = vsub.s32 0, %v3929
  %v3931 = vrot.slane %v3912, %v3930
  %v3933 = vmul.f32 %v3926, %v3931
  %v3935 = vlaneseq
  %v3936 = vshrl.u32 %v3935, 7
  %v3937 = vsub.s32 0, %v3936
  %v3938 = vrot.slane %v3913, %v3937
  %v3940 = vadd.f32 %v3933, %v3938
  %v3941 = vmul.f32 %v3940, 0.5
  %v3942 = vmul.f32 %v3940, 0.70710677
  %v3943 = verf.f32.pop %v3942
  %v3944 = vadd.f32 %v3943, 1.0
  %v3945 = vmul.f32 %v3941, %v3944
  %v3946 = vld [vmem:[%s59] sm:$0xff]
  %v3947 = vld [vmem:[%s59 + $0x8] sm:$0xff]
  %v3948 = vld [vmem:[%s59 + $0x10] sm:$0xff]
  %v3949 = vld [vmem:[%s59 + $0x18] sm:$0xff]
  %v3950 = vld [vmem:[%s61] sm:$0x1]
  %v3952 = vlaneseq
  %v3953 = vshrl.u32 %v3952, 7
  %v3954 = vsub.s32 0, %v3953
  %v3955 = vrot.slane %v3950, %v3954
  %v3958 = vsel %vm133, %v3945, 0
  %3960 = vmatprep.subr.mxu0 0.0
  %3961 = vmatpush1.msra.mxu0 0.0
  %3962 = vmatprep.subr.mxu0 0.0
  %3963 = vmatpush1.msra.mxu0 0.0
  %3964 = vmatprep.subr.mxu0 0.0
  %3965 = vmatpush1.msra.mxu0 0.0
  %3966 = vmatprep.subr.mxu0 0.0
  %3967 = vmatpush1.msra.mxu0 0.0
  %3968 = vmatprep.subr.mxu0 0.0
  %3969 = vmatpush1.msra.mxu0 0.0
  %3970 = vmatprep.subr.mxu0 0.0
  %3971 = vmatpush1.msra.mxu0 0.0
  %3972 = vmatprep.subr.mxu0 0.0
  %3973 = vmatpush1.msra.mxu0 0.0
  %3974 = vmatprep.subr.mxu0 0.0
  %3975 = vmatpush1.msra.mxu0 0.0
  %3976 = vmatprep.subr.mxu0 0.0
  %3977 = vmatpush1.msra.mxu0 0.0
  %3978 = vmatprep.subr.mxu0 0.0
  %3979 = vmatpush1.msra.mxu0 0.0
  %3980 = vmatprep.subr.mxu0 0.0
  %3981 = vmatpush1.msra.mxu0 0.0
  %3982 = vmatprep.subr.mxu0 0.0
  %3983 = vmatpush1.msra.mxu0 0.0
  %3984 = vmatprep.subr.mxu0 0.0
  %3985 = vmatpush1.msra.mxu0 %v3949
  %3986 = vmatprep.subr.mxu0 0.0
  %3987 = vmatpush1.msra.mxu0 %v3948
  %3988 = vmatprep.subr.mxu0 0.0
  %3989 = vmatpush1.msra.mxu0 %v3947
  %3990 = vmatprep.subr.mxu0 0.0
  %3991 = vmatpush1.msra.mxu0 %v3946
  %3992 = vmatprep.subr.mxu0 0.0
  %3993 = vmatpush2.msra.mxu0 0.0
  %3994 = vmatprep.subr.mxu0 0.0
  %3995 = vmatpush2.msra.mxu0 0.0
  %3996 = vmatprep.subr.mxu0 0.0
  %3997 = vmatpush2.msra.mxu0 0.0
  %3998 = vmatprep.subr.mxu0 0.0
  %3999 = vmatpush2.msra.mxu0 0.0
  %4000 = vmatprep.subr.mxu0 0.0
  %4001 = vmatpush2.msra.mxu0 0.0
  %4002 = vmatprep.subr.mxu0 0.0
  %4003 = vmatpush2.msra.mxu0 0.0
  %4004 = vmatprep.subr.mxu0 0.0
  %4005 = vmatpush2.msra.mxu0 0.0
  %4006 = vmatprep.subr.mxu0 0.0
  %4007 = vmatpush2.msra.mxu0 0.0
  %4008 = vmatprep.subr.mxu0 0.0
  %4009 = vmatpush2.msra.mxu0 0.0
  %4010 = vmatprep.subr.mxu0 0.0
  %4011 = vmatpush2.msra.mxu0 0.0
  %4012 = vmatprep.subr.mxu0 0.0
  %4013 = vmatpush2.msra.mxu0 0.0
  %4014 = vmatprep.subr.mxu0 0.0
  %4015 = vmatpush2.msra.mxu0 0.0
  %4016 = vmatprep.subr.mxu0 0.0
  %4017 = vmatpush2.msra.mxu0 0.0
  %4018 = vmatprep.subr.mxu0 0.0
  %4019 = vmatpush2.msra.mxu0 0.0
  %4020 = vmatprep.subr.mxu0 0.0
  %4021 = vmatpush2.msra.mxu0 0.0
  %4022 = vmatprep.subr.mxu0 0.0
  %4023 = vmatpush2.msra.mxu0 0.0
  %4024 = vmatprep.mubr.f32.mxu0 0.0
  %4025 = vmatmul.mubr.f32.gmra.mxu0 %v3958
  %v4026 = vpop.f32.mrf.mxu0
  %v4027 = vadd.f32 %v3955, %v4026
  %v4028 = vpop.f32.mrf.mxu0
  %4029 = vdwg.mxu0
  %4030 = vst [vmem:[%s63] sm:$0xff] %v4027
  // Predicated region
  $region126: #{similarity_layer_fwd.1} parent=0 // pred_check
    _
  $region127: #{similarity_layer_fwd.1} parent=0 // pred_check_branch
    %4032 = sbr.rel (0) target = $region129
  $region128: #{similarity_layer_fwd.1} parent=0 // pred_region
    _
  $region129: #{similarity_layer_fwd.1} parent=0 // pred_fallthru
    _
  // Predicated region
  $region130: #{similarity_layer_fwd.1} parent=0 // pred_check
    _
  $region131: #{similarity_layer_fwd.1} parent=0 // pred_check_branch
    %4034 = sbr.rel (0) target = $region133
  $region132: #{similarity_layer_fwd.1} parent=0 // pred_region
    _
  $region133: #{similarity_layer_fwd.1} parent=0 // pred_fallthru
    _

</llo_original>
